<compile_context>
chip_gen: v7x
topology: tpu7x:2x2x1
jax: 0.10.0
libtpu: 0.0.40
codegen_flags: <defaults>
</compile_context>

<pallas_src>
import functools

import jax
import jax.numpy as jnp
import numpy as np
from jax.experimental import pallas as pl
from jax.experimental.pallas import tpu as pltpu


def _round_up(x, m):
    return (x + m - 1) // m * m


# ----------------------------------------------------------------------------
# Fused kernel: [conv3x3/s2 + GN(per-channel) + ReLU] -> [conv3x3/s1 + GN(1) + ReLU]
# ----------------------------------------------------------------------------
def _fused_encoder_kernel(x_ref, w1_ref, g1_ref, b1_ref, w2_ref, g2_ref, b2_ref,
                          out_ref, hpad_ref, *, eps):
    # x_ref   : (B, Ho+1, Wo+1, 4*Cin) bf16  2x2 pixel-unshuffled halo-padded input
    # w1_ref  : (4, 4*Cin, C1)         bf16  stem "slab" weights (rgb rows pre-scaled by 1/255)
    # g1/b1   : (1, C1)                f32   stem GroupNorm affine (per-channel groups)
    # w2_ref  : (9, C1, Cc)            bf16  head per-tap weights
    # g2/b2   : (1, Cc)                f32   head GroupNorm affine
    # out_ref : (B, Cc, P)             f32   lane-dense NCHW-style store (P = Ho*Wo on lanes)
    # hpad_ref: (B, Ho+2, Wo+2, C1)    bf16  persistent VMEM scratch (zero-padded activation)
    b_blk, hp1, wp1, _ = x_ref.shape
    ho, wo = hp1 - 1, wp1 - 1
    p = ho * wo
    bp = b_blk * p
    c1 = w1_ref.shape[-1]
    cc = w2_ref.shape[-1]

    g1 = g1_ref[...]
    b1 = b1_ref[...]
    g2 = g2_ref[...]
    b2 = b2_ref[...]

    # ---- stem conv (3x3, stride 2, pad 1): 4 accumulated slab dots, bf16 operands, f32 acc ----
    h = None
    for r in range(2):
        for s in range(2):
            tap = x_ref[:, r:r + ho, s:s + wo, :]                  # (B, Ho, Wo, 4*Cin) bf16
            t = tap.reshape(bp, tap.shape[-1])
            contrib = jnp.dot(t, w1_ref[2 * r + s],
                              preferred_element_type=jnp.float32)  # (B*P, C1) f32
            h = contrib if h is None else h + contrib

    # ---- stem GroupNorm (ngroups == C1 -> per-channel) + ReLU, two-pass variance, f32 ----
    h = h.reshape(b_blk, p, c1)
    mu1 = jnp.mean(h, axis=1, keepdims=True)                       # (B, 1, C1)
    d1 = h - mu1
    var1 = jnp.mean(d1 * d1, axis=1, keepdims=True)
    h = jnp.maximum(d1 * jax.lax.rsqrt(var1 + eps) * g1 + b1, 0.0)

    # ---- zero-padded activation into persistent VMEM scratch (bf16) ----
    # Border is re-zeroed every step with 4 tiny slice stores: gating on program_id(0)==0 would
    # be wrong when the "parallel" batch axis is sharded across TensorCores (v7x).
    h_bf = h.reshape(b_blk, ho, wo, c1).astype(jnp.bfloat16)
    zrow = jnp.zeros((b_blk, 1, wo + 2, c1), jnp.bfloat16)
    zcol = jnp.zeros((b_blk, ho + 2, 1, c1), jnp.bfloat16)
    hpad_ref[:, 0:1, :, :] = zrow
    hpad_ref[:, ho + 1:ho + 2, :, :] = zrow
    hpad_ref[:, :, 0:1, :] = zcol
    hpad_ref[:, :, wo + 1:wo + 2, :] = zcol
    hpad_ref[:, 1:ho + 1, 1:wo + 1, :] = h_bf

    # ---- head conv (3x3, stride 1, pad 1): 9 accumulated tap dots, bf16 operands, f32 acc ----
    y = None
    for dy in range(3):
        for dx in range(3):
            tap = hpad_ref[:, dy:dy + ho, dx:dx + wo, :]           # (B, Ho, Wo, C1) bf16
            t = tap.reshape(bp, c1)
            contrib = jnp.dot(t, w2_ref[3 * dy + dx],
                              preferred_element_type=jnp.float32)  # (B*P, Cc) f32
            y = contrib if y is None else y + contrib

    # ---- head GroupNorm(1, Cc): one group over (channels x spatial) per sample + ReLU ----
    # Nested means are exact: no channel padding, so all sub-groups are equal-sized.
    y = y.reshape(b_blk, p, cc)
    mu2 = jnp.mean(jnp.mean(y, axis=2, keepdims=True), axis=1, keepdims=True)
    d2 = y - mu2
    var2 = jnp.mean(jnp.mean(d2 * d2, axis=2, keepdims=True), axis=1, keepdims=True)
    y = jnp.maximum(d2 * jax.lax.rsqrt(var2 + eps) * g2 + b2, 0.0)

    # ---- lane-dense store: (B, Cc, P); the small (P, Cc) -> (Cc, P) transpose rides the XLU ----
    out_ref[...] = jnp.transpose(y, (0, 2, 1))


# ----------------------------------------------------------------------------
# Batch-block sizing against a per-step VMEM working-set budget
# ----------------------------------------------------------------------------
def _pick_batch_block(n, ho, wo, cin4, c1, cc):
    p = ho * wo

    def per_sample_bytes():
        # padded (sublane/lane) estimates of what lives in VMEM per sample per grid step
        in_blk = (ho + 1) * _round_up(wo + 1, 16) * _round_up(cin4, 128) * 2   # bf16 input
        hpad = (ho + 2) * _round_up(wo + 2, 16) * _round_up(c1, 128) * 2       # bf16 scratch
        acts = p * _round_up(c1, 128) * 4 + p * _round_up(cc, 128) * 4         # f32 h + y
        out_blk = _round_up(cc, 8) * _round_up(p, 128) * 4                     # f32 output
        return 2 * in_blk + hpad + acts + 2 * out_blk                          # 2x pipelined I/O

    # Budget chosen to stay under v5e's 16 MiB default scoped VMEM and well under v7x's 64 MiB
    # physical VMEM; keep >= 2 grid steps so v7x's two TensorCores both get work.
    budget = 10 * 1024 * 1024
    b_blk = 1
    for d in (8, 4, 2):
        if n % d == 0 and n // d >= 2 and d * per_sample_bytes() <= budget:
            b_blk = d
            break
    return b_blk, b_blk * per_sample_bytes()


# ----------------------------------------------------------------------------
# EarlyFuseCNNEncoder forward (JAX/Pallas)
# ----------------------------------------------------------------------------
def early_fuse_cnn_encoder_forward(observations, params, *, eps=1e-5):
    # torch: cat([rgb.float()/255, depth.float()], dim=1) in NCHW == channel concat in NHWC.
    # rgb/255 is folded into the stem weight; inputs travel bf16 (uint8 rgb is exact in bf16).
    rgb = observations["rgb"]
    depth = observations["depth"]
    x = jnp.concatenate([rgb.astype(jnp.bfloat16), depth.astype(jnp.bfloat16)], axis=-1)
    n, h, w, cin = x.shape
    assert h % 2 == 0 and w % 2 == 0, "stand-in stem assumes even spatial size"
    n_rgb = rgb.shape[-1]
    ho, wo = h // 2, w // 2
    p = ho * wo

    # conv(pad=1) halo + 2x2 pixel-unshuffle:  U[n, r, s, 2*pr+pc, c] = xp[n, 2r+pr, 2s+pc, c].
    # Every stride-2 stem tap becomes a contiguous static slice, and the block's minor dim is
    # 4*Cin (one cheap XLA pass over the small bf16 input; no f32 / im2col blow-up).
    xp = jnp.pad(x, ((0, 0), (1, 1), (1, 1), (0, 0)))
    u = xp.reshape(n, ho + 1, 2, wo + 1, 2, cin)
    u = jnp.transpose(u, (0, 1, 3, 2, 4, 5)).reshape(n, ho + 1, wo + 1, 4 * cin)

    # --- stem weight -> 4 slab weights (K = 4*Cin); 1/255 folded into the rgb rows ---
    w_stem = params["w_stem"]                                   # (3, 3, Cin, C1) HWIO
    c1 = w_stem.shape[-1]
    assert params["stem_groups"] == c1, "stand-in stem uses ngroups == baseplanes"
    # TODO(synk): general GroupNorm group counts (only groups==C and groups==1 occur here).
    scale = jnp.concatenate([jnp.full((n_rgb,), 1.0 / 255.0, jnp.float32),
                             jnp.ones((cin - n_rgb,), jnp.float32)])
    ws = w_stem.astype(jnp.float32) * scale[None, None, :, None]
    w1 = jnp.zeros((4, 4 * cin, c1), jnp.float32)
    for r in (0, 1):
        for s in (0, 1):
            for pr in (0, 1):
                for pc in (0, 1):
                    dy, dx = 2 * r + pr, 2 * s + pc
                    if dy <= 2 and dx <= 2:
                        pidx = 2 * pr + pc
                        w1 = w1.at[2 * r + s, pidx * cin:(pidx + 1) * cin, :].set(ws[dy, dx])
    w1 = w1.astype(jnp.bfloat16)
    g1 = params["g_stem"].reshape(1, c1).astype(jnp.float32)
    b1 = params["b_stem"].reshape(1, c1).astype(jnp.float32)

    # --- head weight: (9, C1, Cc); no channel padding (output layout is lane-dense in P) ---
    w_comp = params["w_comp"]                                   # (3, 3, C1, Cc)
    cc = w_comp.shape[-1]
    w2 = w_comp.reshape(9, c1, cc).astype(jnp.bfloat16)
    g2 = params["g_comp"].reshape(1, cc).astype(jnp.float32)
    b2 = params["b_comp"].reshape(1, cc).astype(jnp.float32)

    b_blk, est_bytes = _pick_batch_block(n, ho, wo, 4 * cin, c1, cc)
    grid = (n // b_blk,)
    vmem_limit = int(min(max(4 * est_bytes, 32 << 20), 48 << 20))

    kernel = functools.partial(_fused_encoder_kernel, eps=eps)
    out = pl.pallas_call(
        kernel,
        out_shape=jax.ShapeDtypeStruct((n, cc, p), jnp.float32),
        grid=grid,
        in_specs=[
            pl.BlockSpec((b_blk, ho + 1, wo + 1, 4 * cin), lambda i: (i, 0, 0, 0)),
            pl.BlockSpec((4, 4 * cin, c1), lambda i: (0, 0, 0)),
            pl.BlockSpec((1, c1), lambda i: (0, 0)),
            pl.BlockSpec((1, c1), lambda i: (0, 0)),
            pl.BlockSpec((9, c1, cc), lambda i: (0, 0, 0)),
            pl.BlockSpec((1, cc), lambda i: (0, 0)),
            pl.BlockSpec((1, cc), lambda i: (0, 0)),
        ],
        out_specs=pl.BlockSpec((b_blk, cc, p), lambda i: (i, 0, 0)),
        scratch_shapes=[pltpu.VMEM((b_blk, ho + 2, wo + 2, c1), jnp.bfloat16)],
        compiler_params=pltpu.CompilerParams(
            dimension_semantics=("parallel",), vmem_limit_bytes=vmem_limit),
    )(u, w1, g1, b1, w2, g2, b2)

    # (n, Cc, P) -> NCHW: metadata-only reshape (no XLA slice / transpose round-trips).
    return out.reshape(n, cc, ho, wo)


# ----------------------------------------------------------------------------
# Pure-JAX f32 reference for a correctness check
# ----------------------------------------------------------------------------
def _ref_conv_gn_relu(x, w, gamma, beta, *, stride, groups, eps=1e-5):
    y = jax.lax.conv_general_dilated(
        x, w, (stride, stride), ((1, 1), (1, 1)),
        dimension_numbers=("NHWC", "HWIO", "NHWC"))
    n, h, ww, c = y.shape
    yg = y.reshape(n, h * ww, groups, c // groups)
    mean = yg.mean(axis=(1, 3), keepdims=True)
    var = ((yg - mean) ** 2).mean(axis=(1, 3), keepdims=True)
    yn = ((yg - mean) / jnp.sqrt(var + eps)).reshape(n, h, ww, c)
    return jnp.maximum(yn * gamma + beta, 0.0)


def _ref_forward(observations, params):
    x = jnp.concatenate(
        [observations["rgb"].astype(jnp.float32) / 255.0,
         observations["depth"].astype(jnp.float32)], axis=-1)
    x = _ref_conv_gn_relu(x, params["w_stem"], params["g_stem"], params["b_stem"],
                          stride=2, groups=params["stem_groups"])
    x = _ref_conv_gn_relu(x, params["w_comp"], params["g_comp"], params["b_comp"],
                          stride=1, groups=1)
    return jnp.transpose(x, (0, 3, 1, 2))


# ----------------------------------------------------------------------------
if __name__ == "__main__":
    # Module geometry (small test sizes):
    #   rgb (3ch) + depth (1ch) -> num_input_channels = 4
    #   spatial_size = 16, baseplanes = 32, ngroups = 32
    #   backbone final_spatial_compress = 0.5 -> final_spatial = 8
    #   visual_encoder_embedding_size = 512
    #   num_compression_channels = round(512 / 8**2) = 8
    batch, spatial = 2, 16
    n_input_channels = 4
    baseplanes, ngroups = 32, 32
    embedding_size = 512
    final_spatial = spatial // 2
    num_compression_channels = int(round(embedding_size / final_spatial ** 2))

    key = jax.random.PRNGKey(0)
    k = jax.random.split(key, 10)

    params = {
        "w_stem": jax.random.normal(k[0], (3, 3, n_input_channels, baseplanes),
                                    jnp.float32) * (2.0 / (9 * n_input_channels)) ** 0.5,
        "g_stem": 1.0 + 0.1 * jax.random.normal(k[1], (baseplanes,), jnp.float32),
        "b_stem": 0.1 * jax.random.normal(k[2], (baseplanes,), jnp.float32),
        "stem_groups": ngroups,
        "w_comp": jax.random.normal(k[3], (3, 3, baseplanes, num_compression_channels),
                                    jnp.float32) * (2.0 / (9 * baseplanes)) ** 0.5,
        "g_comp": 1.0 + 0.1 * jax.random.normal(k[4], (num_compression_channels,), jnp.float32),
        "b_comp": 0.1 * jax.random.normal(k[5], (num_compression_channels,), jnp.float32),
    }

    observations = {
        "rgb": jax.random.randint(k[6], (batch, spatial, spatial, 3), 0, 256,
                                  dtype=jnp.int32).astype(jnp.uint8),
        "depth": jax.random.uniform(k[7], (batch, spatial, spatial, 1), jnp.float32),
    }

    out = early_fuse_cnn_encoder_forward(observations, params)
    out = jax.block_until_ready(out)
    assert out.shape == (batch, num_compression_channels, final_spatial, final_spatial)

    ref = jax.block_until_ready(_ref_forward(observations, params))
    # bf16 MXU operands (f32 accumulation) -> slightly looser tolerance than pure f32.
    np.testing.assert_allclose(np.asarray(out), np.asarray(ref), rtol=3e-2, atol=3e-2)

    print("KERNEL_OK")
</pallas_src>

<mosaic_0001>
module attributes {stable_mosaic.version = 11 : i64} {
  func.func @_fused_encoder_kernel(%arg0: i32, %arg1: memref<1x9x9x16xbf16, #tpu.memory_space<vmem>>, %arg2: memref<4x16x32xbf16, #tpu.memory_space<vmem>>, %arg3: memref<1x32xf32, #tpu.memory_space<vmem>>, %arg4: memref<1x32xf32, #tpu.memory_space<vmem>>, %arg5: memref<9x32x8xbf16, #tpu.memory_space<vmem>>, %arg6: memref<1x8xf32, #tpu.memory_space<vmem>>, %arg7: memref<1x8xf32, #tpu.memory_space<vmem>>, %arg8: memref<1x8x64xf32, #tpu.memory_space<vmem>>, %arg9: memref<1x10x10x32xbf16, #tpu.memory_space<vmem>>) attributes {dimension_semantics = [#tpu.dimension_semantics<parallel>], iteration_bounds = array<i64: 2>, scalar_prefetch = 0 : i64, scratch_operands = 1 : i64, tpu.core_type = #tpu.core_type<tc>, window_params = [{transform_indices = @transform_0, window_bounds = array<i64: 1, 9, 9, 16>}, {pipeline_mode = #tpu.pipeline_mode<synchronous>, transform_indices = @transform_1, window_bounds = array<i64: 4, 16, 32>}, {pipeline_mode = #tpu.pipeline_mode<synchronous>, transform_indices = @transform_2, window_bounds = array<i64: 1, 32>}, {pipeline_mode = #tpu.pipeline_mode<synchronous>, transform_indices = @transform_3, window_bounds = array<i64: 1, 32>}, {pipeline_mode = #tpu.pipeline_mode<synchronous>, transform_indices = @transform_4, window_bounds = array<i64: 9, 32, 8>}, {pipeline_mode = #tpu.pipeline_mode<synchronous>, transform_indices = @transform_5, window_bounds = array<i64: 1, 8>}, {pipeline_mode = #tpu.pipeline_mode<synchronous>, transform_indices = @transform_6, window_bounds = array<i64: 1, 8>}, {transform_indices = @transform_7, window_bounds = array<i64: 1, 8, 64>}]} {
    %c0 = arith.constant 0 : index
    %c0_0 = arith.constant 0 : index
    %0 = vector.load %arg3[%c0, %c0_0] : memref<1x32xf32, #tpu.memory_space<vmem>>, vector<1x32xf32>
    %c0_1 = arith.constant 0 : index
    %c0_2 = arith.constant 0 : index
    %1 = vector.load %arg4[%c0_1, %c0_2] : memref<1x32xf32, #tpu.memory_space<vmem>>, vector<1x32xf32>
    %c0_3 = arith.constant 0 : index
    %c0_4 = arith.constant 0 : index
    %2 = vector.load %arg6[%c0_3, %c0_4] : memref<1x8xf32, #tpu.memory_space<vmem>>, vector<1x8xf32>
    %c0_5 = arith.constant 0 : index
    %c0_6 = arith.constant 0 : index
    %3 = vector.load %arg7[%c0_5, %c0_6] : memref<1x8xf32, #tpu.memory_space<vmem>>, vector<1x8xf32>
    %c0_7 = arith.constant 0 : index
    %c0_8 = arith.constant 0 : index
    %c0_9 = arith.constant 0 : index
    %c0_10 = arith.constant 0 : index
    %4 = vector.load %arg1[%c0_7, %c0_8, %c0_9, %c0_10] : memref<1x9x9x16xbf16, #tpu.memory_space<vmem>>, vector<1x8x8x16xbf16>
    %5 = vector.shape_cast %4 : vector<1x8x8x16xbf16> to vector<64x16xbf16>
    %c0_11 = arith.constant 0 : index
    %c0_12 = arith.constant 0 : index
    %c0_13 = arith.constant 0 : index
    %6 = vector.load %arg2[%c0_11, %c0_12, %c0_13] : memref<4x16x32xbf16, #tpu.memory_space<vmem>>, vector<1x16x32xbf16>
    %7 = vector.shape_cast %6 : vector<1x16x32xbf16> to vector<16x32xbf16>
    %cst = arith.constant dense<0.000000e+00> : vector<64x32xf32>
    %8 = tpu.matmul %5, %7, %cst {dimension_numbers = #tpu.dot_dimension_numbers<[1], [0], [0], [1], [0, 0, 1, 1], [], []>} : vector<64x16xbf16>, vector<16x32xbf16>, vector<64x32xf32> -> vector<64x32xf32>
    %c0_14 = arith.constant 0 : index
    %c0_15 = arith.constant 0 : index
    %c1 = arith.constant 1 : index
    %c0_16 = arith.constant 0 : index
    %9 = vector.load %arg1[%c0_14, %c0_15, %c1, %c0_16] : memref<1x9x9x16xbf16, #tpu.memory_space<vmem>>, vector<1x8x8x16xbf16>
    %10 = vector.shape_cast %9 : vector<1x8x8x16xbf16> to vector<64x16xbf16>
    %c1_17 = arith.constant 1 : index
    %c0_18 = arith.constant 0 : index
    %c0_19 = arith.constant 0 : index
    %11 = vector.load %arg2[%c1_17, %c0_18, %c0_19] : memref<4x16x32xbf16, #tpu.memory_space<vmem>>, vector<1x16x32xbf16>
    %12 = vector.shape_cast %11 : vector<1x16x32xbf16> to vector<16x32xbf16>
    %cst_20 = arith.constant dense<0.000000e+00> : vector<64x32xf32>
    %13 = tpu.matmul %10, %12, %cst_20 {dimension_numbers = #tpu.dot_dimension_numbers<[1], [0], [0], [1], [0, 0, 1, 1], [], []>} : vector<64x16xbf16>, vector<16x32xbf16>, vector<64x32xf32> -> vector<64x32xf32>
    %14 = arith.addf %8, %13 : vector<64x32xf32>
    %c0_21 = arith.constant 0 : index
    %c1_22 = arith.constant 1 : index
    %c0_23 = arith.constant 0 : index
    %c0_24 = arith.constant 0 : index
    %15 = vector.load %arg1[%c0_21, %c1_22, %c0_23, %c0_24] : memref<1x9x9x16xbf16, #tpu.memory_space<vmem>>, vector<1x8x8x16xbf16>
    %16 = vector.shape_cast %15 : vector<1x8x8x16xbf16> to vector<64x16xbf16>
    %c2 = arith.constant 2 : index
    %c0_25 = arith.constant 0 : index
    %c0_26 = arith.constant 0 : index
    %17 = vector.load %arg2[%c2, %c0_25, %c0_26] : memref<4x16x32xbf16, #tpu.memory_space<vmem>>, vector<1x16x32xbf16>
    %18 = vector.shape_cast %17 : vector<1x16x32xbf16> to vector<16x32xbf16>
    %cst_27 = arith.constant dense<0.000000e+00> : vector<64x32xf32>
    %19 = tpu.matmul %16, %18, %cst_27 {dimension_numbers = #tpu.dot_dimension_numbers<[1], [0], [0], [1], [0, 0, 1, 1], [], []>} : vector<64x16xbf16>, vector<16x32xbf16>, vector<64x32xf32> -> vector<64x32xf32>
    %20 = arith.addf %14, %19 : vector<64x32xf32>
    %c0_28 = arith.constant 0 : index
    %c1_29 = arith.constant 1 : index
    %c1_30 = arith.constant 1 : index
    %c0_31 = arith.constant 0 : index
    %21 = vector.load %arg1[%c0_28, %c1_29, %c1_30, %c0_31] : memref<1x9x9x16xbf16, #tpu.memory_space<vmem>>, vector<1x8x8x16xbf16>
    %22 = vector.shape_cast %21 : vector<1x8x8x16xbf16> to vector<64x16xbf16>
    %c3 = arith.constant 3 : index
    %c0_32 = arith.constant 0 : index
    %c0_33 = arith.constant 0 : index
    %23 = vector.load %arg2[%c3, %c0_32, %c0_33] : memref<4x16x32xbf16, #tpu.memory_space<vmem>>, vector<1x16x32xbf16>
    %24 = vector.shape_cast %23 : vector<1x16x32xbf16> to vector<16x32xbf16>
    %cst_34 = arith.constant dense<0.000000e+00> : vector<64x32xf32>
    %25 = tpu.matmul %22, %24, %cst_34 {dimension_numbers = #tpu.dot_dimension_numbers<[1], [0], [0], [1], [0, 0, 1, 1], [], []>} : vector<64x16xbf16>, vector<16x32xbf16>, vector<64x32xf32> -> vector<64x32xf32>
    %26 = arith.addf %20, %25 : vector<64x32xf32>
    %27 = vector.shape_cast %26 : vector<64x32xf32> to vector<1x64x32xf32>
    %cst_35 = arith.constant dense<0.000000e+00> : vector<1x32xf32>
    %28 = vector.multi_reduction <add>, %27, %cst_35 [1] : vector<1x64x32xf32> to vector<1x32xf32>
    %29 = vector.shape_cast %28 : vector<1x32xf32> to vector<1x1x32xf32>
    %cst_36 = arith.constant 6.400000e+01 : f32
    %30 = vector.broadcast %cst_36 : f32 to vector<1x1x32xf32>
    %31 = arith.divf %29, %30 : vector<1x1x32xf32>
    %32 = vector.broadcast %31 : vector<1x1x32xf32> to vector<1x64x32xf32>
    %33 = arith.subf %27, %32 : vector<1x64x32xf32>
    %34 = arith.mulf %33, %33 : vector<1x64x32xf32>
    %cst_37 = arith.constant dense<0.000000e+00> : vector<1x32xf32>
    %35 = vector.multi_reduction <add>, %34, %cst_37 [1] : vector<1x64x32xf32> to vector<1x32xf32>
    %36 = vector.shape_cast %35 : vector<1x32xf32> to vector<1x1x32xf32>
    %cst_38 = arith.constant 6.400000e+01 : f32
    %37 = vector.broadcast %cst_38 : f32 to vector<1x1x32xf32>
    %38 = arith.divf %36, %37 : vector<1x1x32xf32>
    %cst_39 = arith.constant 9.99999974E-6 : f32
    %39 = vector.broadcast %cst_39 : f32 to vector<1x1x32xf32>
    %40 = arith.addf %38, %39 : vector<1x1x32xf32>
    %41 = math.rsqrt %40 : vector<1x1x32xf32>
    %42 = vector.broadcast %41 : vector<1x1x32xf32> to vector<1x64x32xf32>
    %43 = arith.mulf %33, %42 : vector<1x64x32xf32>
    %44 = vector.shape_cast %0 : vector<1x32xf32> to vector<1x1x32xf32>
    %45 = vector.broadcast %44 : vector<1x1x32xf32> to vector<1x64x32xf32>
    %46 = arith.mulf %43, %45 : vector<1x64x32xf32>
    %47 = vector.shape_cast %1 : vector<1x32xf32> to vector<1x1x32xf32>
    %48 = vector.broadcast %47 : vector<1x1x32xf32> to vector<1x64x32xf32>
    %49 = arith.addf %46, %48 : vector<1x64x32xf32>
    %cst_40 = arith.constant 0.000000e+00 : f32
    %50 = vector.broadcast %cst_40 : f32 to vector<1x64x32xf32>
    %51 = arith.maximumf %49, %50 : vector<1x64x32xf32>
    %52 = vector.shape_cast %51 : vector<1x64x32xf32> to vector<1x8x8x32xf32>
    %53 = arith.truncf %52 : vector<1x8x8x32xf32> to vector<1x8x8x32xbf16>
    %cst_41 = arith.constant 0.000000e+00 : bf16
    %54 = vector.broadcast %cst_41 : bf16 to vector<1x1x10x32xbf16>
    %cst_42 = arith.constant 0.000000e+00 : bf16
    %55 = vector.broadcast %cst_42 : bf16 to vector<1x10x1x32xbf16>
    %c0_43 = arith.constant 0 : index
    %c0_44 = arith.constant 0 : index
    %c0_45 = arith.constant 0 : index
    %c0_46 = arith.constant 0 : index
    %56 = vector.load %arg9[%c0_43, %c0_44, %c0_45, %c0_46] : memref<1x10x10x32xbf16, #tpu.memory_space<vmem>>, vector<1x1x10x32xbf16>
    tpu.vector_store %arg9[%c0_43, %c0_44, %c0_45, %c0_46], %54 {strides = array<i32>} : memref<1x10x10x32xbf16, #tpu.memory_space<vmem>>, vector<1x1x10x32xbf16>,
    %c0_47 = arith.constant 0 : index
    %c9 = arith.constant 9 : index
    %c0_48 = arith.constant 0 : index
    %c0_49 = arith.constant 0 : index
    %57 = vector.load %arg9[%c0_47, %c9, %c0_48, %c0_49] : memref<1x10x10x32xbf16, #tpu.memory_space<vmem>>, vector<1x1x10x32xbf16>
    tpu.vector_store %arg9[%c0_47, %c9, %c0_48, %c0_49], %54 {strides = array<i32>} : memref<1x10x10x32xbf16, #tpu.memory_space<vmem>>, vector<1x1x10x32xbf16>,
    %c0_50 = arith.constant 0 : index
    %c0_51 = arith.constant 0 : index
    %c0_52 = arith.constant 0 : index
    %c0_53 = arith.constant 0 : index
    %58 = vector.load %arg9[%c0_50, %c0_51, %c0_52, %c0_53] : memref<1x10x10x32xbf16, #tpu.memory_space<vmem>>, vector<1x10x1x32xbf16>
    tpu.vector_store %arg9[%c0_50, %c0_51, %c0_52, %c0_53], %55 {strides = array<i32>} : memref<1x10x10x32xbf16, #tpu.memory_space<vmem>>, vector<1x10x1x32xbf16>,
    %c0_54 = arith.constant 0 : index
    %c0_55 = arith.constant 0 : index
    %c9_56 = arith.constant 9 : index
    %c0_57 = arith.constant 0 : index
    %59 = vector.load %arg9[%c0_54, %c0_55, %c9_56, %c0_57] : memref<1x10x10x32xbf16, #tpu.memory_space<vmem>>, vector<1x10x1x32xbf16>
    tpu.vector_store %arg9[%c0_54, %c0_55, %c9_56, %c0_57], %55 {strides = array<i32>} : memref<1x10x10x32xbf16, #tpu.memory_space<vmem>>, vector<1x10x1x32xbf16>,
    %c0_58 = arith.constant 0 : index
    %c1_59 = arith.constant 1 : index
    %c1_60 = arith.constant 1 : index
    %c0_61 = arith.constant 0 : index
    %60 = vector.load %arg9[%c0_58, %c1_59, %c1_60, %c0_61] : memref<1x10x10x32xbf16, #tpu.memory_space<vmem>>, vector<1x8x8x32xbf16>
    tpu.vector_store %arg9[%c0_58, %c1_59, %c1_60, %c0_61], %53 {strides = array<i32>} : memref<1x10x10x32xbf16, #tpu.memory_space<vmem>>, vector<1x8x8x32xbf16>,
    %c0_62 = arith.constant 0 : index
    %c0_63 = arith.constant 0 : index
    %c0_64 = arith.constant 0 : index
    %c0_65 = arith.constant 0 : index
    %61 = vector.load %arg9[%c0_62, %c0_63, %c0_64, %c0_65] : memref<1x10x10x32xbf16, #tpu.memory_space<vmem>>, vector<1x8x8x32xbf16>
    %62 = vector.shape_cast %61 : vector<1x8x8x32xbf16> to vector<64x32xbf16>
    %c0_66 = arith.constant 0 : index
    %c0_67 = arith.constant 0 : index
    %c0_68 = arith.constant 0 : index
    %63 = vector.load %arg5[%c0_66, %c0_67, %c0_68] : memref<9x32x8xbf16, #tpu.memory_space<vmem>>, vector<1x32x8xbf16>
    %64 = vector.shape_cast %63 : vector<1x32x8xbf16> to vector<32x8xbf16>
    %cst_69 = arith.constant dense<0.000000e+00> : vector<64x8xf32>
    %65 = tpu.matmul %62, %64, %cst_69 {dimension_numbers = #tpu.dot_dimension_numbers<[1], [0], [0], [1], [0, 0, 1, 1], [], []>} : vector<64x32xbf16>, vector<32x8xbf16>, vector<64x8xf32> -> vector<64x8xf32>
    %c0_70 = arith.constant 0 : index
    %c0_71 = arith.constant 0 : index
    %c1_72 = arith.constant 1 : index
    %c0_73 = arith.constant 0 : index
    %66 = vector.load %arg9[%c0_70, %c0_71, %c1_72, %c0_73] : memref<1x10x10x32xbf16, #tpu.memory_space<vmem>>, vector<1x8x8x32xbf16>
    %67 = vector.shape_cast %66 : vector<1x8x8x32xbf16> to vector<64x32xbf16>
    %c1_74 = arith.constant 1 : index
    %c0_75 = arith.constant 0 : index
    %c0_76 = arith.constant 0 : index
    %68 = vector.load %arg5[%c1_74, %c0_75, %c0_76] : memref<9x32x8xbf16, #tpu.memory_space<vmem>>, vector<1x32x8xbf16>
    %69 = vector.shape_cast %68 : vector<1x32x8xbf16> to vector<32x8xbf16>
    %cst_77 = arith.constant dense<0.000000e+00> : vector<64x8xf32>
    %70 = tpu.matmul %67, %69, %cst_77 {dimension_numbers = #tpu.dot_dimension_numbers<[1], [0], [0], [1], [0, 0, 1, 1], [], []>} : vector<64x32xbf16>, vector<32x8xbf16>, vector<64x8xf32> -> vector<64x8xf32>
    %71 = arith.addf %65, %70 : vector<64x8xf32>
    %c0_78 = arith.constant 0 : index
    %c0_79 = arith.constant 0 : index
    %c2_80 = arith.constant 2 : index
    %c0_81 = arith.constant 0 : index
    %72 = vector.load %arg9[%c0_78, %c0_79, %c2_80, %c0_81] : memref<1x10x10x32xbf16, #tpu.memory_space<vmem>>, vector<1x8x8x32xbf16>
    %73 = vector.shape_cast %72 : vector<1x8x8x32xbf16> to vector<64x32xbf16>
    %c2_82 = arith.constant 2 : index
    %c0_83 = arith.constant 0 : index
    %c0_84 = arith.constant 0 : index
    %74 = vector.load %arg5[%c2_82, %c0_83, %c0_84] : memref<9x32x8xbf16, #tpu.memory_space<vmem>>, vector<1x32x8xbf16>
    %75 = vector.shape_cast %74 : vector<1x32x8xbf16> to vector<32x8xbf16>
    %cst_85 = arith.constant dense<0.000000e+00> : vector<64x8xf32>
    %76 = tpu.matmul %73, %75, %cst_85 {dimension_numbers = #tpu.dot_dimension_numbers<[1], [0], [0], [1], [0, 0, 1, 1], [], []>} : vector<64x32xbf16>, vector<32x8xbf16>, vector<64x8xf32> -> vector<64x8xf32>
    %77 = arith.addf %71, %76 : vector<64x8xf32>
    %c0_86 = arith.constant 0 : index
    %c1_87 = arith.constant 1 : index
    %c0_88 = arith.constant 0 : index
    %c0_89 = arith.constant 0 : index
    %78 = vector.load %arg9[%c0_86, %c1_87, %c0_88, %c0_89] : memref<1x10x10x32xbf16, #tpu.memory_space<vmem>>, vector<1x8x8x32xbf16>
    %79 = vector.shape_cast %78 : vector<1x8x8x32xbf16> to vector<64x32xbf16>
    %c3_90 = arith.constant 3 : index
    %c0_91 = arith.constant 0 : index
    %c0_92 = arith.constant 0 : index
    %80 = vector.load %arg5[%c3_90, %c0_91, %c0_92] : memref<9x32x8xbf16, #tpu.memory_space<vmem>>, vector<1x32x8xbf16>
    %81 = vector.shape_cast %80 : vector<1x32x8xbf16> to vector<32x8xbf16>
    %cst_93 = arith.constant dense<0.000000e+00> : vector<64x8xf32>
    %82 = tpu.matmul %79, %81, %cst_93 {dimension_numbers = #tpu.dot_dimension_numbers<[1], [0], [0], [1], [0, 0, 1, 1], [], []>} : vector<64x32xbf16>, vector<32x8xbf16>, vector<64x8xf32> -> vector<64x8xf32>
    %83 = arith.addf %77, %82 : vector<64x8xf32>
    %c0_94 = arith.constant 0 : index
    %c1_95 = arith.constant 1 : index
    %c1_96 = arith.constant 1 : index
    %c0_97 = arith.constant 0 : index
    %84 = vector.load %arg9[%c0_94, %c1_95, %c1_96, %c0_97] : memref<1x10x10x32xbf16, #tpu.memory_space<vmem>>, vector<1x8x8x32xbf16>
    %85 = vector.shape_cast %84 : vector<1x8x8x32xbf16> to vector<64x32xbf16>
    %c4 = arith.constant 4 : index
    %c0_98 = arith.constant 0 : index
    %c0_99 = arith.constant 0 : index
    %86 = vector.load %arg5[%c4, %c0_98, %c0_99] : memref<9x32x8xbf16, #tpu.memory_space<vmem>>, vector<1x32x8xbf16>
    %87 = vector.shape_cast %86 : vector<1x32x8xbf16> to vector<32x8xbf16>
    %cst_100 = arith.constant dense<0.000000e+00> : vector<64x8xf32>
    %88 = tpu.matmul %85, %87, %cst_100 {dimension_numbers = #tpu.dot_dimension_numbers<[1], [0], [0], [1], [0, 0, 1, 1], [], []>} : vector<64x32xbf16>, vector<32x8xbf16>, vector<64x8xf32> -> vector<64x8xf32>
    %89 = arith.addf %83, %88 : vector<64x8xf32>
    %c0_101 = arith.constant 0 : index
    %c1_102 = arith.constant 1 : index
    %c2_103 = arith.constant 2 : index
    %c0_104 = arith.constant 0 : index
    %90 = vector.load %arg9[%c0_101, %c1_102, %c2_103, %c0_104] : memref<1x10x10x32xbf16, #tpu.memory_space<vmem>>, vector<1x8x8x32xbf16>
    %91 = vector.shape_cast %90 : vector<1x8x8x32xbf16> to vector<64x32xbf16>
    %c5 = arith.constant 5 : index
    %c0_105 = arith.constant 0 : index
    %c0_106 = arith.constant 0 : index
    %92 = vector.load %arg5[%c5, %c0_105, %c0_106] : memref<9x32x8xbf16, #tpu.memory_space<vmem>>, vector<1x32x8xbf16>
    %93 = vector.shape_cast %92 : vector<1x32x8xbf16> to vector<32x8xbf16>
    %cst_107 = arith.constant dense<0.000000e+00> : vector<64x8xf32>
    %94 = tpu.matmul %91, %93, %cst_107 {dimension_numbers = #tpu.dot_dimension_numbers<[1], [0], [0], [1], [0, 0, 1, 1], [], []>} : vector<64x32xbf16>, vector<32x8xbf16>, vector<64x8xf32> -> vector<64x8xf32>
    %95 = arith.addf %89, %94 : vector<64x8xf32>
    %c0_108 = arith.constant 0 : index
    %c2_109 = arith.constant 2 : index
    %c0_110 = arith.constant 0 : index
    %c0_111 = arith.constant 0 : index
    %96 = vector.load %arg9[%c0_108, %c2_109, %c0_110, %c0_111] : memref<1x10x10x32xbf16, #tpu.memory_space<vmem>>, vector<1x8x8x32xbf16>
    %97 = vector.shape_cast %96 : vector<1x8x8x32xbf16> to vector<64x32xbf16>
    %c6 = arith.constant 6 : index
    %c0_112 = arith.constant 0 : index
    %c0_113 = arith.constant 0 : index
    %98 = vector.load %arg5[%c6, %c0_112, %c0_113] : memref<9x32x8xbf16, #tpu.memory_space<vmem>>, vector<1x32x8xbf16>
    %99 = vector.shape_cast %98 : vector<1x32x8xbf16> to vector<32x8xbf16>
    %cst_114 = arith.constant dense<0.000000e+00> : vector<64x8xf32>
    %100 = tpu.matmul %97, %99, %cst_114 {dimension_numbers = #tpu.dot_dimension_numbers<[1], [0], [0], [1], [0, 0, 1, 1], [], []>} : vector<64x32xbf16>, vector<32x8xbf16>, vector<64x8xf32> -> vector<64x8xf32>
    %101 = arith.addf %95, %100 : vector<64x8xf32>
    %c0_115 = arith.constant 0 : index
    %c2_116 = arith.constant 2 : index
    %c1_117 = arith.constant 1 : index
    %c0_118 = arith.constant 0 : index
    %102 = vector.load %arg9[%c0_115, %c2_116, %c1_117, %c0_118] : memref<1x10x10x32xbf16, #tpu.memory_space<vmem>>, vector<1x8x8x32xbf16>
    %103 = vector.shape_cast %102 : vector<1x8x8x32xbf16> to vector<64x32xbf16>
    %c7 = arith.constant 7 : index
    %c0_119 = arith.constant 0 : index
    %c0_120 = arith.constant 0 : index
    %104 = vector.load %arg5[%c7, %c0_119, %c0_120] : memref<9x32x8xbf16, #tpu.memory_space<vmem>>, vector<1x32x8xbf16>
    %105 = vector.shape_cast %104 : vector<1x32x8xbf16> to vector<32x8xbf16>
    %cst_121 = arith.constant dense<0.000000e+00> : vector<64x8xf32>
    %106 = tpu.matmul %103, %105, %cst_121 {dimension_numbers = #tpu.dot_dimension_numbers<[1], [0], [0], [1], [0, 0, 1, 1], [], []>} : vector<64x32xbf16>, vector<32x8xbf16>, vector<64x8xf32> -> vector<64x8xf32>
    %107 = arith.addf %101, %106 : vector<64x8xf32>
    %c0_122 = arith.constant 0 : index
    %c2_123 = arith.constant 2 : index
    %c2_124 = arith.constant 2 : index
    %c0_125 = arith.constant 0 : index
    %108 = vector.load %arg9[%c0_122, %c2_123, %c2_124, %c0_125] : memref<1x10x10x32xbf16, #tpu.memory_space<vmem>>, vector<1x8x8x32xbf16>
    %109 = vector.shape_cast %108 : vector<1x8x8x32xbf16> to vector<64x32xbf16>
    %c8 = arith.constant 8 : index
    %c0_126 = arith.constant 0 : index
    %c0_127 = arith.constant 0 : index
    %110 = vector.load %arg5[%c8, %c0_126, %c0_127] : memref<9x32x8xbf16, #tpu.memory_space<vmem>>, vector<1x32x8xbf16>
    %111 = vector.shape_cast %110 : vector<1x32x8xbf16> to vector<32x8xbf16>
    %cst_128 = arith.constant dense<0.000000e+00> : vector<64x8xf32>
    %112 = tpu.matmul %109, %111, %cst_128 {dimension_numbers = #tpu.dot_dimension_numbers<[1], [0], [0], [1], [0, 0, 1, 1], [], []>} : vector<64x32xbf16>, vector<32x8xbf16>, vector<64x8xf32> -> vector<64x8xf32>
    %113 = arith.addf %107, %112 : vector<64x8xf32>
    %114 = vector.shape_cast %113 : vector<64x8xf32> to vector<1x64x8xf32>
    %cst_129 = arith.constant dense<0.000000e+00> : vector<1x64xf32>
    %115 = vector.multi_reduction <add>, %114, %cst_129 [2] : vector<1x64x8xf32> to vector<1x64xf32>
    %116 = vector.shape_cast %115 : vector<1x64xf32> to vector<1x64x1xf32>
    %cst_130 = arith.constant 8.000000e+00 : f32
    %117 = vector.broadcast %cst_130 : f32 to vector<1x64x1xf32>
    %118 = arith.divf %116, %117 : vector<1x64x1xf32>
    %cst_131 = arith.constant dense<0.000000e+00> : vector<1x1xf32>
    %119 = vector.multi_reduction <add>, %118, %cst_131 [1] : vector<1x64x1xf32> to vector<1x1xf32>
    %120 = vector.shape_cast %119 : vector<1x1xf32> to vector<1x1x1xf32>
    %cst_132 = arith.constant 6.400000e+01 : f32
    %121 = vector.broadcast %cst_132 : f32 to vector<1x1x1xf32>
    %122 = arith.divf %120, %121 : vector<1x1x1xf32>
    %123 = vector.broadcast %122 : vector<1x1x1xf32> to vector<1x64x8xf32>
    %124 = arith.subf %114, %123 : vector<1x64x8xf32>
    %125 = arith.mulf %124, %124 : vector<1x64x8xf32>
    %cst_133 = arith.constant dense<0.000000e+00> : vector<1x64xf32>
    %126 = vector.multi_reduction <add>, %125, %cst_133 [2] : vector<1x64x8xf32> to vector<1x64xf32>
    %127 = vector.shape_cast %126 : vector<1x64xf32> to vector<1x64x1xf32>
    %cst_134 = arith.constant 8.000000e+00 : f32
    %128 = vector.broadcast %cst_134 : f32 to vector<1x64x1xf32>
    %129 = arith.divf %127, %128 : vector<1x64x1xf32>
    %cst_135 = arith.constant dense<0.000000e+00> : vector<1x1xf32>
    %130 = vector.multi_reduction <add>, %129, %cst_135 [1] : vector<1x64x1xf32> to vector<1x1xf32>
    %131 = vector.shape_cast %130 : vector<1x1xf32> to vector<1x1x1xf32>
    %cst_136 = arith.constant 6.400000e+01 : f32
    %132 = vector.broadcast %cst_136 : f32 to vector<1x1x1xf32>
    %133 = arith.divf %131, %132 : vector<1x1x1xf32>
    %cst_137 = arith.constant 9.99999974E-6 : f32
    %134 = vector.broadcast %cst_137 : f32 to vector<1x1x1xf32>
    %135 = arith.addf %133, %134 : vector<1x1x1xf32>
    %136 = math.rsqrt %135 : vector<1x1x1xf32>
    %137 = vector.broadcast %136 : vector<1x1x1xf32> to vector<1x64x8xf32>
    %138 = arith.mulf %124, %137 : vector<1x64x8xf32>
    %139 = vector.shape_cast %2 : vector<1x8xf32> to vector<1x1x8xf32>
    %140 = vector.broadcast %139 : vector<1x1x8xf32> to vector<1x64x8xf32>
    %141 = arith.mulf %138, %140 : vector<1x64x8xf32>
    %142 = vector.shape_cast %3 : vector<1x8xf32> to vector<1x1x8xf32>
    %143 = vector.broadcast %142 : vector<1x1x8xf32> to vector<1x64x8xf32>
    %144 = arith.addf %141, %143 : vector<1x64x8xf32>
    %cst_138 = arith.constant 0.000000e+00 : f32
    %145 = vector.broadcast %cst_138 : f32 to vector<1x64x8xf32>
    %146 = arith.maximumf %144, %145 : vector<1x64x8xf32>
    %147 = tpu.transpose %146, [0, 2, 1] : vector<1x64x8xf32> -> vector<1x8x64xf32>
    %c0_139 = arith.constant 0 : index
    %c0_140 = arith.constant 0 : index
    %c0_141 = arith.constant 0 : index
    %148 = vector.load %arg8[%c0_139, %c0_140, %c0_141] : memref<1x8x64xf32, #tpu.memory_space<vmem>>, vector<1x8x64xf32>
    tpu.vector_store %arg8[%c0_139, %c0_140, %c0_141], %147 {strides = array<i32>} : memref<1x8x64xf32, #tpu.memory_space<vmem>>, vector<1x8x64xf32>,
    return
  }
  func.func @transform_0(%arg0: i32) -> (i32, i32, i32, i32) {
    %c0_i32 = arith.constant 0 : i32
    %c0_i32_0 = arith.constant 0 : i32
    %c0_i32_1 = arith.constant 0 : i32
    %c0_i32_2 = arith.constant 0 : i32
    return %arg0, %c0_i32, %c0_i32_0, %c0_i32_1 : i32, i32, i32, i32
  }
  func.func @transform_1(%arg0: i32) -> (i32, i32, i32) {
    %c0_i32 = arith.constant 0 : i32
    %c0_i32_0 = arith.constant 0 : i32
    %c0_i32_1 = arith.constant 0 : i32
    %c0_i32_2 = arith.constant 0 : i32
    return %c0_i32, %c0_i32_0, %c0_i32_1 : i32, i32, i32
  }
  func.func @transform_2(%arg0: i32) -> (i32, i32) {
    %c0_i32 = arith.constant 0 : i32
    %c0_i32_0 = arith.constant 0 : i32
    %c0_i32_1 = arith.constant 0 : i32
    return %c0_i32, %c0_i32_0 : i32, i32
  }
  func.func @transform_3(%arg0: i32) -> (i32, i32) {
    %c0_i32 = arith.constant 0 : i32
    %c0_i32_0 = arith.constant 0 : i32
    %c0_i32_1 = arith.constant 0 : i32
    return %c0_i32, %c0_i32_0 : i32, i32
  }
  func.func @transform_4(%arg0: i32) -> (i32, i32, i32) {
    %c0_i32 = arith.constant 0 : i32
    %c0_i32_0 = arith.constant 0 : i32
    %c0_i32_1 = arith.constant 0 : i32
    %c0_i32_2 = arith.constant 0 : i32
    return %c0_i32, %c0_i32_0, %c0_i32_1 : i32, i32, i32
  }
  func.func @transform_5(%arg0: i32) -> (i32, i32) {
    %c0_i32 = arith.constant 0 : i32
    %c0_i32_0 = arith.constant 0 : i32
    %c0_i32_1 = arith.constant 0 : i32
    return %c0_i32, %c0_i32_0 : i32, i32
  }
  func.func @transform_6(%arg0: i32) -> (i32, i32) {
    %c0_i32 = arith.constant 0 : i32
    %c0_i32_0 = arith.constant 0 : i32
    %c0_i32_1 = arith.constant 0 : i32
    return %c0_i32, %c0_i32_0 : i32, i32
  }
  func.func @transform_7(%arg0: i32) -> (i32, i32, i32) {
    %c0_i32 = arith.constant 0 : i32
    %c0_i32_0 = arith.constant 0 : i32
    %c0_i32_1 = arith.constant 0 : i32
    return %arg0, %c0_i32, %c0_i32_0 : i32, i32, i32
  }
}

</mosaic_0001>

<llo_original>
// kernel: tpu_custom_call.1
$region0: #{tpu_custom_call.1}
  #allocation0 [shape = 'u32[]', space=smem, size = 0x4, offset = 0x4, fixed_abs, tag = 'smem constant byte address 0x4 - core index']
  #allocation1 [shape = 'u32[144,128]{1,0:T(1,128)}', space=vmem, size = 0x12000, scoped, tag = 'internal scratch']
  #allocation2 [shape = 'bf16[1,10,10,32]{3,2,1,0:T(8,128)(2,1)}', space=vmem, size = 0xa000, scoped, tag = 'scratch operand']
  %s0 = inlined_call_operand.vmem [shape: bf16[2,9,9,16], index: 0, kind: input, shape index: {}]
  %s1 = inlined_call_operand.vmem [shape: bf16[4,16,32], index: 1, kind: input, shape index: {}]
  %s2 = inlined_call_operand.vmem [shape: f32[1,32], index: 2, kind: input, shape index: {}]
  %s3 = inlined_call_operand.vmem [shape: f32[1,32], index: 3, kind: input, shape index: {}]
  %s4 = inlined_call_operand.vmem [shape: bf16[9,32,8], index: 4, kind: input, shape index: {}]
  %s5 = inlined_call_operand.vmem [shape: f32[1,8], index: 5, kind: input, shape index: {}]
  %s6 = inlined_call_operand.vmem [shape: f32[1,8], index: 6, kind: input, shape index: {}]
  %s7 = inlined_call_operand.hbm [shape: f32[2,8,64], index: 7, kind: output, shape index: {}]
  %s8 = sld [smem:[#allocation0]]
  $region61: #{tpu_custom_call.1} parent=0
    _
  %s10 = ssub.s32 1, %s8
  %s11 = scalar_select 0, %s10, %s8
  $region1: #{tpu_custom_call.1} parent=0
    #allocation3 [shape = 'u8[8192]{0}', space=vmem, size = 0x2000, scoped, tag = 'output window, operand 0']
    #allocation4 [shape = 's32[2]{0}', space=sflag, size = 0x8, scoped, tag = 'scoped memory for tpu_custom_call.1']
    %12 = vsyncpa [#allocation4], 0
    %s13 = scalar_lea.sflag [#allocation4], 1
    %14 = vsyncpa %s13, 0
    loop: start=0, step=1, limit=4
    $region2: #{tpu_custom_call.1} parent=1 // loop_pre_header
      _
    $region3: #{tpu_custom_call.1} parent=1 // loop_header
      %s16 = sphi 0, %s20
      %p17 = scmp.ge.s32.totalorder %s16, 4
      %s26 = sphi 0, %s28
      %s29 = sphi 0, %s26
      %s30 = sphi 0, %s29
      %s46 = sphi 0, %s30
      %s50 = sphi 0, %s50
      %s52 = sphi 0, %s50
      %s53 = sphi 0, %s52
      %s67 = sphi 0, %s53
      %s71 = sphi 0, %s71
      %s73 = sphi 0, %s71
      %s74 = sphi 0, %s73
      %s88 = sphi 0, %s74
      %s92 = sphi 0, %s92
      %s94 = sphi 0, %s92
      %s95 = sphi 0, %s94
      %s109 = sphi 0, %s95
      %s113 = sphi 0, %s113
      %s115 = sphi 0, %s113
      %s116 = sphi 0, %s115
      %s130 = sphi 0, %s116
      %s134 = sphi 0, %s134
      %s136 = sphi 0, %s134
      %s137 = sphi 0, %s136
      %s151 = sphi 0, %s137
      %s155 = sphi 0, %s155
      %s157 = sphi 0, %s155
      %s158 = sphi 0, %s157
      %s172 = sphi 0, %s158
      %s178 = sphi 0, %s180
      %s181 = sphi 0, %s178
      %s182 = sphi 0, %s181
      %s198 = sphi 0, %s182
    $region4: #{tpu_custom_call.1} parent=1 // loop_header_branch
      %19 = sbr.rel (%p17) target = $region8
    $region5: #{tpu_custom_call.1} parent=1 // loop_body
      %s21 = ssub.s32 %s16, 1
      %s22 = ssub.s32 %s16, 2
      %s23 = sadd.s32 %s16, 1
      %s24 = ssub.s32 %s16, %s23
      %p25 = scmp.eq.s32.totalorder %s24, 0
      %s27 = sadd.s32 %s26, 1
      %s28 = scalar_select %p25, %s26, %s27
      %p31 = pneg %p25
      %p32 = scmp.eq.s32.totalorder %s16, 1
      %p33 = por %p31, %p32
      %p34 = scmp.ne.s32.totalorder %s26, %s29
      %p35 = scmp.eq.s32.totalorder %s16, 0
      %p36 = por %p34, %p35
      %p37 = scmp.ne.s32.totalorder %s26, %s29
      %p38 = scmp.eq.s32.totalorder %s21, 1
      %p39 = por %p37, %p38
      %p40 = scmp.ne.s32.totalorder %s29, %s30
      %p41 = scmp.eq.s32.totalorder %s21, 0
      %p42 = por %p40, %p41
      %p43 = scmp.ne.s32.totalorder %s29, %s30
      %p44 = scmp.eq.s32.totalorder %s22, 1
      %p45 = por %p43, %p44
      %p47 = scmp.ne.s32.totalorder %s30, %s46
      %p48 = scmp.eq.s32.totalorder %s22, 0
      %p49 = por %p47, %p48
      %s51 = sadd.s32 %s50, 1
      %p54 = scmp.eq.s32.totalorder %s16, 1
      %p55 = scmp.ne.s32.totalorder %s50, %s52
      %p56 = scmp.eq.s32.totalorder %s16, 0
      %p57 = por %p55, %p56
      %p58 = scmp.ne.s32.totalorder %s50, %s52
      %p59 = scmp.eq.s32.totalorder %s21, 1
      %p60 = por %p58, %p59
      %p61 = scmp.ne.s32.totalorder %s52, %s53
      %p62 = scmp.eq.s32.totalorder %s21, 0
      %p63 = por %p61, %p62
      %p64 = scmp.ne.s32.totalorder %s52, %s53
      %p65 = scmp.eq.s32.totalorder %s22, 1
      %p66 = por %p64, %p65
      %p68 = scmp.ne.s32.totalorder %s53, %s67
      %p69 = scmp.eq.s32.totalorder %s22, 0
      %p70 = por %p68, %p69
      %s72 = sadd.s32 %s71, 1
      %p75 = scmp.eq.s32.totalorder %s16, 1
      %p76 = scmp.ne.s32.totalorder %s71, %s73
      %p77 = scmp.eq.s32.totalorder %s16, 0
      %p78 = por %p76, %p77
      %p79 = scmp.ne.s32.totalorder %s71, %s73
      %p80 = scmp.eq.s32.totalorder %s21, 1
      %p81 = por %p79, %p80
      %p82 = scmp.ne.s32.totalorder %s73, %s74
      %p83 = scmp.eq.s32.totalorder %s21, 0
      %p84 = por %p82, %p83
      %p85 = scmp.ne.s32.totalorder %s73, %s74
      %p86 = scmp.eq.s32.totalorder %s22, 1
      %p87 = por %p85, %p86
      %p89 = scmp.ne.s32.totalorder %s74, %s88
      %p90 = scmp.eq.s32.totalorder %s22, 0
      %p91 = por %p89, %p90
      %s93 = sadd.s32 %s92, 1
      %p96 = scmp.eq.s32.totalorder %s16, 1
      %p97 = scmp.ne.s32.totalorder %s92, %s94
      %p98 = scmp.eq.s32.totalorder %s16, 0
      %p99 = por %p97, %p98
      %p100 = scmp.ne.s32.totalorder %s92, %s94
      %p101 = scmp.eq.s32.totalorder %s21, 1
      %p102 = por %p100, %p101
      %p103 = scmp.ne.s32.totalorder %s94, %s95
      %p104 = scmp.eq.s32.totalorder %s21, 0
      %p105 = por %p103, %p104
      %p106 = scmp.ne.s32.totalorder %s94, %s95
      %p107 = scmp.eq.s32.totalorder %s22, 1
      %p108 = por %p106, %p107
      %p110 = scmp.ne.s32.totalorder %s95, %s109
      %p111 = scmp.eq.s32.totalorder %s22, 0
      %p112 = por %p110, %p111
      %s114 = sadd.s32 %s113, 1
      %p117 = scmp.eq.s32.totalorder %s16, 1
      %p118 = scmp.ne.s32.totalorder %s113, %s115
      %p119 = scmp.eq.s32.totalorder %s16, 0
      %p120 = por %p118, %p119
      %p121 = scmp.ne.s32.totalorder %s113, %s115
      %p122 = scmp.eq.s32.totalorder %s21, 1
      %p123 = por %p121, %p122
      %p124 = scmp.ne.s32.totalorder %s115, %s116
      %p125 = scmp.eq.s32.totalorder %s21, 0
      %p126 = por %p124, %p125
      %p127 = scmp.ne.s32.totalorder %s115, %s116
      %p128 = scmp.eq.s32.totalorder %s22, 1
      %p129 = por %p127, %p128
      %p131 = scmp.ne.s32.totalorder %s116, %s130
      %p132 = scmp.eq.s32.totalorder %s22, 0
      %p133 = por %p131, %p132
      %s135 = sadd.s32 %s134, 1
      %p138 = scmp.eq.s32.totalorder %s16, 1
      %p139 = scmp.ne.s32.totalorder %s134, %s136
      %p140 = scmp.eq.s32.totalorder %s16, 0
      %p141 = por %p139, %p140
      %p142 = scmp.ne.s32.totalorder %s134, %s136
      %p143 = scmp.eq.s32.totalorder %s21, 1
      %p144 = por %p142, %p143
      %p145 = scmp.ne.s32.totalorder %s136, %s137
      %p146 = scmp.eq.s32.totalorder %s21, 0
      %p147 = por %p145, %p146
      %p148 = scmp.ne.s32.totalorder %s136, %s137
      %p149 = scmp.eq.s32.totalorder %s22, 1
      %p150 = por %p148, %p149
      %p152 = scmp.ne.s32.totalorder %s137, %s151
      %p153 = scmp.eq.s32.totalorder %s22, 0
      %p154 = por %p152, %p153
      %s156 = sadd.s32 %s155, 1
      %p159 = scmp.eq.s32.totalorder %s16, 1
      %p160 = scmp.ne.s32.totalorder %s155, %s157
      %p161 = scmp.eq.s32.totalorder %s16, 0
      %p162 = por %p160, %p161
      %p163 = scmp.ne.s32.totalorder %s155, %s157
      %p164 = scmp.eq.s32.totalorder %s21, 1
      %p165 = por %p163, %p164
      %p166 = scmp.ne.s32.totalorder %s157, %s158
      %p167 = scmp.eq.s32.totalorder %s21, 0
      %p168 = por %p166, %p167
      %p169 = scmp.ne.s32.totalorder %s157, %s158
      %p170 = scmp.eq.s32.totalorder %s22, 1
      %p171 = por %p169, %p170
      %p173 = scmp.ne.s32.totalorder %s158, %s172
      %p174 = scmp.eq.s32.totalorder %s22, 0
      %p175 = por %p173, %p174
      %s176 = ssub.s32 %s16, %s23
      %p177 = scmp.eq.s32.totalorder %s176, 0
      %s179 = sadd.s32 %s178, 1
      %s180 = scalar_select %p177, %s178, %s179
      %p183 = pneg %p177
      %p184 = scmp.eq.s32.totalorder %s16, 1
      %p185 = por %p183, %p184
      %p186 = scmp.ne.s32.totalorder %s178, %s181
      %p187 = scmp.eq.s32.totalorder %s16, 0
      %p188 = por %p186, %p187
      %p189 = scmp.ne.s32.totalorder %s178, %s181
      %p190 = scmp.eq.s32.totalorder %s21, 1
      %p191 = por %p189, %p190
      %p192 = scmp.ne.s32.totalorder %s181, %s182
      %p193 = scmp.eq.s32.totalorder %s21, 0
      %p194 = por %p192, %p193
      %p195 = scmp.ne.s32.totalorder %s181, %s182
      %p196 = scmp.eq.s32.totalorder %s22, 1
      %p197 = por %p195, %p196
      %p199 = scmp.ne.s32.totalorder %s182, %s198
      %p200 = scmp.eq.s32.totalorder %s22, 0
      %p201 = por %p199, %p200
      %p202 = scmp.le.s32.totalorder 1, %s16
      %p203 = scmp.lt.s32.totalorder %s16, 3
      %p204 = pnand %p202, %p203
      %p205 = pneg %p204
      // Predicated region
      $region9: #{tpu_custom_call.1} parent=5 // pred_check
        _
      $region10: #{tpu_custom_call.1} parent=5 // pred_check_branch
        %207 = sbr.rel (%p204) target = $region12
      $region11: #{tpu_custom_call.1} parent=5 // pred_region
        %s208 = ssub.s32 %s16, 1
        // Predicated region
        $region13: #{tpu_custom_call.1} parent=11 // pred_check
          %p209 = pneg %p63
        $region14: #{tpu_custom_call.1} parent=11 // pred_check_branch
          %211 = sbr.rel (%p209) target = $region16
        $region15: #{tpu_custom_call.1} parent=11 // pred_region
          _
        $region16: #{tpu_custom_call.1} parent=11 // pred_fallthru
          _
        // Predicated region
        $region17: #{tpu_custom_call.1} parent=11 // pred_check
          %p212 = pneg %p84
        $region18: #{tpu_custom_call.1} parent=11 // pred_check_branch
          %214 = sbr.rel (%p212) target = $region20
        $region19: #{tpu_custom_call.1} parent=11 // pred_region
          _
        $region20: #{tpu_custom_call.1} parent=11 // pred_fallthru
          _
        // Predicated region
        $region21: #{tpu_custom_call.1} parent=11 // pred_check
          %p215 = pneg %p105
        $region22: #{tpu_custom_call.1} parent=11 // pred_check_branch
          %217 = sbr.rel (%p215) target = $region24
        $region23: #{tpu_custom_call.1} parent=11 // pred_region
          _
        $region24: #{tpu_custom_call.1} parent=11 // pred_fallthru
          _
        // Predicated region
        $region25: #{tpu_custom_call.1} parent=11 // pred_check
          %p218 = pneg %p126
        $region26: #{tpu_custom_call.1} parent=11 // pred_check_branch
          %220 = sbr.rel (%p218) target = $region28
        $region27: #{tpu_custom_call.1} parent=11 // pred_region
          _
        $region28: #{tpu_custom_call.1} parent=11 // pred_fallthru
          _
        // Predicated region
        $region29: #{tpu_custom_call.1} parent=11 // pred_check
          %p221 = pneg %p147
        $region30: #{tpu_custom_call.1} parent=11 // pred_check_branch
          %223 = sbr.rel (%p221) target = $region32
        $region31: #{tpu_custom_call.1} parent=11 // pred_region
          _
        $region32: #{tpu_custom_call.1} parent=11 // pred_fallthru
          _
        // Predicated region
        $region33: #{tpu_custom_call.1} parent=11 // pred_check
          %p224 = pneg %p168
        $region34: #{tpu_custom_call.1} parent=11 // pred_check_branch
          %226 = sbr.rel (%p224) target = $region36
        $region35: #{tpu_custom_call.1} parent=11 // pred_region
          _
        $region36: #{tpu_custom_call.1} parent=11 // pred_fallthru
          _
      $region12: #{tpu_custom_call.1} parent=5 // pred_fallthru
        _
      %p227 = scmp.lt.s32.totalorder %s16, 2
      // Predicated region
      $region37: #{tpu_custom_call.1} parent=5 // pred_check
        %p228 = pneg %p227
      $region38: #{tpu_custom_call.1} parent=5 // pred_check_branch
        %230 = sbr.rel (%p228) target = $region40
      $region39: #{tpu_custom_call.1} parent=5 // pred_region
        // Predicated region
        $region41: #{tpu_custom_call.1} parent=39 // pred_check
          %p231 = pneg %p36
        $region42: #{tpu_custom_call.1} parent=39 // pred_check_branch
          %233 = sbr.rel (%p231) target = $region44
        $region43: #{tpu_custom_call.1} parent=39 // pred_region
          %p234 = scmp.lt.s32.totalorder %s16, 1
          %s235 = scalar_select %p234, %s16, 1
          %s236 = smul.addr %s235, 18
          %s237 = smul.addr %s236, 4
          %s238 = scalar_lea.vmem %s0, %s237
        $region44: #{tpu_custom_call.1} parent=39 // pred_fallthru
          _
      $region40: #{tpu_custom_call.1} parent=5 // pred_fallthru
        _
      %p239 = scmp.le.s32.totalorder 1, %s16
      %p240 = scmp.lt.s32.totalorder %s16, 3
      %p241 = pnand %p239, %p240
      %p242 = pneg %p241
      // Predicated region
      $region45: #{tpu_custom_call.1} parent=5 // pred_check
        _
      $region46: #{tpu_custom_call.1} parent=5 // pred_check_branch
        %244 = sbr.rel (%p241) target = $region48
      $region47: #{tpu_custom_call.1} parent=5 // pred_region
        %s245 = ssub.s32 %s16, 1
        %p246 = scmp.lt.s32.totalorder %s21, 1
        %s247 = scalar_select %p246, %s21, 1
        %s248 = smul.addr %s247, 18
        %s249 = smul.addr %s248, 4
        %s250 = scalar_lea.vmem %s0, %s249
        %p251 = pneg %p42
        %p252 = pneg %p39
        %p253 = pneg %p63
        %p254 = pneg %p60
        %p255 = pneg %p84
        %p256 = pneg %p81
        %p257 = pneg %p105
        %p258 = pneg %p102
        %p259 = pneg %p126
        %p260 = pneg %p123
        %p261 = pneg %p147
        %p262 = pneg %p144
        %p263 = pneg %p168
        %p264 = pneg %p165
        %p265 = pneg %p194
        %p266 = pneg %p191
        %s267 = sand.u32 %s181, 1
        %s268 = scalar_lea.sflag [#allocation4], %s267
        %s269 = sand.u32 %s181, 1
        %s270 = smul.addr %s269, 8
        %s271 = scalar_lea.vmem [#allocation3], %s270
        %p272 = scmp.lt.s32.totalorder %s21, 1
        %s273 = scalar_select %p272, %s21, 1
        %s274 = smul.addr %s273, 18
        %s275 = smul.addr %s274, 4
        %s276 = scalar_lea.vmem %s0, %s275
        %v278 = vld [vmem:[%s2] sm:$0x1]
        %v279 = vld [vmem:[%s3] sm:$0x1]
        %v280 = vld [vmem:[%s5] sm:$0x1]
        %v281 = vld [vmem:[%s6] sm:$0x1]
        %v282 = vld [vmem:[%s276] sm:$0xf]
        %v283 = vld [vmem:[%s276 + $0x8] sm:$0xf]
        %v284 = vld [vmem:[%s276 + $0x10] sm:$0xf]
        %v285 = vld [vmem:[%s276 + $0x18] sm:$0xf]
        %v286 = vld [vmem:[%s276 + $0x20] sm:$0xf]
        %v287 = vld [vmem:[%s276 + $0x28] sm:$0xf]
        %v288 = vld [vmem:[%s276 + $0x30] sm:$0xf]
        %v289 = vld [vmem:[%s276 + $0x38] sm:$0xf]
        %v290 = vld [vmem:[%s1] sm:$0xf]
        %v291 = vld [vmem:[%s1 + $0x4] sm:$0xf]
        %v292 = vld [vmem:[%s276 + $0x4] sm:$0x1]
        %v293 = vld [vmem:[%s276 + $0xc] sm:$0x1]
        %v294 = vld [vmem:[%s276 + $0x14] sm:$0x1]
        %v295 = vld [vmem:[%s276 + $0x1c] sm:$0x1]
        %v296 = vld [vmem:[%s276 + $0x24] sm:$0x1]
        %v297 = vld [vmem:[%s276 + $0x2c] sm:$0x1]
        %v298 = vld [vmem:[%s276 + $0x34] sm:$0x1]
        %v299 = vld [vmem:[%s276 + $0x3c] sm:$0x1]
        %vm300 = vsmask.f32 3328
        %vm301 = vsmask.f32 7440
        %vm302 = vmor %vm300, %vm301
        %v304 = vshrl.u32 %v282, 16
        %v306 = vrot.slane %v304, 4
        %v307 = vshll.u32 %v282, 16
        %v309 = vrot.slane %v307, 5
        %v310 = vor.u32 %v306, %v309
        %v311 = vrot.slane %v310, 4
        %v313 = vshll.u32 %v292, 16
        %v315 = vrot.slane %v313, 5
        %v316 = vsel %vm302, %v311, %v315
        %v318 = vshrl.u32 %v283, 16
        %v320 = vrot.slane %v318, 4
        %v321 = vshll.u32 %v283, 16
        %v323 = vrot.slane %v321, 5
        %v324 = vor.u32 %v320, %v323
        %v325 = vrot.slane %v324, 4
        %v327 = vshll.u32 %v293, 16
        %v329 = vrot.slane %v327, 5
        %v330 = vsel %vm302, %v325, %v329
        %v332 = vshrl.u32 %v284, 16
        %v334 = vrot.slane %v332, 4
        %v335 = vshll.u32 %v284, 16
        %v337 = vrot.slane %v335, 5
        %v338 = vor.u32 %v334, %v337
        %v339 = vrot.slane %v338, 4
        %v341 = vshll.u32 %v294, 16
        %v343 = vrot.slane %v341, 5
        %v344 = vsel %vm302, %v339, %v343
        %v346 = vshrl.u32 %v285, 16
        %v348 = vrot.slane %v346, 4
        %v349 = vshll.u32 %v285, 16
        %v351 = vrot.slane %v349, 5
        %v352 = vor.u32 %v348, %v351
        %v353 = vrot.slane %v352, 4
        %v355 = vshll.u32 %v295, 16
        %v357 = vrot.slane %v355, 5
        %v358 = vsel %vm302, %v353, %v357
        %v360 = vshrl.u32 %v286, 16
        %v362 = vrot.slane %v360, 4
        %v363 = vshll.u32 %v286, 16
        %v365 = vrot.slane %v363, 5
        %v366 = vor.u32 %v362, %v365
        %v367 = vrot.slane %v366, 4
        %v369 = vshll.u32 %v296, 16
        %v371 = vrot.slane %v369, 5
        %v372 = vsel %vm302, %v367, %v371
        %v374 = vshrl.u32 %v287, 16
        %v376 = vrot.slane %v374, 4
        %v377 = vshll.u32 %v287, 16
        %v379 = vrot.slane %v377, 5
        %v380 = vor.u32 %v376, %v379
        %v381 = vrot.slane %v380, 4
        %v383 = vshll.u32 %v297, 16
        %v385 = vrot.slane %v383, 5
        %v386 = vsel %vm302, %v381, %v385
        %v388 = vshrl.u32 %v288, 16
        %v390 = vrot.slane %v388, 4
        %v391 = vshll.u32 %v288, 16
        %v393 = vrot.slane %v391, 5
        %v394 = vor.u32 %v390, %v393
        %v395 = vrot.slane %v394, 4
        %v397 = vshll.u32 %v298, 16
        %v399 = vrot.slane %v397, 5
        %v400 = vsel %vm302, %v395, %v399
        %v402 = vshrl.u32 %v289, 16
        %v404 = vrot.slane %v402, 4
        %v405 = vshll.u32 %v289, 16
        %v407 = vrot.slane %v405, 5
        %v408 = vor.u32 %v404, %v407
        %v409 = vrot.slane %v408, 4
        %v411 = vshll.u32 %v299, 16
        %v413 = vrot.slane %v411, 5
        %v414 = vsel %vm302, %v409, %v413
        %s415 = scalar_lea.vmem %s1, 8
        %v416 = vld [vmem:[%s415] sm:$0xf]
        %v417 = vld [vmem:[%s415 + $0x4] sm:$0xf]
        %v418 = vunpack.c.l.b16 %v316
        %v419 = vunpack.c.l.b16 %v330
        %v420 = vunpack.c.l.b16 %v344
        %v421 = vunpack.c.l.b16 %v358
        %v422 = vunpack.c.l.b16 %v372
        %v423 = vunpack.c.l.b16 %v386
        %v424 = vunpack.c.l.b16 %v400
        %v425 = vunpack.c.l.b16 %v414
        %v426 = vpack.c.b16 %v419, %v418
        %v427 = vpack.c.b16 %v421, %v420
        %v428 = vpack.c.b16 %v423, %v422
        %v429 = vpack.c.b16 %v425, %v424
        %v432 = vunpack.c.l.b16 %v416
        %v433 = vunpack.c.l.b16 %v417
        %v434 = vpack.c.b16 %v433, %v432
        %vm436 = vcmask 130048
        %v438 = vsel %vm436, %v426, 0
        %v441 = vsel %vm436, %v427, 0
        %v444 = vsel %vm436, %v428, 0
        %v447 = vsel %vm436, %v429, 0
        %449 = vmatprep.subr.bf16.mxu0 0
        %450 = vmatpush1.bf16.msra.mxu0 %v434
        %451 = vmatprep.subr.bf16.mxu0 0
        %452 = vmatpush1.bf16.msra.mxu0 0
        %453 = vmatprep.subr.bf16.mxu0 0
        %454 = vmatpush1.bf16.msra.mxu0 0
        %455 = vmatprep.subr.bf16.mxu0 0
        %456 = vmatpush1.bf16.msra.mxu0 0
        %457 = vmatprep.subr.bf16.mxu0 0
        %458 = vmatpush1.bf16.msra.mxu0 0
        %459 = vmatprep.subr.bf16.mxu0 0
        %460 = vmatpush1.bf16.msra.mxu0 0
        %461 = vmatprep.subr.bf16.mxu0 0
        %462 = vmatpush1.bf16.msra.mxu0 0
        %463 = vmatprep.subr.bf16.mxu0 0
        %464 = vmatpush1.bf16.msra.mxu0 0
        %465 = vmatprep.subr.bf16.mxu0 0
        %466 = vmatpush1.bf16.msra.mxu0 0
        %467 = vmatprep.subr.bf16.mxu0 0
        %468 = vmatpush1.bf16.msra.mxu0 0
        %469 = vmatprep.subr.bf16.mxu0 0
        %470 = vmatpush1.bf16.msra.mxu0 0
        %471 = vmatprep.subr.bf16.mxu0 0
        %472 = vmatpush1.bf16.msra.mxu0 0
        %473 = vmatprep.subr.bf16.mxu0 0
        %474 = vmatpush1.bf16.msra.mxu0 0
        %475 = vmatprep.subr.bf16.mxu0 0
        %476 = vmatpush1.bf16.msra.mxu0 0
        %477 = vmatprep.subr.bf16.mxu0 0
        %478 = vmatpush1.bf16.msra.mxu0 0
        %479 = vmatprep.subr.bf16.mxu0 0
        %480 = vmatpush1.bf16.msra.mxu0 0
        %481 = vmatprep.mubr.bf16.mxu0 0
        %482 = vmatmul.mubr.bf16.gmra.mrb[0].mxu0 %v438
        %v483 = vpop.f32.mrb[0].mxu0
        %v484 = vadd.f32 0.0, %v483
        %v485 = vpop.f32.mrb[0].mxu0
        %v486 = vpop.f32.mrb[0].mxu0
        %v487 = vadd.f32 0.0, %v486
        %v488 = vpop.f32.mrb[0].mxu0
        %489 = vmatprep.mubr.bf16.mxu0 0
        %490 = vmatmul.mubr.bf16.gmra.mrb[0].mxu0 %v441
        %v491 = vpop.f32.mrb[0].mxu0
        %v492 = vadd.f32 0.0, %v491
        %v493 = vpop.f32.mrb[0].mxu0
        %v494 = vpop.f32.mrb[0].mxu0
        %v495 = vadd.f32 0.0, %v494
        %v496 = vpop.f32.mrb[0].mxu0
        %497 = vmatprep.mubr.bf16.mxu0 0
        %498 = vmatmul.mubr.bf16.gmra.mrb[0].mxu0 %v444
        %v499 = vpop.f32.mrb[0].mxu0
        %v500 = vadd.f32 0.0, %v499
        %v501 = vpop.f32.mrb[0].mxu0
        %v502 = vpop.f32.mrb[0].mxu0
        %v503 = vadd.f32 0.0, %v502
        %v504 = vpop.f32.mrb[0].mxu0
        %505 = vmatprep.mubr.bf16.mxu0 0
        %506 = vmatmul.mubr.bf16.gmra.mrb[0].mxu0 %v447
        %v507 = vpop.f32.mrb[0].mxu0
        %v508 = vadd.f32 0.0, %v507
        %v509 = vpop.f32.mrb[0].mxu0
        %v510 = vpop.f32.mrb[0].mxu0
        %v511 = vadd.f32 0.0, %v510
        %v512 = vpop.f32.mrb[0].mxu0
        %513 = vdwg.mxu0
        %v522 = vunpack.c.l.b16 %v282
        %v523 = vunpack.c.l.b16 %v283
        %v524 = vunpack.c.l.b16 %v284
        %v525 = vunpack.c.l.b16 %v285
        %v526 = vunpack.c.l.b16 %v286
        %v527 = vunpack.c.l.b16 %v287
        %v528 = vunpack.c.l.b16 %v288
        %v529 = vunpack.c.l.b16 %v289
        %v530 = vpack.c.b16 %v523, %v522
        %v531 = vpack.c.b16 %v525, %v524
        %v532 = vpack.c.b16 %v527, %v526
        %v533 = vpack.c.b16 %v529, %v528
        %v536 = vunpack.c.l.b16 %v290
        %v537 = vunpack.c.l.b16 %v291
        %v538 = vpack.c.b16 %v537, %v536
        %v541 = vsel %vm436, %v530, 0
        %v544 = vsel %vm436, %v531, 0
        %v547 = vsel %vm436, %v532, 0
        %v550 = vsel %vm436, %v533, 0
        %552 = vmatprep.subr.bf16.mxu0 0
        %553 = vmatpush1.bf16.msra.mxu0 %v538
        %554 = vmatprep.subr.bf16.mxu0 0
        %555 = vmatpush1.bf16.msra.mxu0 0
        %556 = vmatprep.subr.bf16.mxu0 0
        %557 = vmatpush1.bf16.msra.mxu0 0
        %558 = vmatprep.subr.bf16.mxu0 0
        %559 = vmatpush1.bf16.msra.mxu0 0
        %560 = vmatprep.subr.bf16.mxu0 0
        %561 = vmatpush1.bf16.msra.mxu0 0
        %562 = vmatprep.subr.bf16.mxu0 0
        %563 = vmatpush1.bf16.msra.mxu0 0
        %564 = vmatprep.subr.bf16.mxu0 0
        %565 = vmatpush1.bf16.msra.mxu0 0
        %566 = vmatprep.subr.bf16.mxu0 0
        %567 = vmatpush1.bf16.msra.mxu0 0
        %568 = vmatprep.subr.bf16.mxu0 0
        %569 = vmatpush1.bf16.msra.mxu0 0
        %570 = vmatprep.subr.bf16.mxu0 0
        %571 = vmatpush1.bf16.msra.mxu0 0
        %572 = vmatprep.subr.bf16.mxu0 0
        %573 = vmatpush1.bf16.msra.mxu0 0
        %574 = vmatprep.subr.bf16.mxu0 0
        %575 = vmatpush1.bf16.msra.mxu0 0
        %576 = vmatprep.subr.bf16.mxu0 0
        %577 = vmatpush1.bf16.msra.mxu0 0
        %578 = vmatprep.subr.bf16.mxu0 0
        %579 = vmatpush1.bf16.msra.mxu0 0
        %580 = vmatprep.subr.bf16.mxu0 0
        %581 = vmatpush1.bf16.msra.mxu0 0
        %582 = vmatprep.subr.bf16.mxu0 0
        %583 = vmatpush1.bf16.msra.mxu0 0
        %584 = vmatprep.mubr.bf16.mxu0 0
        %585 = vmatmul.mubr.bf16.gmra.mrb[0].mxu0 %v541
        %v586 = vpop.f32.mrb[0].mxu0
        %v587 = vadd.f32 %v484, %v586
        %v588 = vpop.f32.mrb[0].mxu0
        %v589 = vpop.f32.mrb[0].mxu0
        %v590 = vadd.f32 %v487, %v589
        %v591 = vpop.f32.mrb[0].mxu0
        %592 = vmatprep.mubr.bf16.mxu0 0
        %593 = vmatmul.mubr.bf16.gmra.mrb[0].mxu0 %v544
        %v594 = vpop.f32.mrb[0].mxu0
        %v595 = vadd.f32 %v492, %v594
        %v596 = vpop.f32.mrb[0].mxu0
        %v597 = vpop.f32.mrb[0].mxu0
        %v598 = vadd.f32 %v495, %v597
        %v599 = vpop.f32.mrb[0].mxu0
        %600 = vmatprep.mubr.bf16.mxu0 0
        %601 = vmatmul.mubr.bf16.gmra.mrb[0].mxu0 %v547
        %v602 = vpop.f32.mrb[0].mxu0
        %v603 = vadd.f32 %v500, %v602
        %v604 = vpop.f32.mrb[0].mxu0
        %v605 = vpop.f32.mrb[0].mxu0
        %v606 = vadd.f32 %v503, %v605
        %v607 = vpop.f32.mrb[0].mxu0
        %608 = vmatprep.mubr.bf16.mxu0 0
        %609 = vmatmul.mubr.bf16.gmra.mrb[0].mxu0 %v550
        %v610 = vpop.f32.mrb[0].mxu0
        %v611 = vadd.f32 %v508, %v610
        %v612 = vpop.f32.mrb[0].mxu0
        %v613 = vpop.f32.mrb[0].mxu0
        %v614 = vadd.f32 %v511, %v613
        %v615 = vpop.f32.mrb[0].mxu0
        %616 = vdwg.mxu0
        %s617 = scalar_lea.vmem %s276, 8
        %v618 = vld [vmem:[%s617] sm:$0xf]
        %v619 = vld [vmem:[%s617 + $0x8] sm:$0xf]
        %v620 = vld [vmem:[%s617 + $0x10] sm:$0xf]
        %v621 = vld [vmem:[%s617 + $0x18] sm:$0xf]
        %v622 = vld [vmem:[%s617 + $0x20] sm:$0xf]
        %v623 = vld [vmem:[%s617 + $0x28] sm:$0xf]
        %v624 = vld [vmem:[%s617 + $0x30] sm:$0xf]
        %v625 = vld [vmem:[%s617 + $0x38] sm:$0xf]
        %s626 = scalar_lea.vmem %s1, 16
        %v627 = vld [vmem:[%s626] sm:$0xf]
        %v628 = vld [vmem:[%s626 + $0x4] sm:$0xf]
        %v637 = vunpack.c.l.b16 %v618
        %v638 = vunpack.c.l.b16 %v619
        %v639 = vunpack.c.l.b16 %v620
        %v640 = vunpack.c.l.b16 %v621
        %v641 = vunpack.c.l.b16 %v622
        %v642 = vunpack.c.l.b16 %v623
        %v643 = vunpack.c.l.b16 %v624
        %v644 = vunpack.c.l.b16 %v625
        %v645 = vpack.c.b16 %v638, %v637
        %v646 = vpack.c.b16 %v640, %v639
        %v647 = vpack.c.b16 %v642, %v641
        %v648 = vpack.c.b16 %v644, %v643
        %v651 = vunpack.c.l.b16 %v627
        %v652 = vunpack.c.l.b16 %v628
        %v653 = vpack.c.b16 %v652, %v651
        %v656 = vsel %vm436, %v645, 0
        %v659 = vsel %vm436, %v646, 0
        %v662 = vsel %vm436, %v647, 0
        %v665 = vsel %vm436, %v648, 0
        %667 = vmatprep.subr.bf16.mxu0 0
        %668 = vmatpush1.bf16.msra.mxu0 %v653
        %669 = vmatprep.subr.bf16.mxu0 0
        %670 = vmatpush1.bf16.msra.mxu0 0
        %671 = vmatprep.subr.bf16.mxu0 0
        %672 = vmatpush1.bf16.msra.mxu0 0
        %673 = vmatprep.subr.bf16.mxu0 0
        %674 = vmatpush1.bf16.msra.mxu0 0
        %675 = vmatprep.subr.bf16.mxu0 0
        %676 = vmatpush1.bf16.msra.mxu0 0
        %677 = vmatprep.subr.bf16.mxu0 0
        %678 = vmatpush1.bf16.msra.mxu0 0
        %679 = vmatprep.subr.bf16.mxu0 0
        %680 = vmatpush1.bf16.msra.mxu0 0
        %681 = vmatprep.subr.bf16.mxu0 0
        %682 = vmatpush1.bf16.msra.mxu0 0
        %683 = vmatprep.subr.bf16.mxu0 0
        %684 = vmatpush1.bf16.msra.mxu0 0
        %685 = vmatprep.subr.bf16.mxu0 0
        %686 = vmatpush1.bf16.msra.mxu0 0
        %687 = vmatprep.subr.bf16.mxu0 0
        %688 = vmatpush1.bf16.msra.mxu0 0
        %689 = vmatprep.subr.bf16.mxu0 0
        %690 = vmatpush1.bf16.msra.mxu0 0
        %691 = vmatprep.subr.bf16.mxu0 0
        %692 = vmatpush1.bf16.msra.mxu0 0
        %693 = vmatprep.subr.bf16.mxu0 0
        %694 = vmatpush1.bf16.msra.mxu0 0
        %695 = vmatprep.subr.bf16.mxu0 0
        %696 = vmatpush1.bf16.msra.mxu0 0
        %697 = vmatprep.subr.bf16.mxu0 0
        %698 = vmatpush1.bf16.msra.mxu0 0
        %699 = vmatprep.mubr.bf16.mxu0 0
        %700 = vmatmul.mubr.bf16.gmra.mrb[0].mxu0 %v656
        %v701 = vpop.f32.mrb[0].mxu0
        %v702 = vadd.f32 0.0, %v701
        %v703 = vpop.f32.mrb[0].mxu0
        %v704 = vpop.f32.mrb[0].mxu0
        %v705 = vadd.f32 0.0, %v704
        %v706 = vpop.f32.mrb[0].mxu0
        %707 = vmatprep.mubr.bf16.mxu0 0
        %708 = vmatmul.mubr.bf16.gmra.mrb[0].mxu0 %v659
        %v709 = vpop.f32.mrb[0].mxu0
        %v710 = vadd.f32 0.0, %v709
        %v711 = vpop.f32.mrb[0].mxu0
        %v712 = vpop.f32.mrb[0].mxu0
        %v713 = vadd.f32 0.0, %v712
        %v714 = vpop.f32.mrb[0].mxu0
        %715 = vmatprep.mubr.bf16.mxu0 0
        %716 = vmatmul.mubr.bf16.gmra.mrb[0].mxu0 %v662
        %v717 = vpop.f32.mrb[0].mxu0
        %v718 = vadd.f32 0.0, %v717
        %v719 = vpop.f32.mrb[0].mxu0
        %v720 = vpop.f32.mrb[0].mxu0
        %v721 = vadd.f32 0.0, %v720
        %v722 = vpop.f32.mrb[0].mxu0
        %723 = vmatprep.mubr.bf16.mxu0 0
        %724 = vmatmul.mubr.bf16.gmra.mrb[0].mxu0 %v665
        %v725 = vpop.f32.mrb[0].mxu0
        %v726 = vadd.f32 0.0, %v725
        %v727 = vpop.f32.mrb[0].mxu0
        %v728 = vpop.f32.mrb[0].mxu0
        %v729 = vadd.f32 0.0, %v728
        %v730 = vpop.f32.mrb[0].mxu0
        %731 = vdwg.mxu0
        %v732 = vadd.f32 %v587, %v702
        %v733 = vadd.f32 %v590, %v705
        %v734 = vadd.f32 %v595, %v710
        %v735 = vadd.f32 %v598, %v713
        %v736 = vadd.f32 %v603, %v718
        %v737 = vadd.f32 %v606, %v721
        %v738 = vadd.f32 %v611, %v726
        %v739 = vadd.f32 %v614, %v729
        %v740 = vld [vmem:[%s617] sm:$0xf]
        %v741 = vld [vmem:[%s617 + $0x4] sm:$0x1]
        %v742 = vld [vmem:[%s617 + $0x8] sm:$0xf]
        %v743 = vld [vmem:[%s617 + $0xc] sm:$0x1]
        %v744 = vld [vmem:[%s617 + $0x10] sm:$0xf]
        %v745 = vld [vmem:[%s617 + $0x14] sm:$0x1]
        %v746 = vld [vmem:[%s617 + $0x18] sm:$0xf]
        %v747 = vld [vmem:[%s617 + $0x1c] sm:$0x1]
        %v748 = vld [vmem:[%s617 + $0x20] sm:$0xf]
        %v749 = vld [vmem:[%s617 + $0x24] sm:$0x1]
        %v750 = vld [vmem:[%s617 + $0x28] sm:$0xf]
        %v751 = vld [vmem:[%s617 + $0x2c] sm:$0x1]
        %v752 = vld [vmem:[%s617 + $0x30] sm:$0xf]
        %v753 = vld [vmem:[%s617 + $0x34] sm:$0x1]
        %v754 = vld [vmem:[%s617 + $0x38] sm:$0xf]
        %v755 = vld [vmem:[%s617 + $0x3c] sm:$0x1]
        %v757 = vshrl.u32 %v740, 16
        %v759 = vrot.slane %v757, 4
        %v760 = vshll.u32 %v740, 16
        %v762 = vrot.slane %v760, 5
        %v763 = vor.u32 %v759, %v762
        %v764 = vrot.slane %v763, 4
        %v766 = vshll.u32 %v741, 16
        %v768 = vrot.slane %v766, 5
        %v769 = vsel %vm302, %v764, %v768
        %v771 = vshrl.u32 %v742, 16
        %v773 = vrot.slane %v771, 4
        %v774 = vshll.u32 %v742, 16
        %v776 = vrot.slane %v774, 5
        %v777 = vor.u32 %v773, %v776
        %v778 = vrot.slane %v777, 4
        %v780 = vshll.u32 %v743, 16
        %v782 = vrot.slane %v780, 5
        %v783 = vsel %vm302, %v778, %v782
        %v785 = vshrl.u32 %v744, 16
        %v787 = vrot.slane %v785, 4
        %v788 = vshll.u32 %v744, 16
        %v790 = vrot.slane %v788, 5
        %v791 = vor.u32 %v787, %v790
        %v792 = vrot.slane %v791, 4
        %v794 = vshll.u32 %v745, 16
        %v796 = vrot.slane %v794, 5
        %v797 = vsel %vm302, %v792, %v796
        %v799 = vshrl.u32 %v746, 16
        %v801 = vrot.slane %v799, 4
        %v802 = vshll.u32 %v746, 16
        %v804 = vrot.slane %v802, 5
        %v805 = vor.u32 %v801, %v804
        %v806 = vrot.slane %v805, 4
        %v808 = vshll.u32 %v747, 16
        %v810 = vrot.slane %v808, 5
        %v811 = vsel %vm302, %v806, %v810
        %v813 = vshrl.u32 %v748, 16
        %v815 = vrot.slane %v813, 4
        %v816 = vshll.u32 %v748, 16
        %v818 = vrot.slane %v816, 5
        %v819 = vor.u32 %v815, %v818
        %v820 = vrot.slane %v819, 4
        %v822 = vshll.u32 %v749, 16
        %v824 = vrot.slane %v822, 5
        %v825 = vsel %vm302, %v820, %v824
        %v827 = vshrl.u32 %v750, 16
        %v829 = vrot.slane %v827, 4
        %v830 = vshll.u32 %v750, 16
        %v832 = vrot.slane %v830, 5
        %v833 = vor.u32 %v829, %v832
        %v834 = vrot.slane %v833, 4
        %v836 = vshll.u32 %v751, 16
        %v838 = vrot.slane %v836, 5
        %v839 = vsel %vm302, %v834, %v838
        %v841 = vshrl.u32 %v752, 16
        %v843 = vrot.slane %v841, 4
        %v844 = vshll.u32 %v752, 16
        %v846 = vrot.slane %v844, 5
        %v847 = vor.u32 %v843, %v846
        %v848 = vrot.slane %v847, 4
        %v850 = vshll.u32 %v753, 16
        %v852 = vrot.slane %v850, 5
        %v853 = vsel %vm302, %v848, %v852
        %v855 = vshrl.u32 %v754, 16
        %v857 = vrot.slane %v855, 4
        %v858 = vshll.u32 %v754, 16
        %v860 = vrot.slane %v858, 5
        %v861 = vor.u32 %v857, %v860
        %v862 = vrot.slane %v861, 4
        %v864 = vshll.u32 %v755, 16
        %v866 = vrot.slane %v864, 5
        %v867 = vsel %vm302, %v862, %v866
        %s868 = scalar_lea.vmem %s1, 24
        %v869 = vld [vmem:[%s868] sm:$0xf]
        %v870 = vld [vmem:[%s868 + $0x4] sm:$0xf]
        %v871 = vunpack.c.l.b16 %v769
        %v872 = vunpack.c.l.b16 %v783
        %v873 = vunpack.c.l.b16 %v797
        %v874 = vunpack.c.l.b16 %v811
        %v875 = vunpack.c.l.b16 %v825
        %v876 = vunpack.c.l.b16 %v839
        %v877 = vunpack.c.l.b16 %v853
        %v878 = vunpack.c.l.b16 %v867
        %v879 = vpack.c.b16 %v872, %v871
        %v880 = vpack.c.b16 %v874, %v873
        %v881 = vpack.c.b16 %v876, %v875
        %v882 = vpack.c.b16 %v878, %v877
        %v885 = vunpack.c.l.b16 %v869
        %v886 = vunpack.c.l.b16 %v870
        %v887 = vpack.c.b16 %v886, %v885
        %v890 = vsel %vm436, %v879, 0
        %v893 = vsel %vm436, %v880, 0
        %v896 = vsel %vm436, %v881, 0
        %v899 = vsel %vm436, %v882, 0
        %901 = vmatprep.subr.bf16.mxu0 0
        %902 = vmatpush1.bf16.msra.mxu0 %v887
        %903 = vmatprep.subr.bf16.mxu0 0
        %904 = vmatpush1.bf16.msra.mxu0 0
        %905 = vmatprep.subr.bf16.mxu0 0
        %906 = vmatpush1.bf16.msra.mxu0 0
        %907 = vmatprep.subr.bf16.mxu0 0
        %908 = vmatpush1.bf16.msra.mxu0 0
        %909 = vmatprep.subr.bf16.mxu0 0
        %910 = vmatpush1.bf16.msra.mxu0 0
        %911 = vmatprep.subr.bf16.mxu0 0
        %912 = vmatpush1.bf16.msra.mxu0 0
        %913 = vmatprep.subr.bf16.mxu0 0
        %914 = vmatpush1.bf16.msra.mxu0 0
        %915 = vmatprep.subr.bf16.mxu0 0
        %916 = vmatpush1.bf16.msra.mxu0 0
        %917 = vmatprep.subr.bf16.mxu0 0
        %918 = vmatpush1.bf16.msra.mxu0 0
        %919 = vmatprep.subr.bf16.mxu0 0
        %920 = vmatpush1.bf16.msra.mxu0 0
        %921 = vmatprep.subr.bf16.mxu0 0
        %922 = vmatpush1.bf16.msra.mxu0 0
        %923 = vmatprep.subr.bf16.mxu0 0
        %924 = vmatpush1.bf16.msra.mxu0 0
        %925 = vmatprep.subr.bf16.mxu0 0
        %926 = vmatpush1.bf16.msra.mxu0 0
        %927 = vmatprep.subr.bf16.mxu0 0
        %928 = vmatpush1.bf16.msra.mxu0 0
        %929 = vmatprep.subr.bf16.mxu0 0
        %930 = vmatpush1.bf16.msra.mxu0 0
        %931 = vmatprep.subr.bf16.mxu0 0
        %932 = vmatpush1.bf16.msra.mxu0 0
        %933 = vmatprep.mubr.bf16.mxu0 0
        %934 = vmatmul.mubr.bf16.gmra.mrb[0].mxu0 %v890
        %v935 = vpop.f32.mrb[0].mxu0
        %v936 = vadd.f32 0.0, %v935
        %v937 = vpop.f32.mrb[0].mxu0
        %v938 = vpop.f32.mrb[0].mxu0
        %v939 = vadd.f32 0.0, %v938
        %v940 = vpop.f32.mrb[0].mxu0
        %941 = vmatprep.mubr.bf16.mxu0 0
        %942 = vmatmul.mubr.bf16.gmra.mrb[0].mxu0 %v893
        %v943 = vpop.f32.mrb[0].mxu0
        %v944 = vadd.f32 0.0, %v943
        %v945 = vpop.f32.mrb[0].mxu0
        %v946 = vpop.f32.mrb[0].mxu0
        %v947 = vadd.f32 0.0, %v946
        %v948 = vpop.f32.mrb[0].mxu0
        %949 = vmatprep.mubr.bf16.mxu0 0
        %950 = vmatmul.mubr.bf16.gmra.mrb[0].mxu0 %v896
        %v951 = vpop.f32.mrb[0].mxu0
        %v952 = vadd.f32 0.0, %v951
        %v953 = vpop.f32.mrb[0].mxu0
        %v954 = vpop.f32.mrb[0].mxu0
        %v955 = vadd.f32 0.0, %v954
        %v956 = vpop.f32.mrb[0].mxu0
        %957 = vmatprep.mubr.bf16.mxu0 0
        %958 = vmatmul.mubr.bf16.gmra.mrb[0].mxu0 %v899
        %v959 = vpop.f32.mrb[0].mxu0
        %v960 = vadd.f32 0.0, %v959
        %v961 = vpop.f32.mrb[0].mxu0
        %v962 = vpop.f32.mrb[0].mxu0
        %v963 = vadd.f32 0.0, %v962
        %v964 = vpop.f32.mrb[0].mxu0
        %965 = vdwg.mxu0
        %v966 = vadd.f32 %v732, %v936
        %v967 = vadd.f32 %v733, %v939
        %v968 = vadd.f32 %v734, %v944
        %v969 = vadd.f32 %v735, %v947
        %v970 = vadd.f32 %v736, %v952
        %v971 = vadd.f32 %v737, %v955
        %v972 = vadd.f32 %v738, %v960
        %v973 = vadd.f32 %v739, %v963
        %vm974 = vcmask 261120
        %v975 = vsel %vm974, %v966, 0.0
        %v976 = vsel %vm974, %v967, 0.0
        %v977 = vadd.f32 %v975, %v976
        %v978 = vsel %vm974, %v968, 0.0
        %v979 = vadd.f32 %v977, %v978
        %v980 = vsel %vm974, %v969, 0.0
        %v981 = vadd.f32 %v979, %v980
        %v982 = vsel %vm974, %v970, 0.0
        %v983 = vadd.f32 %v981, %v982
        %v984 = vsel %vm974, %v971, 0.0
        %v985 = vadd.f32 %v983, %v984
        %v986 = vsel %vm974, %v972, 0.0
        %v987 = vadd.f32 %v985, %v986
        %v988 = vsel %vm974, %v973, 0.0
        %v989 = vadd.f32 %v987, %v988
        %v990 = vrot.slane %v989, 4
        %v991 = vadd.f32 %v989, %v990
        %v992 = vrot.slane %v991, 2
        %v993 = vadd.f32 %v991, %v992
        %v994 = vrot.slane %v993, 1
        %v995 = vadd.f32 %v993, %v994
        %v996 = vrcp.pop 64.0
        %v997 = vmul.f32 %v995, %v996
        %v998 = vsub.f32 %v966, %v997
        %v999 = vsub.f32 %v967, %v997
        %v1000 = vsub.f32 %v968, %v997
        %v1001 = vsub.f32 %v969, %v997
        %v1002 = vsub.f32 %v970, %v997
        %v1003 = vsub.f32 %v971, %v997
        %v1004 = vsub.f32 %v972, %v997
        %v1005 = vsub.f32 %v973, %v997
        %v1006 = vmul.f32 %v998, %v998
        %v1007 = vmul.f32 %v999, %v999
        %v1008 = vmul.f32 %v1000, %v1000
        %v1009 = vmul.f32 %v1001, %v1001
        %v1010 = vmul.f32 %v1002, %v1002
        %v1011 = vmul.f32 %v1003, %v1003
        %v1012 = vmul.f32 %v1004, %v1004
        %v1013 = vmul.f32 %v1005, %v1005
        %v1014 = vsel %vm974, %v1006, 0.0
        %v1015 = vsel %vm974, %v1007, 0.0
        %v1016 = vadd.f32 %v1014, %v1015
        %v1017 = vsel %vm974, %v1008, 0.0
        %v1018 = vadd.f32 %v1016, %v1017
        %v1019 = vsel %vm974, %v1009, 0.0
        %v1020 = vadd.f32 %v1018, %v1019
        %v1021 = vsel %vm974, %v1010, 0.0
        %v1022 = vadd.f32 %v1020, %v1021
        %v1023 = vsel %vm974, %v1011, 0.0
        %v1024 = vadd.f32 %v1022, %v1023
        %v1025 = vsel %vm974, %v1012, 0.0
        %v1026 = vadd.f32 %v1024, %v1025
        %v1027 = vsel %vm974, %v1013, 0.0
        %v1028 = vadd.f32 %v1026, %v1027
        %v1029 = vrot.slane %v1028, 4
        %v1030 = vadd.f32 %v1028, %v1029
        %v1031 = vrot.slane %v1030, 2
        %v1032 = vadd.f32 %v1030, %v1031
        %v1033 = vrot.slane %v1032, 1
        %v1034 = vadd.f32 %v1032, %v1033
        %v1035 = vmul.f32 %v1034, %v996
        %v1036 = vadd.f32 %v1035, 1e-05
        %v1037 = vrsqrt.pop %v1036
        %v1038 = vmul.f32 %v998, %v1037
        %v1039 = vmul.f32 %v999, %v1037
        %v1040 = vmul.f32 %v1000, %v1037
        %v1041 = vmul.f32 %v1001, %v1037
        %v1042 = vmul.f32 %v1002, %v1037
        %v1043 = vmul.f32 %v1003, %v1037
        %v1044 = vmul.f32 %v1004, %v1037
        %v1045 = vmul.f32 %v1005, %v1037
        %v1047 = vlaneseq
        %v1048 = vshrl.u32 %v1047, 7
        %v1049 = vsub.s32 0, %v1048
        %v1050 = vrot.slane %v278, %v1049
        %v1052 = vmul.f32 %v1038, %v1050
        %v1053 = vmul.f32 %v1039, %v1050
        %v1054 = vmul.f32 %v1040, %v1050
        %v1055 = vmul.f32 %v1041, %v1050
        %v1056 = vmul.f32 %v1042, %v1050
        %v1057 = vmul.f32 %v1043, %v1050
        %v1058 = vmul.f32 %v1044, %v1050
        %v1059 = vmul.f32 %v1045, %v1050
        %v1061 = vlaneseq
        %v1062 = vshrl.u32 %v1061, 7
        %v1063 = vsub.s32 0, %v1062
        %v1064 = vrot.slane %v279, %v1063
        %v1066 = vadd.f32 %v1052, %v1064
        %v1067 = vadd.f32 %v1053, %v1064
        %v1068 = vadd.f32 %v1054, %v1064
        %v1069 = vadd.f32 %v1055, %v1064
        %v1070 = vadd.f32 %v1056, %v1064
        %v1071 = vadd.f32 %v1057, %v1064
        %v1072 = vadd.f32 %v1058, %v1064
        %v1073 = vadd.f32 %v1059, %v1064
        %v1074 = vmax.f32 %v1066, 0.0
        %v1075 = vmax.f32 %v1067, 0.0
        %v1076 = vmax.f32 %v1068, 0.0
        %v1077 = vmax.f32 %v1069, 0.0
        %v1078 = vmax.f32 %v1070, 0.0
        %v1079 = vmax.f32 %v1071, 0.0
        %v1080 = vmax.f32 %v1072, 0.0
        %v1081 = vmax.f32 %v1073, 0.0
        %v1082 = vpack.c.bf16 %v1074, %v1074
        %v1083 = vpack.c.bf16 %v1075, %v1075
        %v1084 = vpack.c.bf16 %v1076, %v1076
        %v1085 = vpack.c.bf16 %v1077, %v1077
        %v1086 = vpack.c.bf16 %v1078, %v1078
        %v1087 = vpack.c.bf16 %v1079, %v1079
        %v1088 = vpack.c.bf16 %v1080, %v1080
        %v1089 = vpack.c.bf16 %v1081, %v1081
        %vm1090 = vcmask 257024
        %1091 = vst.msk [vmem:[#allocation2] sm:$0xf] %vm1090, 0
        %vm1092 = vcmask 253952
        %1093 = vst.msk [vmem:[#allocation2 + $0x4] sm:$0x1] %vm1092, 0
        %s1094 = scalar_lea.vmem [#allocation2], 72
        %1095 = vst.msk [vmem:[%s1094] sm:$0xf] %vm1090, 0
        %1096 = vst.msk [vmem:[%s1094 + $0x4] sm:$0x1] %vm1092, 0
        %vm1097 = vcmask 253952
        %vm1098 = vsmask.f32 256
        %vm1099 = vmand %vm1097, %vm1098
        %v1100 = vld [vmem:[#allocation2] sm:$0x1]
        %v1101 = vsel %vm1099, 0, %v1100
        %1102 = vst [vmem:[#allocation2] sm:$0x1] %v1101
        %v1103 = vld [vmem:[#allocation2 + $0x8] sm:$0x1]
        %v1104 = vsel %vm1099, 0, %v1103
        %1105 = vst [vmem:[#allocation2 + $0x8] sm:$0x1] %v1104
        %v1106 = vld [vmem:[#allocation2 + $0x10] sm:$0x1]
        %v1107 = vsel %vm1099, 0, %v1106
        %1108 = vst [vmem:[#allocation2 + $0x10] sm:$0x1] %v1107
        %v1109 = vld [vmem:[#allocation2 + $0x18] sm:$0x1]
        %v1110 = vsel %vm1099, 0, %v1109
        %1111 = vst [vmem:[#allocation2 + $0x18] sm:$0x1] %v1110
        %v1112 = vld [vmem:[#allocation2 + $0x20] sm:$0x1]
        %v1113 = vsel %vm1099, 0, %v1112
        %1114 = vst [vmem:[#allocation2 + $0x20] sm:$0x1] %v1113
        %v1115 = vld [vmem:[#allocation2 + $0x28] sm:$0x1]
        %v1116 = vsel %vm1099, 0, %v1115
        %1117 = vst [vmem:[#allocation2 + $0x28] sm:$0x1] %v1116
        %v1118 = vld [vmem:[#allocation2 + $0x30] sm:$0x1]
        %v1119 = vsel %vm1099, 0, %v1118
        %1120 = vst [vmem:[#allocation2 + $0x30] sm:$0x1] %v1119
        %v1121 = vld [vmem:[#allocation2 + $0x38] sm:$0x1]
        %v1122 = vsel %vm1099, 0, %v1121
        %1123 = vst [vmem:[#allocation2 + $0x38] sm:$0x1] %v1122
        %v1124 = vld [vmem:[#allocation2 + $0x40] sm:$0x1]
        %v1125 = vsel %vm1099, 0, %v1124
        %1126 = vst [vmem:[#allocation2 + $0x40] sm:$0x1] %v1125
        %v1127 = vld [vmem:[#allocation2 + $0x48] sm:$0x1]
        %v1128 = vsel %vm1099, 0, %v1127
        %1129 = vst [vmem:[#allocation2 + $0x48] sm:$0x1] %v1128
        %vm1130 = vsmask.f32 7938
        %vm1131 = vmand %vm1097, %vm1130
        %v1132 = vld [vmem:[#allocation2 + $0x4] sm:$0x1]
        %v1133 = vsel %vm1131, 0, %v1132
        %1134 = vst [vmem:[#allocation2 + $0x4] sm:$0x1] %v1133
        %v1135 = vld [vmem:[#allocation2 + $0xc] sm:$0x1]
        %v1136 = vsel %vm1131, 0, %v1135
        %1137 = vst [vmem:[#allocation2 + $0xc] sm:$0x1] %v1136
        %v1138 = vld [vmem:[#allocation2 + $0x14] sm:$0x1]
        %v1139 = vsel %vm1131, 0, %v1138
        %1140 = vst [vmem:[#allocation2 + $0x14] sm:$0x1] %v1139
        %v1141 = vld [vmem:[#allocation2 + $0x1c] sm:$0x1]
        %v1142 = vsel %vm1131, 0, %v1141
        %1143 = vst [vmem:[#allocation2 + $0x1c] sm:$0x1] %v1142
        %v1144 = vld [vmem:[#allocation2 + $0x24] sm:$0x1]
        %v1145 = vsel %vm1131, 0, %v1144
        %1146 = vst [vmem:[#allocation2 + $0x24] sm:$0x1] %v1145
        %v1147 = vld [vmem:[#allocation2 + $0x2c] sm:$0x1]
        %v1148 = vsel %vm1131, 0, %v1147
        %1149 = vst [vmem:[#allocation2 + $0x2c] sm:$0x1] %v1148
        %v1150 = vld [vmem:[#allocation2 + $0x34] sm:$0x1]
        %v1151 = vsel %vm1131, 0, %v1150
        %1152 = vst [vmem:[#allocation2 + $0x34] sm:$0x1] %v1151
        %v1153 = vld [vmem:[#allocation2 + $0x3c] sm:$0x1]
        %v1154 = vsel %vm1131, 0, %v1153
        %1155 = vst [vmem:[#allocation2 + $0x3c] sm:$0x1] %v1154
        %v1156 = vld [vmem:[#allocation2 + $0x44] sm:$0x1]
        %v1157 = vsel %vm1131, 0, %v1156
        %1158 = vst [vmem:[#allocation2 + $0x44] sm:$0x1] %v1157
        %v1159 = vld [vmem:[#allocation2 + $0x4c] sm:$0x1]
        %v1160 = vsel %vm1131, 0, %v1159
        %1161 = vst [vmem:[#allocation2 + $0x4c] sm:$0x1] %v1160
        %v1170 = vunpack.c.l.b16 %v1082
        %v1171 = vunpack.c.l.b16 %v1083
        %v1172 = vunpack.c.l.b16 %v1084
        %v1173 = vunpack.c.l.b16 %v1085
        %v1174 = vunpack.c.l.b16 %v1086
        %v1175 = vunpack.c.l.b16 %v1087
        %v1176 = vunpack.c.l.b16 %v1088
        %v1177 = vunpack.c.l.b16 %v1089
        %v1178 = vpack.c.b16 %v1170, %v1170
        %v1179 = vpack.c.b16 %v1171, %v1171
        %v1180 = vpack.c.b16 %v1172, %v1172
        %v1181 = vpack.c.b16 %v1173, %v1173
        %v1182 = vpack.c.b16 %v1174, %v1174
        %v1183 = vpack.c.b16 %v1175, %v1175
        %v1184 = vpack.c.b16 %v1176, %v1176
        %v1185 = vpack.c.b16 %v1177, %v1177
        %v1187 = vshrl.u32 %v1178, 16
        %v1189 = vrot.slane %v1187, 7
        %v1190 = vshll.u32 %v1178, 16
        %v1192 = vor.u32 %v1189, %v1190
        %v1193 = vrot.slane %v1189, 4
        %v1195 = vshrl.u32 %v1179, 16
        %v1197 = vrot.slane %v1195, 7
        %v1198 = vshll.u32 %v1179, 16
        %v1200 = vor.u32 %v1197, %v1198
        %v1201 = vrot.slane %v1197, 4
        %v1203 = vshrl.u32 %v1180, 16
        %v1205 = vrot.slane %v1203, 7
        %v1206 = vshll.u32 %v1180, 16
        %v1208 = vor.u32 %v1205, %v1206
        %v1209 = vrot.slane %v1205, 4
        %v1211 = vshrl.u32 %v1181, 16
        %v1213 = vrot.slane %v1211, 7
        %v1214 = vshll.u32 %v1181, 16
        %v1216 = vor.u32 %v1213, %v1214
        %v1217 = vrot.slane %v1213, 4
        %v1219 = vshrl.u32 %v1182, 16
        %v1221 = vrot.slane %v1219, 7
        %v1222 = vshll.u32 %v1182, 16
        %v1224 = vor.u32 %v1221, %v1222
        %v1225 = vrot.slane %v1221, 4
        %v1227 = vshrl.u32 %v1183, 16
        %v1229 = vrot.slane %v1227, 7
        %v1230 = vshll.u32 %v1183, 16
        %v1232 = vor.u32 %v1229, %v1230
        %v1233 = vrot.slane %v1229, 4
        %v1235 = vshrl.u32 %v1184, 16
        %v1237 = vrot.slane %v1235, 7
        %v1238 = vshll.u32 %v1184, 16
        %v1240 = vor.u32 %v1237, %v1238
        %v1241 = vrot.slane %v1237, 4
        %v1243 = vshrl.u32 %v1185, 16
        %v1245 = vrot.slane %v1243, 7
        %v1246 = vshll.u32 %v1185, 16
        %v1248 = vor.u32 %v1245, %v1246
        %v1249 = vrot.slane %v1245, 4
        %s1266 = scalar_lea.vmem [#allocation2], 8
        %vm1267 = vcmask 257024
        %vm1268 = vmand %vm1267, %vm1130
        %v1269 = vld [vmem:[%s1266] sm:$0xf]
        %v1270 = vsel %vm1268, %v1192, %v1269
        %1271 = vst [vmem:[%s1266] sm:$0xf] %v1270
        %v1272 = vld [vmem:[%s1266 + $0x4] sm:$0x1]
        %v1273 = vsel %vm1099, %v1193, %v1272
        %1274 = vst [vmem:[%s1266 + $0x4] sm:$0x1] %v1273
        %v1275 = vld [vmem:[%s1266 + $0x8] sm:$0xf]
        %v1276 = vsel %vm1268, %v1200, %v1275
        %1277 = vst [vmem:[%s1266 + $0x8] sm:$0xf] %v1276
        %v1278 = vld [vmem:[%s1266 + $0xc] sm:$0x1]
        %v1279 = vsel %vm1099, %v1201, %v1278
        %1280 = vst [vmem:[%s1266 + $0xc] sm:$0x1] %v1279
        %v1281 = vld [vmem:[%s1266 + $0x10] sm:$0xf]
        %v1282 = vsel %vm1268, %v1208, %v1281
        %1283 = vst [vmem:[%s1266 + $0x10] sm:$0xf] %v1282
        %v1284 = vld [vmem:[%s1266 + $0x14] sm:$0x1]
        %v1285 = vsel %vm1099, %v1209, %v1284
        %1286 = vst [vmem:[%s1266 + $0x14] sm:$0x1] %v1285
        %v1287 = vld [vmem:[%s1266 + $0x18] sm:$0xf]
        %v1288 = vsel %vm1268, %v1216, %v1287
        %1289 = vst [vmem:[%s1266 + $0x18] sm:$0xf] %v1288
        %v1290 = vld [vmem:[%s1266 + $0x1c] sm:$0x1]
        %v1291 = vsel %vm1099, %v1217, %v1290
        %1292 = vst [vmem:[%s1266 + $0x1c] sm:$0x1] %v1291
        %v1293 = vld [vmem:[%s1266 + $0x20] sm:$0xf]
        %v1294 = vsel %vm1268, %v1224, %v1293
        %1295 = vst [vmem:[%s1266 + $0x20] sm:$0xf] %v1294
        %v1296 = vld [vmem:[%s1266 + $0x24] sm:$0x1]
        %v1297 = vsel %vm1099, %v1225, %v1296
        %1298 = vst [vmem:[%s1266 + $0x24] sm:$0x1] %v1297
        %v1299 = vld [vmem:[%s1266 + $0x28] sm:$0xf]
        %v1300 = vsel %vm1268, %v1232, %v1299
        %1301 = vst [vmem:[%s1266 + $0x28] sm:$0xf] %v1300
        %v1302 = vld [vmem:[%s1266 + $0x2c] sm:$0x1]
        %v1303 = vsel %vm1099, %v1233, %v1302
        %1304 = vst [vmem:[%s1266 + $0x2c] sm:$0x1] %v1303
        %v1305 = vld [vmem:[%s1266 + $0x30] sm:$0xf]
        %v1306 = vsel %vm1268, %v1240, %v1305
        %1307 = vst [vmem:[%s1266 + $0x30] sm:$0xf] %v1306
        %v1308 = vld [vmem:[%s1266 + $0x34] sm:$0x1]
        %v1309 = vsel %vm1099, %v1241, %v1308
        %1310 = vst [vmem:[%s1266 + $0x34] sm:$0x1] %v1309
        %v1311 = vld [vmem:[%s1266 + $0x38] sm:$0xf]
        %v1312 = vsel %vm1268, %v1248, %v1311
        %1313 = vst [vmem:[%s1266 + $0x38] sm:$0xf] %v1312
        %v1314 = vld [vmem:[%s1266 + $0x3c] sm:$0x1]
        %v1315 = vsel %vm1099, %v1249, %v1314
        %1316 = vst [vmem:[%s1266 + $0x3c] sm:$0x1] %v1315
        %v1317 = vld [vmem:[#allocation2] sm:$0xf]
        %v1318 = vld [vmem:[#allocation2 + $0x8] sm:$0xf]
        %v1319 = vld [vmem:[#allocation2 + $0x10] sm:$0xf]
        %v1320 = vld [vmem:[#allocation2 + $0x18] sm:$0xf]
        %v1321 = vld [vmem:[#allocation2 + $0x20] sm:$0xf]
        %v1322 = vld [vmem:[#allocation2 + $0x28] sm:$0xf]
        %v1323 = vld [vmem:[#allocation2 + $0x30] sm:$0xf]
        %v1324 = vld [vmem:[#allocation2 + $0x38] sm:$0xf]
        %v1325 = vld [vmem:[%s4] sm:$0xf]
        %v1326 = vld [vmem:[%s4 + $0x4] sm:$0xf]
        %v1327 = vld [vmem:[%s4 + $0x8] sm:$0xf]
        %v1328 = vld [vmem:[%s4 + $0xc] sm:$0xf]
        %v1329 = vld [vmem:[#allocation2 + $0x4] sm:$0x1]
        %v1330 = vld [vmem:[#allocation2 + $0xc] sm:$0x1]
        %v1331 = vld [vmem:[#allocation2 + $0x14] sm:$0x1]
        %v1332 = vld [vmem:[#allocation2 + $0x1c] sm:$0x1]
        %v1333 = vld [vmem:[#allocation2 + $0x24] sm:$0x1]
        %v1334 = vld [vmem:[#allocation2 + $0x2c] sm:$0x1]
        %v1335 = vld [vmem:[#allocation2 + $0x34] sm:$0x1]
        %v1336 = vld [vmem:[#allocation2 + $0x3c] sm:$0x1]
        %v1338 = vshrl.u32 %v1317, 16
        %v1340 = vrot.slane %v1338, 4
        %v1341 = vshll.u32 %v1317, 16
        %v1343 = vrot.slane %v1341, 5
        %v1344 = vor.u32 %v1340, %v1343
        %v1345 = vrot.slane %v1344, 4
        %v1347 = vshll.u32 %v1329, 16
        %v1349 = vrot.slane %v1347, 5
        %v1350 = vsel %vm302, %v1345, %v1349
        %v1352 = vshrl.u32 %v1318, 16
        %v1354 = vrot.slane %v1352, 4
        %v1355 = vshll.u32 %v1318, 16
        %v1357 = vrot.slane %v1355, 5
        %v1358 = vor.u32 %v1354, %v1357
        %v1359 = vrot.slane %v1358, 4
        %v1361 = vshll.u32 %v1330, 16
        %v1363 = vrot.slane %v1361, 5
        %v1364 = vsel %vm302, %v1359, %v1363
        %v1366 = vshrl.u32 %v1319, 16
        %v1368 = vrot.slane %v1366, 4
        %v1369 = vshll.u32 %v1319, 16
        %v1371 = vrot.slane %v1369, 5
        %v1372 = vor.u32 %v1368, %v1371
        %v1373 = vrot.slane %v1372, 4
        %v1375 = vshll.u32 %v1331, 16
        %v1377 = vrot.slane %v1375, 5
        %v1378 = vsel %vm302, %v1373, %v1377
        %v1380 = vshrl.u32 %v1320, 16
        %v1382 = vrot.slane %v1380, 4
        %v1383 = vshll.u32 %v1320, 16
        %v1385 = vrot.slane %v1383, 5
        %v1386 = vor.u32 %v1382, %v1385
        %v1387 = vrot.slane %v1386, 4
        %v1389 = vshll.u32 %v1332, 16
        %v1391 = vrot.slane %v1389, 5
        %v1392 = vsel %vm302, %v1387, %v1391
        %v1394 = vshrl.u32 %v1321, 16
        %v1396 = vrot.slane %v1394, 4
        %v1397 = vshll.u32 %v1321, 16
        %v1399 = vrot.slane %v1397, 5
        %v1400 = vor.u32 %v1396, %v1399
        %v1401 = vrot.slane %v1400, 4
        %v1403 = vshll.u32 %v1333, 16
        %v1405 = vrot.slane %v1403, 5
        %v1406 = vsel %vm302, %v1401, %v1405
        %v1408 = vshrl.u32 %v1322, 16
        %v1410 = vrot.slane %v1408, 4
        %v1411 = vshll.u32 %v1322, 16
        %v1413 = vrot.slane %v1411, 5
        %v1414 = vor.u32 %v1410, %v1413
        %v1415 = vrot.slane %v1414, 4
        %v1417 = vshll.u32 %v1334, 16
        %v1419 = vrot.slane %v1417, 5
        %v1420 = vsel %vm302, %v1415, %v1419
        %v1422 = vshrl.u32 %v1323, 16
        %v1424 = vrot.slane %v1422, 4
        %v1425 = vshll.u32 %v1323, 16
        %v1427 = vrot.slane %v1425, 5
        %v1428 = vor.u32 %v1424, %v1427
        %v1429 = vrot.slane %v1428, 4
        %v1431 = vshll.u32 %v1335, 16
        %v1433 = vrot.slane %v1431, 5
        %v1434 = vsel %vm302, %v1429, %v1433
        %v1436 = vshrl.u32 %v1324, 16
        %v1438 = vrot.slane %v1436, 4
        %v1439 = vshll.u32 %v1324, 16
        %v1441 = vrot.slane %v1439, 5
        %v1442 = vor.u32 %v1438, %v1441
        %v1443 = vrot.slane %v1442, 4
        %v1445 = vshll.u32 %v1336, 16
        %v1447 = vrot.slane %v1445, 5
        %v1448 = vsel %vm302, %v1443, %v1447
        %s1449 = scalar_lea.vmem %s4, 16
        %v1450 = vld [vmem:[%s1449] sm:$0xf]
        %v1451 = vld [vmem:[%s1449 + $0x4] sm:$0xf]
        %v1452 = vld [vmem:[%s1449 + $0x8] sm:$0xf]
        %v1453 = vld [vmem:[%s1449 + $0xc] sm:$0xf]
        %v1454 = vunpack.c.l.b16 %v1350
        %v1455 = vunpack.c.l.b16 %v1364
        %v1456 = vunpack.c.l.b16 %v1378
        %v1457 = vunpack.c.l.b16 %v1392
        %v1458 = vunpack.c.l.b16 %v1406
        %v1459 = vunpack.c.l.b16 %v1420
        %v1460 = vunpack.c.l.b16 %v1434
        %v1461 = vunpack.c.l.b16 %v1448
        %v1462 = vpack.c.b16 %v1455, %v1454
        %v1463 = vpack.c.b16 %v1457, %v1456
        %v1464 = vpack.c.b16 %v1459, %v1458
        %v1465 = vpack.c.b16 %v1461, %v1460
        %v1470 = vunpack.c.l.b16 %v1450
        %v1471 = vunpack.c.l.b16 %v1451
        %v1472 = vunpack.c.l.b16 %v1452
        %v1473 = vunpack.c.l.b16 %v1453
        %v1474 = vpack.c.b16 %v1471, %v1470
        %v1475 = vpack.c.b16 %v1473, %v1472
        %v1479 = vsel %vm974, %v1462, 0
        %v1482 = vsel %vm974, %v1463, 0
        %v1485 = vsel %vm974, %v1464, 0
        %v1488 = vsel %vm974, %v1465, 0
        %1490 = vmatprep.subr.bf16.mxu0 0
        %1491 = vmatpush1.bf16.msra.mxu0 %v1474
        %1492 = vmatprep.subr.bf16.mxu0 0
        %1493 = vmatpush1.bf16.msra.mxu0 %v1475
        %1494 = vmatprep.subr.bf16.mxu0 0
        %1495 = vmatpush1.bf16.msra.mxu0 0
        %1496 = vmatprep.subr.bf16.mxu0 0
        %1497 = vmatpush1.bf16.msra.mxu0 0
        %1498 = vmatprep.subr.bf16.mxu0 0
        %1499 = vmatpush1.bf16.msra.mxu0 0
        %1500 = vmatprep.subr.bf16.mxu0 0
        %1501 = vmatpush1.bf16.msra.mxu0 0
        %1502 = vmatprep.subr.bf16.mxu0 0
        %1503 = vmatpush1.bf16.msra.mxu0 0
        %1504 = vmatprep.subr.bf16.mxu0 0
        %1505 = vmatpush1.bf16.msra.mxu0 0
        %1506 = vmatprep.subr.bf16.mxu0 0
        %1507 = vmatpush1.bf16.msra.mxu0 0
        %1508 = vmatprep.subr.bf16.mxu0 0
        %1509 = vmatpush1.bf16.msra.mxu0 0
        %1510 = vmatprep.subr.bf16.mxu0 0
        %1511 = vmatpush1.bf16.msra.mxu0 0
        %1512 = vmatprep.subr.bf16.mxu0 0
        %1513 = vmatpush1.bf16.msra.mxu0 0
        %1514 = vmatprep.subr.bf16.mxu0 0
        %1515 = vmatpush1.bf16.msra.mxu0 0
        %1516 = vmatprep.subr.bf16.mxu0 0
        %1517 = vmatpush1.bf16.msra.mxu0 0
        %1518 = vmatprep.subr.bf16.mxu0 0
        %1519 = vmatpush1.bf16.msra.mxu0 0
        %1520 = vmatprep.subr.bf16.mxu0 0
        %1521 = vmatpush1.bf16.msra.mxu0 0
        %1522 = vmatprep.mubr.bf16.mxu0 0
        %1523 = vmatmul.mubr.bf16.gmra.mrb[0].mxu0 %v1479
        %v1524 = vpop.f32.mrb[0].mxu0
        %v1525 = vadd.f32 0.0, %v1524
        %v1526 = vpop.f32.mrb[0].mxu0
        %v1527 = vpop.f32.mrb[0].mxu0
        %v1528 = vadd.f32 0.0, %v1527
        %v1529 = vpop.f32.mrb[0].mxu0
        %1530 = vmatprep.mubr.bf16.mxu0 0
        %1531 = vmatmul.mubr.bf16.gmra.mrb[0].mxu0 %v1482
        %v1532 = vpop.f32.mrb[0].mxu0
        %v1533 = vadd.f32 0.0, %v1532
        %v1534 = vpop.f32.mrb[0].mxu0
        %v1535 = vpop.f32.mrb[0].mxu0
        %v1536 = vadd.f32 0.0, %v1535
        %v1537 = vpop.f32.mrb[0].mxu0
        %1538 = vmatprep.mubr.bf16.mxu0 0
        %1539 = vmatmul.mubr.bf16.gmra.mrb[0].mxu0 %v1485
        %v1540 = vpop.f32.mrb[0].mxu0
        %v1541 = vadd.f32 0.0, %v1540
        %v1542 = vpop.f32.mrb[0].mxu0
        %v1543 = vpop.f32.mrb[0].mxu0
        %v1544 = vadd.f32 0.0, %v1543
        %v1545 = vpop.f32.mrb[0].mxu0
        %1546 = vmatprep.mubr.bf16.mxu0 0
        %1547 = vmatmul.mubr.bf16.gmra.mrb[0].mxu0 %v1488
        %v1548 = vpop.f32.mrb[0].mxu0
        %v1549 = vadd.f32 0.0, %v1548
        %v1550 = vpop.f32.mrb[0].mxu0
        %v1551 = vpop.f32.mrb[0].mxu0
        %v1552 = vadd.f32 0.0, %v1551
        %v1553 = vpop.f32.mrb[0].mxu0
        %1554 = vdwg.mxu0
        %v1563 = vunpack.c.l.b16 %v1317
        %v1564 = vunpack.c.l.b16 %v1318
        %v1565 = vunpack.c.l.b16 %v1319
        %v1566 = vunpack.c.l.b16 %v1320
        %v1567 = vunpack.c.l.b16 %v1321
        %v1568 = vunpack.c.l.b16 %v1322
        %v1569 = vunpack.c.l.b16 %v1323
        %v1570 = vunpack.c.l.b16 %v1324
        %v1571 = vpack.c.b16 %v1564, %v1563
        %v1572 = vpack.c.b16 %v1566, %v1565
        %v1573 = vpack.c.b16 %v1568, %v1567
        %v1574 = vpack.c.b16 %v1570, %v1569
        %v1579 = vunpack.c.l.b16 %v1325
        %v1580 = vunpack.c.l.b16 %v1326
        %v1581 = vunpack.c.l.b16 %v1327
        %v1582 = vunpack.c.l.b16 %v1328
        %v1583 = vpack.c.b16 %v1580, %v1579
        %v1584 = vpack.c.b16 %v1582, %v1581
        %v1588 = vsel %vm974, %v1571, 0
        %v1591 = vsel %vm974, %v1572, 0
        %v1594 = vsel %vm974, %v1573, 0
        %v1597 = vsel %vm974, %v1574, 0
        %1599 = vmatprep.subr.bf16.mxu0 0
        %1600 = vmatpush1.bf16.msra.mxu0 %v1583
        %1601 = vmatprep.subr.bf16.mxu0 0
        %1602 = vmatpush1.bf16.msra.mxu0 %v1584
        %1603 = vmatprep.subr.bf16.mxu0 0
        %1604 = vmatpush1.bf16.msra.mxu0 0
        %1605 = vmatprep.subr.bf16.mxu0 0
        %1606 = vmatpush1.bf16.msra.mxu0 0
        %1607 = vmatprep.subr.bf16.mxu0 0
        %1608 = vmatpush1.bf16.msra.mxu0 0
        %1609 = vmatprep.subr.bf16.mxu0 0
        %1610 = vmatpush1.bf16.msra.mxu0 0
        %1611 = vmatprep.subr.bf16.mxu0 0
        %1612 = vmatpush1.bf16.msra.mxu0 0
        %1613 = vmatprep.subr.bf16.mxu0 0
        %1614 = vmatpush1.bf16.msra.mxu0 0
        %1615 = vmatprep.subr.bf16.mxu0 0
        %1616 = vmatpush1.bf16.msra.mxu0 0
        %1617 = vmatprep.subr.bf16.mxu0 0
        %1618 = vmatpush1.bf16.msra.mxu0 0
        %1619 = vmatprep.subr.bf16.mxu0 0
        %1620 = vmatpush1.bf16.msra.mxu0 0
        %1621 = vmatprep.subr.bf16.mxu0 0
        %1622 = vmatpush1.bf16.msra.mxu0 0
        %1623 = vmatprep.subr.bf16.mxu0 0
        %1624 = vmatpush1.bf16.msra.mxu0 0
        %1625 = vmatprep.subr.bf16.mxu0 0
        %1626 = vmatpush1.bf16.msra.mxu0 0
        %1627 = vmatprep.subr.bf16.mxu0 0
        %1628 = vmatpush1.bf16.msra.mxu0 0
        %1629 = vmatprep.subr.bf16.mxu0 0
        %1630 = vmatpush1.bf16.msra.mxu0 0
        %1631 = vmatprep.mubr.bf16.mxu0 0
        %1632 = vmatmul.mubr.bf16.gmra.mrb[0].mxu0 %v1588
        %v1633 = vpop.f32.mrb[0].mxu0
        %v1634 = vadd.f32 %v1525, %v1633
        %v1635 = vpop.f32.mrb[0].mxu0
        %v1636 = vpop.f32.mrb[0].mxu0
        %v1637 = vadd.f32 %v1528, %v1636
        %v1638 = vpop.f32.mrb[0].mxu0
        %1639 = vmatprep.mubr.bf16.mxu0 0
        %1640 = vmatmul.mubr.bf16.gmra.mrb[0].mxu0 %v1591
        %v1641 = vpop.f32.mrb[0].mxu0
        %v1642 = vadd.f32 %v1533, %v1641
        %v1643 = vpop.f32.mrb[0].mxu0
        %v1644 = vpop.f32.mrb[0].mxu0
        %v1645 = vadd.f32 %v1536, %v1644
        %v1646 = vpop.f32.mrb[0].mxu0
        %1647 = vmatprep.mubr.bf16.mxu0 0
        %1648 = vmatmul.mubr.bf16.gmra.mrb[0].mxu0 %v1594
        %v1649 = vpop.f32.mrb[0].mxu0
        %v1650 = vadd.f32 %v1541, %v1649
        %v1651 = vpop.f32.mrb[0].mxu0
        %v1652 = vpop.f32.mrb[0].mxu0
        %v1653 = vadd.f32 %v1544, %v1652
        %v1654 = vpop.f32.mrb[0].mxu0
        %1655 = vmatprep.mubr.bf16.mxu0 0
        %1656 = vmatmul.mubr.bf16.gmra.mrb[0].mxu0 %v1597
        %v1657 = vpop.f32.mrb[0].mxu0
        %v1658 = vadd.f32 %v1549, %v1657
        %v1659 = vpop.f32.mrb[0].mxu0
        %v1660 = vpop.f32.mrb[0].mxu0
        %v1661 = vadd.f32 %v1552, %v1660
        %v1662 = vpop.f32.mrb[0].mxu0
        %1663 = vdwg.mxu0
        %v1664 = vld [vmem:[#allocation2] sm:$0xe]
        %v1665 = vld [vmem:[#allocation2 + $0x8] sm:$0xe]
        %v1666 = vld [vmem:[#allocation2 + $0x10] sm:$0xe]
        %v1667 = vld [vmem:[#allocation2 + $0x18] sm:$0xe]
        %v1668 = vld [vmem:[#allocation2 + $0x20] sm:$0xe]
        %v1669 = vld [vmem:[#allocation2 + $0x28] sm:$0xe]
        %v1670 = vld [vmem:[#allocation2 + $0x30] sm:$0xe]
        %v1671 = vld [vmem:[#allocation2 + $0x38] sm:$0xe]
        %vm1688 = vcmask 1042432
        %vm1689 = vcmask 1046532
        %vm1690 = vmor %vm1688, %vm1689
        %v1691 = vrot.slane %v1664, 5
        %v1692 = vrot.slane %v1691, 4
        %v1693 = vrot.slane %v1329, 5
        %v1694 = vsel %vm1690, %v1692, %v1693
        %v1695 = vrot.slane %v1665, 5
        %v1696 = vrot.slane %v1695, 4
        %v1697 = vrot.slane %v1330, 5
        %v1698 = vsel %vm1690, %v1696, %v1697
        %v1699 = vrot.slane %v1666, 5
        %v1700 = vrot.slane %v1699, 4
        %v1701 = vrot.slane %v1331, 5
        %v1702 = vsel %vm1690, %v1700, %v1701
        %v1703 = vrot.slane %v1667, 5
        %v1704 = vrot.slane %v1703, 4
        %v1705 = vrot.slane %v1332, 5
        %v1706 = vsel %vm1690, %v1704, %v1705
        %v1707 = vrot.slane %v1668, 5
        %v1708 = vrot.slane %v1707, 4
        %v1709 = vrot.slane %v1333, 5
        %v1710 = vsel %vm1690, %v1708, %v1709
        %v1711 = vrot.slane %v1669, 5
        %v1712 = vrot.slane %v1711, 4
        %v1713 = vrot.slane %v1334, 5
        %v1714 = vsel %vm1690, %v1712, %v1713
        %v1715 = vrot.slane %v1670, 5
        %v1716 = vrot.slane %v1715, 4
        %v1717 = vrot.slane %v1335, 5
        %v1718 = vsel %vm1690, %v1716, %v1717
        %v1719 = vrot.slane %v1671, 5
        %v1720 = vrot.slane %v1719, 4
        %v1721 = vrot.slane %v1336, 5
        %v1722 = vsel %vm1690, %v1720, %v1721
        %s1723 = scalar_lea.vmem %s4, 32
        %v1724 = vld [vmem:[%s1723] sm:$0xf]
        %v1725 = vld [vmem:[%s1723 + $0x4] sm:$0xf]
        %v1726 = vld [vmem:[%s1723 + $0x8] sm:$0xf]
        %v1727 = vld [vmem:[%s1723 + $0xc] sm:$0xf]
        %v1728 = vunpack.c.l.b16 %v1694
        %v1729 = vunpack.c.l.b16 %v1698
        %v1730 = vunpack.c.l.b16 %v1702
        %v1731 = vunpack.c.l.b16 %v1706
        %v1732 = vunpack.c.l.b16 %v1710
        %v1733 = vunpack.c.l.b16 %v1714
        %v1734 = vunpack.c.l.b16 %v1718
        %v1735 = vunpack.c.l.b16 %v1722
        %v1736 = vpack.c.b16 %v1729, %v1728
        %v1737 = vpack.c.b16 %v1731, %v1730
        %v1738 = vpack.c.b16 %v1733, %v1732
        %v1739 = vpack.c.b16 %v1735, %v1734
        %v1744 = vunpack.c.l.b16 %v1724
        %v1745 = vunpack.c.l.b16 %v1725
        %v1746 = vunpack.c.l.b16 %v1726
        %v1747 = vunpack.c.l.b16 %v1727
        %v1748 = vpack.c.b16 %v1745, %v1744
        %v1749 = vpack.c.b16 %v1747, %v1746
        %v1753 = vsel %vm974, %v1736, 0
        %v1756 = vsel %vm974, %v1737, 0
        %v1759 = vsel %vm974, %v1738, 0
        %v1762 = vsel %vm974, %v1739, 0
        %1764 = vmatprep.subr.bf16.mxu0 0
        %1765 = vmatpush1.bf16.msra.mxu0 %v1748
        %1766 = vmatprep.subr.bf16.mxu0 0
        %1767 = vmatpush1.bf16.msra.mxu0 %v1749
        %1768 = vmatprep.subr.bf16.mxu0 0
        %1769 = vmatpush1.bf16.msra.mxu0 0
        %1770 = vmatprep.subr.bf16.mxu0 0
        %1771 = vmatpush1.bf16.msra.mxu0 0
        %1772 = vmatprep.subr.bf16.mxu0 0
        %1773 = vmatpush1.bf16.msra.mxu0 0
        %1774 = vmatprep.subr.bf16.mxu0 0
        %1775 = vmatpush1.bf16.msra.mxu0 0
        %1776 = vmatprep.subr.bf16.mxu0 0
        %1777 = vmatpush1.bf16.msra.mxu0 0
        %1778 = vmatprep.subr.bf16.mxu0 0
        %1779 = vmatpush1.bf16.msra.mxu0 0
        %1780 = vmatprep.subr.bf16.mxu0 0
        %1781 = vmatpush1.bf16.msra.mxu0 0
        %1782 = vmatprep.subr.bf16.mxu0 0
        %1783 = vmatpush1.bf16.msra.mxu0 0
        %1784 = vmatprep.subr.bf16.mxu0 0
        %1785 = vmatpush1.bf16.msra.mxu0 0
        %1786 = vmatprep.subr.bf16.mxu0 0
        %1787 = vmatpush1.bf16.msra.mxu0 0
        %1788 = vmatprep.subr.bf16.mxu0 0
        %1789 = vmatpush1.bf16.msra.mxu0 0
        %1790 = vmatprep.subr.bf16.mxu0 0
        %1791 = vmatpush1.bf16.msra.mxu0 0
        %1792 = vmatprep.subr.bf16.mxu0 0
        %1793 = vmatpush1.bf16.msra.mxu0 0
        %1794 = vmatprep.subr.bf16.mxu0 0
        %1795 = vmatpush1.bf16.msra.mxu0 0
        %1796 = vmatprep.mubr.bf16.mxu0 0
        %1797 = vmatmul.mubr.bf16.gmra.mrb[0].mxu0 %v1753
        %v1798 = vpop.f32.mrb[0].mxu0
        %v1799 = vadd.f32 0.0, %v1798
        %v1800 = vpop.f32.mrb[0].mxu0
        %v1801 = vpop.f32.mrb[0].mxu0
        %v1802 = vadd.f32 0.0, %v1801
        %v1803 = vpop.f32.mrb[0].mxu0
        %1804 = vmatprep.mubr.bf16.mxu0 0
        %1805 = vmatmul.mubr.bf16.gmra.mrb[0].mxu0 %v1756
        %v1806 = vpop.f32.mrb[0].mxu0
        %v1807 = vadd.f32 0.0, %v1806
        %v1808 = vpop.f32.mrb[0].mxu0
        %v1809 = vpop.f32.mrb[0].mxu0
        %v1810 = vadd.f32 0.0, %v1809
        %v1811 = vpop.f32.mrb[0].mxu0
        %1812 = vmatprep.mubr.bf16.mxu0 0
        %1813 = vmatmul.mubr.bf16.gmra.mrb[0].mxu0 %v1759
        %v1814 = vpop.f32.mrb[0].mxu0
        %v1815 = vadd.f32 0.0, %v1814
        %v1816 = vpop.f32.mrb[0].mxu0
        %v1817 = vpop.f32.mrb[0].mxu0
        %v1818 = vadd.f32 0.0, %v1817
        %v1819 = vpop.f32.mrb[0].mxu0
        %1820 = vmatprep.mubr.bf16.mxu0 0
        %1821 = vmatmul.mubr.bf16.gmra.mrb[0].mxu0 %v1762
        %v1822 = vpop.f32.mrb[0].mxu0
        %v1823 = vadd.f32 0.0, %v1822
        %v1824 = vpop.f32.mrb[0].mxu0
        %v1825 = vpop.f32.mrb[0].mxu0
        %v1826 = vadd.f32 0.0, %v1825
        %v1827 = vpop.f32.mrb[0].mxu0
        %1828 = vdwg.mxu0
        %v1829 = vadd.f32 %v1634, %v1799
        %v1830 = vadd.f32 %v1637, %v1802
        %v1831 = vadd.f32 %v1642, %v1807
        %v1832 = vadd.f32 %v1645, %v1810
        %v1833 = vadd.f32 %v1650, %v1815
        %v1834 = vadd.f32 %v1653, %v1818
        %v1835 = vadd.f32 %v1658, %v1823
        %v1836 = vadd.f32 %v1661, %v1826
        %v1837 = vld [vmem:[%s1266] sm:$0xf]
        %v1838 = vld [vmem:[%s1266 + $0x8] sm:$0xf]
        %v1839 = vld [vmem:[%s1266 + $0x10] sm:$0xf]
        %v1840 = vld [vmem:[%s1266 + $0x18] sm:$0xf]
        %v1841 = vld [vmem:[%s1266 + $0x20] sm:$0xf]
        %v1842 = vld [vmem:[%s1266 + $0x28] sm:$0xf]
        %v1843 = vld [vmem:[%s1266 + $0x30] sm:$0xf]
        %v1844 = vld [vmem:[%s1266 + $0x38] sm:$0xf]
        %s1845 = scalar_lea.vmem %s4, 48
        %v1846 = vld [vmem:[%s1845] sm:$0xf]
        %v1847 = vld [vmem:[%s1845 + $0x4] sm:$0xf]
        %v1848 = vld [vmem:[%s1845 + $0x8] sm:$0xf]
        %v1849 = vld [vmem:[%s1845 + $0xc] sm:$0xf]
        %v1858 = vunpack.c.l.b16 %v1837
        %v1859 = vunpack.c.l.b16 %v1838
        %v1860 = vunpack.c.l.b16 %v1839
        %v1861 = vunpack.c.l.b16 %v1840
        %v1862 = vunpack.c.l.b16 %v1841
        %v1863 = vunpack.c.l.b16 %v1842
        %v1864 = vunpack.c.l.b16 %v1843
        %v1865 = vunpack.c.l.b16 %v1844
        %v1866 = vpack.c.b16 %v1859, %v1858
        %v1867 = vpack.c.b16 %v1861, %v1860
        %v1868 = vpack.c.b16 %v1863, %v1862
        %v1869 = vpack.c.b16 %v1865, %v1864
        %v1874 = vunpack.c.l.b16 %v1846
        %v1875 = vunpack.c.l.b16 %v1847
        %v1876 = vunpack.c.l.b16 %v1848
        %v1877 = vunpack.c.l.b16 %v1849
        %v1878 = vpack.c.b16 %v1875, %v1874
        %v1879 = vpack.c.b16 %v1877, %v1876
        %v1883 = vsel %vm974, %v1866, 0
        %v1886 = vsel %vm974, %v1867, 0
        %v1889 = vsel %vm974, %v1868, 0
        %v1892 = vsel %vm974, %v1869, 0
        %1894 = vmatprep.subr.bf16.mxu0 0
        %1895 = vmatpush1.bf16.msra.mxu0 %v1878
        %1896 = vmatprep.subr.bf16.mxu0 0
        %1897 = vmatpush1.bf16.msra.mxu0 %v1879
        %1898 = vmatprep.subr.bf16.mxu0 0
        %1899 = vmatpush1.bf16.msra.mxu0 0
        %1900 = vmatprep.subr.bf16.mxu0 0
        %1901 = vmatpush1.bf16.msra.mxu0 0
        %1902 = vmatprep.subr.bf16.mxu0 0
        %1903 = vmatpush1.bf16.msra.mxu0 0
        %1904 = vmatprep.subr.bf16.mxu0 0
        %1905 = vmatpush1.bf16.msra.mxu0 0
        %1906 = vmatprep.subr.bf16.mxu0 0
        %1907 = vmatpush1.bf16.msra.mxu0 0
        %1908 = vmatprep.subr.bf16.mxu0 0
        %1909 = vmatpush1.bf16.msra.mxu0 0
        %1910 = vmatprep.subr.bf16.mxu0 0
        %1911 = vmatpush1.bf16.msra.mxu0 0
        %1912 = vmatprep.subr.bf16.mxu0 0
        %1913 = vmatpush1.bf16.msra.mxu0 0
        %1914 = vmatprep.subr.bf16.mxu0 0
        %1915 = vmatpush1.bf16.msra.mxu0 0
        %1916 = vmatprep.subr.bf16.mxu0 0
        %1917 = vmatpush1.bf16.msra.mxu0 0
        %1918 = vmatprep.subr.bf16.mxu0 0
        %1919 = vmatpush1.bf16.msra.mxu0 0
        %1920 = vmatprep.subr.bf16.mxu0 0
        %1921 = vmatpush1.bf16.msra.mxu0 0
        %1922 = vmatprep.subr.bf16.mxu0 0
        %1923 = vmatpush1.bf16.msra.mxu0 0
        %1924 = vmatprep.subr.bf16.mxu0 0
        %1925 = vmatpush1.bf16.msra.mxu0 0
        %1926 = vmatprep.mubr.bf16.mxu0 0
        %1927 = vmatmul.mubr.bf16.gmra.mrb[0].mxu0 %v1883
        %v1928 = vpop.f32.mrb[0].mxu0
        %v1929 = vadd.f32 0.0, %v1928
        %v1930 = vpop.f32.mrb[0].mxu0
        %v1931 = vpop.f32.mrb[0].mxu0
        %v1932 = vadd.f32 0.0, %v1931
        %v1933 = vpop.f32.mrb[0].mxu0
        %1934 = vmatprep.mubr.bf16.mxu0 0
        %1935 = vmatmul.mubr.bf16.gmra.mrb[0].mxu0 %v1886
        %v1936 = vpop.f32.mrb[0].mxu0
        %v1937 = vadd.f32 0.0, %v1936
        %v1938 = vpop.f32.mrb[0].mxu0
        %v1939 = vpop.f32.mrb[0].mxu0
        %v1940 = vadd.f32 0.0, %v1939
        %v1941 = vpop.f32.mrb[0].mxu0
        %1942 = vmatprep.mubr.bf16.mxu0 0
        %1943 = vmatmul.mubr.bf16.gmra.mrb[0].mxu0 %v1889
        %v1944 = vpop.f32.mrb[0].mxu0
        %v1945 = vadd.f32 0.0, %v1944
        %v1946 = vpop.f32.mrb[0].mxu0
        %v1947 = vpop.f32.mrb[0].mxu0
        %v1948 = vadd.f32 0.0, %v1947
        %v1949 = vpop.f32.mrb[0].mxu0
        %1950 = vmatprep.mubr.bf16.mxu0 0
        %1951 = vmatmul.mubr.bf16.gmra.mrb[0].mxu0 %v1892
        %v1952 = vpop.f32.mrb[0].mxu0
        %v1953 = vadd.f32 0.0, %v1952
        %v1954 = vpop.f32.mrb[0].mxu0
        %v1955 = vpop.f32.mrb[0].mxu0
        %v1956 = vadd.f32 0.0, %v1955
        %v1957 = vpop.f32.mrb[0].mxu0
        %1958 = vdwg.mxu0
        %v1959 = vadd.f32 %v1829, %v1929
        %v1960 = vadd.f32 %v1830, %v1932
        %v1961 = vadd.f32 %v1831, %v1937
        %v1962 = vadd.f32 %v1832, %v1940
        %v1963 = vadd.f32 %v1833, %v1945
        %v1964 = vadd.f32 %v1834, %v1948
        %v1965 = vadd.f32 %v1835, %v1953
        %v1966 = vadd.f32 %v1836, %v1956
        %v1967 = vld [vmem:[%s1266] sm:$0xf]
        %v1968 = vld [vmem:[%s1266 + $0x4] sm:$0x1]
        %v1969 = vld [vmem:[%s1266 + $0x8] sm:$0xf]
        %v1970 = vld [vmem:[%s1266 + $0xc] sm:$0x1]
        %v1971 = vld [vmem:[%s1266 + $0x10] sm:$0xf]
        %v1972 = vld [vmem:[%s1266 + $0x14] sm:$0x1]
        %v1973 = vld [vmem:[%s1266 + $0x18] sm:$0xf]
        %v1974 = vld [vmem:[%s1266 + $0x1c] sm:$0x1]
        %v1975 = vld [vmem:[%s1266 + $0x20] sm:$0xf]
        %v1976 = vld [vmem:[%s1266 + $0x24] sm:$0x1]
        %v1977 = vld [vmem:[%s1266 + $0x28] sm:$0xf]
        %v1978 = vld [vmem:[%s1266 + $0x2c] sm:$0x1]
        %v1979 = vld [vmem:[%s1266 + $0x30] sm:$0xf]
        %v1980 = vld [vmem:[%s1266 + $0x34] sm:$0x1]
        %v1981 = vld [vmem:[%s1266 + $0x38] sm:$0xf]
        %v1982 = vld [vmem:[%s1266 + $0x3c] sm:$0x1]
        %v1984 = vshrl.u32 %v1967, 16
        %v1986 = vrot.slane %v1984, 4
        %v1987 = vshll.u32 %v1967, 16
        %v1989 = vrot.slane %v1987, 5
        %v1990 = vor.u32 %v1986, %v1989
        %v1991 = vrot.slane %v1990, 4
        %v1993 = vshll.u32 %v1968, 16
        %v1995 = vrot.slane %v1993, 5
        %v1996 = vsel %vm302, %v1991, %v1995
        %v1998 = vshrl.u32 %v1969, 16
        %v2000 = vrot.slane %v1998, 4
        %v2001 = vshll.u32 %v1969, 16
        %v2003 = vrot.slane %v2001, 5
        %v2004 = vor.u32 %v2000, %v2003
        %v2005 = vrot.slane %v2004, 4
        %v2007 = vshll.u32 %v1970, 16
        %v2009 = vrot.slane %v2007, 5
        %v2010 = vsel %vm302, %v2005, %v2009
        %v2012 = vshrl.u32 %v1971, 16
        %v2014 = vrot.slane %v2012, 4
        %v2015 = vshll.u32 %v1971, 16
        %v2017 = vrot.slane %v2015, 5
        %v2018 = vor.u32 %v2014, %v2017
        %v2019 = vrot.slane %v2018, 4
        %v2021 = vshll.u32 %v1972, 16
        %v2023 = vrot.slane %v2021, 5
        %v2024 = vsel %vm302, %v2019, %v2023
        %v2026 = vshrl.u32 %v1973, 16
        %v2028 = vrot.slane %v2026, 4
        %v2029 = vshll.u32 %v1973, 16
        %v2031 = vrot.slane %v2029, 5
        %v2032 = vor.u32 %v2028, %v2031
        %v2033 = vrot.slane %v2032, 4
        %v2035 = vshll.u32 %v1974, 16
        %v2037 = vrot.slane %v2035, 5
        %v2038 = vsel %vm302, %v2033, %v2037
        %v2040 = vshrl.u32 %v1975, 16
        %v2042 = vrot.slane %v2040, 4
        %v2043 = vshll.u32 %v1975, 16
        %v2045 = vrot.slane %v2043, 5
        %v2046 = vor.u32 %v2042, %v2045
        %v2047 = vrot.slane %v2046, 4
        %v2049 = vshll.u32 %v1976, 16
        %v2051 = vrot.slane %v2049, 5
        %v2052 = vsel %vm302, %v2047, %v2051
        %v2054 = vshrl.u32 %v1977, 16
        %v2056 = vrot.slane %v2054, 4
        %v2057 = vshll.u32 %v1977, 16
        %v2059 = vrot.slane %v2057, 5
        %v2060 = vor.u32 %v2056, %v2059
        %v2061 = vrot.slane %v2060, 4
        %v2063 = vshll.u32 %v1978, 16
        %v2065 = vrot.slane %v2063, 5
        %v2066 = vsel %vm302, %v2061, %v2065
        %v2068 = vshrl.u32 %v1979, 16
        %v2070 = vrot.slane %v2068, 4
        %v2071 = vshll.u32 %v1979, 16
        %v2073 = vrot.slane %v2071, 5
        %v2074 = vor.u32 %v2070, %v2073
        %v2075 = vrot.slane %v2074, 4
        %v2077 = vshll.u32 %v1980, 16
        %v2079 = vrot.slane %v2077, 5
        %v2080 = vsel %vm302, %v2075, %v2079
        %v2082 = vshrl.u32 %v1981, 16
        %v2084 = vrot.slane %v2082, 4
        %v2085 = vshll.u32 %v1981, 16
        %v2087 = vrot.slane %v2085, 5
        %v2088 = vor.u32 %v2084, %v2087
        %v2089 = vrot.slane %v2088, 4
        %v2091 = vshll.u32 %v1982, 16
        %v2093 = vrot.slane %v2091, 5
        %v2094 = vsel %vm302, %v2089, %v2093
        %s2095 = scalar_lea.vmem %s4, 64
        %v2096 = vld [vmem:[%s2095] sm:$0xf]
        %v2097 = vld [vmem:[%s2095 + $0x4] sm:$0xf]
        %v2098 = vld [vmem:[%s2095 + $0x8] sm:$0xf]
        %v2099 = vld [vmem:[%s2095 + $0xc] sm:$0xf]
        %v2100 = vunpack.c.l.b16 %v1996
        %v2101 = vunpack.c.l.b16 %v2010
        %v2102 = vunpack.c.l.b16 %v2024
        %v2103 = vunpack.c.l.b16 %v2038
        %v2104 = vunpack.c.l.b16 %v2052
        %v2105 = vunpack.c.l.b16 %v2066
        %v2106 = vunpack.c.l.b16 %v2080
        %v2107 = vunpack.c.l.b16 %v2094
        %v2108 = vpack.c.b16 %v2101, %v2100
        %v2109 = vpack.c.b16 %v2103, %v2102
        %v2110 = vpack.c.b16 %v2105, %v2104
        %v2111 = vpack.c.b16 %v2107, %v2106
        %v2116 = vunpack.c.l.b16 %v2096
        %v2117 = vunpack.c.l.b16 %v2097
        %v2118 = vunpack.c.l.b16 %v2098
        %v2119 = vunpack.c.l.b16 %v2099
        %v2120 = vpack.c.b16 %v2117, %v2116
        %v2121 = vpack.c.b16 %v2119, %v2118
        %v2125 = vsel %vm974, %v2108, 0
        %v2128 = vsel %vm974, %v2109, 0
        %v2131 = vsel %vm974, %v2110, 0
        %v2134 = vsel %vm974, %v2111, 0
        %2136 = vmatprep.subr.bf16.mxu0 0
        %2137 = vmatpush1.bf16.msra.mxu0 %v2120
        %2138 = vmatprep.subr.bf16.mxu0 0
        %2139 = vmatpush1.bf16.msra.mxu0 %v2121
        %2140 = vmatprep.subr.bf16.mxu0 0
        %2141 = vmatpush1.bf16.msra.mxu0 0
        %2142 = vmatprep.subr.bf16.mxu0 0
        %2143 = vmatpush1.bf16.msra.mxu0 0
        %2144 = vmatprep.subr.bf16.mxu0 0
        %2145 = vmatpush1.bf16.msra.mxu0 0
        %2146 = vmatprep.subr.bf16.mxu0 0
        %2147 = vmatpush1.bf16.msra.mxu0 0
        %2148 = vmatprep.subr.bf16.mxu0 0
        %2149 = vmatpush1.bf16.msra.mxu0 0
        %2150 = vmatprep.subr.bf16.mxu0 0
        %2151 = vmatpush1.bf16.msra.mxu0 0
        %2152 = vmatprep.subr.bf16.mxu0 0
        %2153 = vmatpush1.bf16.msra.mxu0 0
        %2154 = vmatprep.subr.bf16.mxu0 0
        %2155 = vmatpush1.bf16.msra.mxu0 0
        %2156 = vmatprep.subr.bf16.mxu0 0
        %2157 = vmatpush1.bf16.msra.mxu0 0
        %2158 = vmatprep.subr.bf16.mxu0 0
        %2159 = vmatpush1.bf16.msra.mxu0 0
        %2160 = vmatprep.subr.bf16.mxu0 0
        %2161 = vmatpush1.bf16.msra.mxu0 0
        %2162 = vmatprep.subr.bf16.mxu0 0
        %2163 = vmatpush1.bf16.msra.mxu0 0
        %2164 = vmatprep.subr.bf16.mxu0 0
        %2165 = vmatpush1.bf16.msra.mxu0 0
        %2166 = vmatprep.subr.bf16.mxu0 0
        %2167 = vmatpush1.bf16.msra.mxu0 0
        %2168 = vmatprep.mubr.bf16.mxu0 0
        %2169 = vmatmul.mubr.bf16.gmra.mrb[0].mxu0 %v2125
        %v2170 = vpop.f32.mrb[0].mxu0
        %v2171 = vadd.f32 0.0, %v2170
        %v2172 = vpop.f32.mrb[0].mxu0
        %v2173 = vpop.f32.mrb[0].mxu0
        %v2174 = vadd.f32 0.0, %v2173
        %v2175 = vpop.f32.mrb[0].mxu0
        %2176 = vmatprep.mubr.bf16.mxu0 0
        %2177 = vmatmul.mubr.bf16.gmra.mrb[0].mxu0 %v2128
        %v2178 = vpop.f32.mrb[0].mxu0
        %v2179 = vadd.f32 0.0, %v2178
        %v2180 = vpop.f32.mrb[0].mxu0
        %v2181 = vpop.f32.mrb[0].mxu0
        %v2182 = vadd.f32 0.0, %v2181
        %v2183 = vpop.f32.mrb[0].mxu0
        %2184 = vmatprep.mubr.bf16.mxu0 0
        %2185 = vmatmul.mubr.bf16.gmra.mrb[0].mxu0 %v2131
        %v2186 = vpop.f32.mrb[0].mxu0
        %v2187 = vadd.f32 0.0, %v2186
        %v2188 = vpop.f32.mrb[0].mxu0
        %v2189 = vpop.f32.mrb[0].mxu0
        %v2190 = vadd.f32 0.0, %v2189
        %v2191 = vpop.f32.mrb[0].mxu0
        %2192 = vmatprep.mubr.bf16.mxu0 0
        %2193 = vmatmul.mubr.bf16.gmra.mrb[0].mxu0 %v2134
        %v2194 = vpop.f32.mrb[0].mxu0
        %v2195 = vadd.f32 0.0, %v2194
        %v2196 = vpop.f32.mrb[0].mxu0
        %v2197 = vpop.f32.mrb[0].mxu0
        %v2198 = vadd.f32 0.0, %v2197
        %v2199 = vpop.f32.mrb[0].mxu0
        %2200 = vdwg.mxu0
        %v2201 = vadd.f32 %v1959, %v2171
        %v2202 = vadd.f32 %v1960, %v2174
        %v2203 = vadd.f32 %v1961, %v2179
        %v2204 = vadd.f32 %v1962, %v2182
        %v2205 = vadd.f32 %v1963, %v2187
        %v2206 = vadd.f32 %v1964, %v2190
        %v2207 = vadd.f32 %v1965, %v2195
        %v2208 = vadd.f32 %v1966, %v2198
        %v2209 = vld [vmem:[%s1266] sm:$0xe]
        %v2210 = vld [vmem:[%s1266 + $0x8] sm:$0xe]
        %v2211 = vld [vmem:[%s1266 + $0x10] sm:$0xe]
        %v2212 = vld [vmem:[%s1266 + $0x18] sm:$0xe]
        %v2213 = vld [vmem:[%s1266 + $0x20] sm:$0xe]
        %v2214 = vld [vmem:[%s1266 + $0x28] sm:$0xe]
        %v2215 = vld [vmem:[%s1266 + $0x30] sm:$0xe]
        %v2216 = vld [vmem:[%s1266 + $0x38] sm:$0xe]
        %v2233 = vrot.slane %v2209, 5
        %v2234 = vrot.slane %v2233, 4
        %v2235 = vrot.slane %v1968, 5
        %v2236 = vsel %vm1690, %v2234, %v2235
        %v2237 = vrot.slane %v2210, 5
        %v2238 = vrot.slane %v2237, 4
        %v2239 = vrot.slane %v1970, 5
        %v2240 = vsel %vm1690, %v2238, %v2239
        %v2241 = vrot.slane %v2211, 5
        %v2242 = vrot.slane %v2241, 4
        %v2243 = vrot.slane %v1972, 5
        %v2244 = vsel %vm1690, %v2242, %v2243
        %v2245 = vrot.slane %v2212, 5
        %v2246 = vrot.slane %v2245, 4
        %v2247 = vrot.slane %v1974, 5
        %v2248 = vsel %vm1690, %v2246, %v2247
        %v2249 = vrot.slane %v2213, 5
        %v2250 = vrot.slane %v2249, 4
        %v2251 = vrot.slane %v1976, 5
        %v2252 = vsel %vm1690, %v2250, %v2251
        %v2253 = vrot.slane %v2214, 5
        %v2254 = vrot.slane %v2253, 4
        %v2255 = vrot.slane %v1978, 5
        %v2256 = vsel %vm1690, %v2254, %v2255
        %v2257 = vrot.slane %v2215, 5
        %v2258 = vrot.slane %v2257, 4
        %v2259 = vrot.slane %v1980, 5
        %v2260 = vsel %vm1690, %v2258, %v2259
        %v2261 = vrot.slane %v2216, 5
        %v2262 = vrot.slane %v2261, 4
        %v2263 = vrot.slane %v1982, 5
        %v2264 = vsel %vm1690, %v2262, %v2263
        %s2265 = scalar_lea.vmem %s4, 80
        %v2266 = vld [vmem:[%s2265] sm:$0xf]
        %v2267 = vld [vmem:[%s2265 + $0x4] sm:$0xf]
        %v2268 = vld [vmem:[%s2265 + $0x8] sm:$0xf]
        %v2269 = vld [vmem:[%s2265 + $0xc] sm:$0xf]
        %v2270 = vunpack.c.l.b16 %v2236
        %v2271 = vunpack.c.l.b16 %v2240
        %v2272 = vunpack.c.l.b16 %v2244
        %v2273 = vunpack.c.l.b16 %v2248
        %v2274 = vunpack.c.l.b16 %v2252
        %v2275 = vunpack.c.l.b16 %v2256
        %v2276 = vunpack.c.l.b16 %v2260
        %v2277 = vunpack.c.l.b16 %v2264
        %v2278 = vpack.c.b16 %v2271, %v2270
        %v2279 = vpack.c.b16 %v2273, %v2272
        %v2280 = vpack.c.b16 %v2275, %v2274
        %v2281 = vpack.c.b16 %v2277, %v2276
        %v2286 = vunpack.c.l.b16 %v2266
        %v2287 = vunpack.c.l.b16 %v2267
        %v2288 = vunpack.c.l.b16 %v2268
        %v2289 = vunpack.c.l.b16 %v2269
        %v2290 = vpack.c.b16 %v2287, %v2286
        %v2291 = vpack.c.b16 %v2289, %v2288
        %v2295 = vsel %vm974, %v2278, 0
        %v2298 = vsel %vm974, %v2279, 0
        %v2301 = vsel %vm974, %v2280, 0
        %v2304 = vsel %vm974, %v2281, 0
        %2306 = vmatprep.subr.bf16.mxu0 0
        %2307 = vmatpush1.bf16.msra.mxu0 %v2290
        %2308 = vmatprep.subr.bf16.mxu0 0
        %2309 = vmatpush1.bf16.msra.mxu0 %v2291
        %2310 = vmatprep.subr.bf16.mxu0 0
        %2311 = vmatpush1.bf16.msra.mxu0 0
        %2312 = vmatprep.subr.bf16.mxu0 0
        %2313 = vmatpush1.bf16.msra.mxu0 0
        %2314 = vmatprep.subr.bf16.mxu0 0
        %2315 = vmatpush1.bf16.msra.mxu0 0
        %2316 = vmatprep.subr.bf16.mxu0 0
        %2317 = vmatpush1.bf16.msra.mxu0 0
        %2318 = vmatprep.subr.bf16.mxu0 0
        %2319 = vmatpush1.bf16.msra.mxu0 0
        %2320 = vmatprep.subr.bf16.mxu0 0
        %2321 = vmatpush1.bf16.msra.mxu0 0
        %2322 = vmatprep.subr.bf16.mxu0 0
        %2323 = vmatpush1.bf16.msra.mxu0 0
        %2324 = vmatprep.subr.bf16.mxu0 0
        %2325 = vmatpush1.bf16.msra.mxu0 0
        %2326 = vmatprep.subr.bf16.mxu0 0
        %2327 = vmatpush1.bf16.msra.mxu0 0
        %2328 = vmatprep.subr.bf16.mxu0 0
        %2329 = vmatpush1.bf16.msra.mxu0 0
        %2330 = vmatprep.subr.bf16.mxu0 0
        %2331 = vmatpush1.bf16.msra.mxu0 0
        %2332 = vmatprep.subr.bf16.mxu0 0
        %2333 = vmatpush1.bf16.msra.mxu0 0
        %2334 = vmatprep.subr.bf16.mxu0 0
        %2335 = vmatpush1.bf16.msra.mxu0 0
        %2336 = vmatprep.subr.bf16.mxu0 0
        %2337 = vmatpush1.bf16.msra.mxu0 0
        %2338 = vmatprep.mubr.bf16.mxu0 0
        %2339 = vmatmul.mubr.bf16.gmra.mrb[0].mxu0 %v2295
        %v2340 = vpop.f32.mrb[0].mxu0
        %v2341 = vadd.f32 0.0, %v2340
        %v2342 = vpop.f32.mrb[0].mxu0
        %v2343 = vpop.f32.mrb[0].mxu0
        %v2344 = vadd.f32 0.0, %v2343
        %v2345 = vpop.f32.mrb[0].mxu0
        %2346 = vmatprep.mubr.bf16.mxu0 0
        %2347 = vmatmul.mubr.bf16.gmra.mrb[0].mxu0 %v2298
        %v2348 = vpop.f32.mrb[0].mxu0
        %v2349 = vadd.f32 0.0, %v2348
        %v2350 = vpop.f32.mrb[0].mxu0
        %v2351 = vpop.f32.mrb[0].mxu0
        %v2352 = vadd.f32 0.0, %v2351
        %v2353 = vpop.f32.mrb[0].mxu0
        %2354 = vmatprep.mubr.bf16.mxu0 0
        %2355 = vmatmul.mubr.bf16.gmra.mrb[0].mxu0 %v2301
        %v2356 = vpop.f32.mrb[0].mxu0
        %v2357 = vadd.f32 0.0, %v2356
        %v2358 = vpop.f32.mrb[0].mxu0
        %v2359 = vpop.f32.mrb[0].mxu0
        %v2360 = vadd.f32 0.0, %v2359
        %v2361 = vpop.f32.mrb[0].mxu0
        %2362 = vmatprep.mubr.bf16.mxu0 0
        %2363 = vmatmul.mubr.bf16.gmra.mrb[0].mxu0 %v2304
        %v2364 = vpop.f32.mrb[0].mxu0
        %v2365 = vadd.f32 0.0, %v2364
        %v2366 = vpop.f32.mrb[0].mxu0
        %v2367 = vpop.f32.mrb[0].mxu0
        %v2368 = vadd.f32 0.0, %v2367
        %v2369 = vpop.f32.mrb[0].mxu0
        %2370 = vdwg.mxu0
        %v2371 = vadd.f32 %v2201, %v2341
        %v2372 = vadd.f32 %v2202, %v2344
        %v2373 = vadd.f32 %v2203, %v2349
        %v2374 = vadd.f32 %v2204, %v2352
        %v2375 = vadd.f32 %v2205, %v2357
        %v2376 = vadd.f32 %v2206, %v2360
        %v2377 = vadd.f32 %v2207, %v2365
        %v2378 = vadd.f32 %v2208, %v2368
        %s2379 = scalar_lea.vmem [#allocation2], 16
        %v2380 = vld [vmem:[%s2379] sm:$0xf]
        %v2381 = vld [vmem:[%s2379 + $0x8] sm:$0xf]
        %v2382 = vld [vmem:[%s2379 + $0x10] sm:$0xf]
        %v2383 = vld [vmem:[%s2379 + $0x18] sm:$0xf]
        %v2384 = vld [vmem:[%s2379 + $0x20] sm:$0xf]
        %v2385 = vld [vmem:[%s2379 + $0x28] sm:$0xf]
        %v2386 = vld [vmem:[%s2379 + $0x30] sm:$0xf]
        %v2387 = vld [vmem:[%s2379 + $0x38] sm:$0xf]
        %s2388 = scalar_lea.vmem %s4, 96
        %v2389 = vld [vmem:[%s2388] sm:$0xf]
        %v2390 = vld [vmem:[%s2388 + $0x4] sm:$0xf]
        %v2391 = vld [vmem:[%s2388 + $0x8] sm:$0xf]
        %v2392 = vld [vmem:[%s2388 + $0xc] sm:$0xf]
        %v2401 = vunpack.c.l.b16 %v2380
        %v2402 = vunpack.c.l.b16 %v2381
        %v2403 = vunpack.c.l.b16 %v2382
        %v2404 = vunpack.c.l.b16 %v2383
        %v2405 = vunpack.c.l.b16 %v2384
        %v2406 = vunpack.c.l.b16 %v2385
        %v2407 = vunpack.c.l.b16 %v2386
        %v2408 = vunpack.c.l.b16 %v2387
        %v2409 = vpack.c.b16 %v2402, %v2401
        %v2410 = vpack.c.b16 %v2404, %v2403
        %v2411 = vpack.c.b16 %v2406, %v2405
        %v2412 = vpack.c.b16 %v2408, %v2407
        %v2417 = vunpack.c.l.b16 %v2389
        %v2418 = vunpack.c.l.b16 %v2390
        %v2419 = vunpack.c.l.b16 %v2391
        %v2420 = vunpack.c.l.b16 %v2392
        %v2421 = vpack.c.b16 %v2418, %v2417
        %v2422 = vpack.c.b16 %v2420, %v2419
        %v2426 = vsel %vm974, %v2409, 0
        %v2429 = vsel %vm974, %v2410, 0
        %v2432 = vsel %vm974, %v2411, 0
        %v2435 = vsel %vm974, %v2412, 0
        %2437 = vmatprep.subr.bf16.mxu0 0
        %2438 = vmatpush1.bf16.msra.mxu0 %v2421
        %2439 = vmatprep.subr.bf16.mxu0 0
        %2440 = vmatpush1.bf16.msra.mxu0 %v2422
        %2441 = vmatprep.subr.bf16.mxu0 0
        %2442 = vmatpush1.bf16.msra.mxu0 0
        %2443 = vmatprep.subr.bf16.mxu0 0
        %2444 = vmatpush1.bf16.msra.mxu0 0
        %2445 = vmatprep.subr.bf16.mxu0 0
        %2446 = vmatpush1.bf16.msra.mxu0 0
        %2447 = vmatprep.subr.bf16.mxu0 0
        %2448 = vmatpush1.bf16.msra.mxu0 0
        %2449 = vmatprep.subr.bf16.mxu0 0
        %2450 = vmatpush1.bf16.msra.mxu0 0
        %2451 = vmatprep.subr.bf16.mxu0 0
        %2452 = vmatpush1.bf16.msra.mxu0 0
        %2453 = vmatprep.subr.bf16.mxu0 0
        %2454 = vmatpush1.bf16.msra.mxu0 0
        %2455 = vmatprep.subr.bf16.mxu0 0
        %2456 = vmatpush1.bf16.msra.mxu0 0
        %2457 = vmatprep.subr.bf16.mxu0 0
        %2458 = vmatpush1.bf16.msra.mxu0 0
        %2459 = vmatprep.subr.bf16.mxu0 0
        %2460 = vmatpush1.bf16.msra.mxu0 0
        %2461 = vmatprep.subr.bf16.mxu0 0
        %2462 = vmatpush1.bf16.msra.mxu0 0
        %2463 = vmatprep.subr.bf16.mxu0 0
        %2464 = vmatpush1.bf16.msra.mxu0 0
        %2465 = vmatprep.subr.bf16.mxu0 0
        %2466 = vmatpush1.bf16.msra.mxu0 0
        %2467 = vmatprep.subr.bf16.mxu0 0
        %2468 = vmatpush1.bf16.msra.mxu0 0
        %2469 = vmatprep.mubr.bf16.mxu0 0
        %2470 = vmatmul.mubr.bf16.gmra.mrb[0].mxu0 %v2426
        %v2471 = vpop.f32.mrb[0].mxu0
        %v2472 = vadd.f32 0.0, %v2471
        %v2473 = vpop.f32.mrb[0].mxu0
        %v2474 = vpop.f32.mrb[0].mxu0
        %v2475 = vadd.f32 0.0, %v2474
        %v2476 = vpop.f32.mrb[0].mxu0
        %2477 = vmatprep.mubr.bf16.mxu0 0
        %2478 = vmatmul.mubr.bf16.gmra.mrb[0].mxu0 %v2429
        %v2479 = vpop.f32.mrb[0].mxu0
        %v2480 = vadd.f32 0.0, %v2479
        %v2481 = vpop.f32.mrb[0].mxu0
        %v2482 = vpop.f32.mrb[0].mxu0
        %v2483 = vadd.f32 0.0, %v2482
        %v2484 = vpop.f32.mrb[0].mxu0
        %2485 = vmatprep.mubr.bf16.mxu0 0
        %2486 = vmatmul.mubr.bf16.gmra.mrb[0].mxu0 %v2432
        %v2487 = vpop.f32.mrb[0].mxu0
        %v2488 = vadd.f32 0.0, %v2487
        %v2489 = vpop.f32.mrb[0].mxu0
        %v2490 = vpop.f32.mrb[0].mxu0
        %v2491 = vadd.f32 0.0, %v2490
        %v2492 = vpop.f32.mrb[0].mxu0
        %2493 = vmatprep.mubr.bf16.mxu0 0
        %2494 = vmatmul.mubr.bf16.gmra.mrb[0].mxu0 %v2435
        %v2495 = vpop.f32.mrb[0].mxu0
        %v2496 = vadd.f32 0.0, %v2495
        %v2497 = vpop.f32.mrb[0].mxu0
        %v2498 = vpop.f32.mrb[0].mxu0
        %v2499 = vadd.f32 0.0, %v2498
        %v2500 = vpop.f32.mrb[0].mxu0
        %2501 = vdwg.mxu0
        %v2502 = vadd.f32 %v2371, %v2472
        %v2503 = vadd.f32 %v2372, %v2475
        %v2504 = vadd.f32 %v2373, %v2480
        %v2505 = vadd.f32 %v2374, %v2483
        %v2506 = vadd.f32 %v2375, %v2488
        %v2507 = vadd.f32 %v2376, %v2491
        %v2508 = vadd.f32 %v2377, %v2496
        %v2509 = vadd.f32 %v2378, %v2499
        %v2510 = vld [vmem:[%s2379] sm:$0xf]
        %v2511 = vld [vmem:[%s2379 + $0x4] sm:$0x1]
        %v2512 = vld [vmem:[%s2379 + $0x8] sm:$0xf]
        %v2513 = vld [vmem:[%s2379 + $0xc] sm:$0x1]
        %v2514 = vld [vmem:[%s2379 + $0x10] sm:$0xf]
        %v2515 = vld [vmem:[%s2379 + $0x14] sm:$0x1]
        %v2516 = vld [vmem:[%s2379 + $0x18] sm:$0xf]
        %v2517 = vld [vmem:[%s2379 + $0x1c] sm:$0x1]
        %v2518 = vld [vmem:[%s2379 + $0x20] sm:$0xf]
        %v2519 = vld [vmem:[%s2379 + $0x24] sm:$0x1]
        %v2520 = vld [vmem:[%s2379 + $0x28] sm:$0xf]
        %v2521 = vld [vmem:[%s2379 + $0x2c] sm:$0x1]
        %v2522 = vld [vmem:[%s2379 + $0x30] sm:$0xf]
        %v2523 = vld [vmem:[%s2379 + $0x34] sm:$0x1]
        %v2524 = vld [vmem:[%s2379 + $0x38] sm:$0xf]
        %v2525 = vld [vmem:[%s2379 + $0x3c] sm:$0x1]
        %v2527 = vshrl.u32 %v2510, 16
        %v2529 = vrot.slane %v2527, 4
        %v2530 = vshll.u32 %v2510, 16
        %v2532 = vrot.slane %v2530, 5
        %v2533 = vor.u32 %v2529, %v2532
        %v2534 = vrot.slane %v2533, 4
        %v2536 = vshll.u32 %v2511, 16
        %v2538 = vrot.slane %v2536, 5
        %v2539 = vsel %vm302, %v2534, %v2538
        %v2541 = vshrl.u32 %v2512, 16
        %v2543 = vrot.slane %v2541, 4
        %v2544 = vshll.u32 %v2512, 16
        %v2546 = vrot.slane %v2544, 5
        %v2547 = vor.u32 %v2543, %v2546
        %v2548 = vrot.slane %v2547, 4
        %v2550 = vshll.u32 %v2513, 16
        %v2552 = vrot.slane %v2550, 5
        %v2553 = vsel %vm302, %v2548, %v2552
        %v2555 = vshrl.u32 %v2514, 16
        %v2557 = vrot.slane %v2555, 4
        %v2558 = vshll.u32 %v2514, 16
        %v2560 = vrot.slane %v2558, 5
        %v2561 = vor.u32 %v2557, %v2560
        %v2562 = vrot.slane %v2561, 4
        %v2564 = vshll.u32 %v2515, 16
        %v2566 = vrot.slane %v2564, 5
        %v2567 = vsel %vm302, %v2562, %v2566
        %v2569 = vshrl.u32 %v2516, 16
        %v2571 = vrot.slane %v2569, 4
        %v2572 = vshll.u32 %v2516, 16
        %v2574 = vrot.slane %v2572, 5
        %v2575 = vor.u32 %v2571, %v2574
        %v2576 = vrot.slane %v2575, 4
        %v2578 = vshll.u32 %v2517, 16
        %v2580 = vrot.slane %v2578, 5
        %v2581 = vsel %vm302, %v2576, %v2580
        %v2583 = vshrl.u32 %v2518, 16
        %v2585 = vrot.slane %v2583, 4
        %v2586 = vshll.u32 %v2518, 16
        %v2588 = vrot.slane %v2586, 5
        %v2589 = vor.u32 %v2585, %v2588
        %v2590 = vrot.slane %v2589, 4
        %v2592 = vshll.u32 %v2519, 16
        %v2594 = vrot.slane %v2592, 5
        %v2595 = vsel %vm302, %v2590, %v2594
        %v2597 = vshrl.u32 %v2520, 16
        %v2599 = vrot.slane %v2597, 4
        %v2600 = vshll.u32 %v2520, 16
        %v2602 = vrot.slane %v2600, 5
        %v2603 = vor.u32 %v2599, %v2602
        %v2604 = vrot.slane %v2603, 4
        %v2606 = vshll.u32 %v2521, 16
        %v2608 = vrot.slane %v2606, 5
        %v2609 = vsel %vm302, %v2604, %v2608
        %v2611 = vshrl.u32 %v2522, 16
        %v2613 = vrot.slane %v2611, 4
        %v2614 = vshll.u32 %v2522, 16
        %v2616 = vrot.slane %v2614, 5
        %v2617 = vor.u32 %v2613, %v2616
        %v2618 = vrot.slane %v2617, 4
        %v2620 = vshll.u32 %v2523, 16
        %v2622 = vrot.slane %v2620, 5
        %v2623 = vsel %vm302, %v2618, %v2622
        %v2625 = vshrl.u32 %v2524, 16
        %v2627 = vrot.slane %v2625, 4
        %v2628 = vshll.u32 %v2524, 16
        %v2630 = vrot.slane %v2628, 5
        %v2631 = vor.u32 %v2627, %v2630
        %v2632 = vrot.slane %v2631, 4
        %v2634 = vshll.u32 %v2525, 16
        %v2636 = vrot.slane %v2634, 5
        %v2637 = vsel %vm302, %v2632, %v2636
        %s2638 = scalar_lea.vmem %s4, 112
        %v2639 = vld [vmem:[%s2638] sm:$0xf]
        %v2640 = vld [vmem:[%s2638 + $0x4] sm:$0xf]
        %v2641 = vld [vmem:[%s2638 + $0x8] sm:$0xf]
        %v2642 = vld [vmem:[%s2638 + $0xc] sm:$0xf]
        %v2643 = vunpack.c.l.b16 %v2539
        %v2644 = vunpack.c.l.b16 %v2553
        %v2645 = vunpack.c.l.b16 %v2567
        %v2646 = vunpack.c.l.b16 %v2581
        %v2647 = vunpack.c.l.b16 %v2595
        %v2648 = vunpack.c.l.b16 %v2609
        %v2649 = vunpack.c.l.b16 %v2623
        %v2650 = vunpack.c.l.b16 %v2637
        %v2651 = vpack.c.b16 %v2644, %v2643
        %v2652 = vpack.c.b16 %v2646, %v2645
        %v2653 = vpack.c.b16 %v2648, %v2647
        %v2654 = vpack.c.b16 %v2650, %v2649
        %v2659 = vunpack.c.l.b16 %v2639
        %v2660 = vunpack.c.l.b16 %v2640
        %v2661 = vunpack.c.l.b16 %v2641
        %v2662 = vunpack.c.l.b16 %v2642
        %v2663 = vpack.c.b16 %v2660, %v2659
        %v2664 = vpack.c.b16 %v2662, %v2661
        %v2668 = vsel %vm974, %v2651, 0
        %v2671 = vsel %vm974, %v2652, 0
        %v2674 = vsel %vm974, %v2653, 0
        %v2677 = vsel %vm974, %v2654, 0
        %2679 = vmatprep.subr.bf16.mxu0 0
        %2680 = vmatpush1.bf16.msra.mxu0 %v2663
        %2681 = vmatprep.subr.bf16.mxu0 0
        %2682 = vmatpush1.bf16.msra.mxu0 %v2664
        %2683 = vmatprep.subr.bf16.mxu0 0
        %2684 = vmatpush1.bf16.msra.mxu0 0
        %2685 = vmatprep.subr.bf16.mxu0 0
        %2686 = vmatpush1.bf16.msra.mxu0 0
        %2687 = vmatprep.subr.bf16.mxu0 0
        %2688 = vmatpush1.bf16.msra.mxu0 0
        %2689 = vmatprep.subr.bf16.mxu0 0
        %2690 = vmatpush1.bf16.msra.mxu0 0
        %2691 = vmatprep.subr.bf16.mxu0 0
        %2692 = vmatpush1.bf16.msra.mxu0 0
        %2693 = vmatprep.subr.bf16.mxu0 0
        %2694 = vmatpush1.bf16.msra.mxu0 0
        %2695 = vmatprep.subr.bf16.mxu0 0
        %2696 = vmatpush1.bf16.msra.mxu0 0
        %2697 = vmatprep.subr.bf16.mxu0 0
        %2698 = vmatpush1.bf16.msra.mxu0 0
        %2699 = vmatprep.subr.bf16.mxu0 0
        %2700 = vmatpush1.bf16.msra.mxu0 0
        %2701 = vmatprep.subr.bf16.mxu0 0
        %2702 = vmatpush1.bf16.msra.mxu0 0
        %2703 = vmatprep.subr.bf16.mxu0 0
        %2704 = vmatpush1.bf16.msra.mxu0 0
        %2705 = vmatprep.subr.bf16.mxu0 0
        %2706 = vmatpush1.bf16.msra.mxu0 0
        %2707 = vmatprep.subr.bf16.mxu0 0
        %2708 = vmatpush1.bf16.msra.mxu0 0
        %2709 = vmatprep.subr.bf16.mxu0 0
        %2710 = vmatpush1.bf16.msra.mxu0 0
        %2711 = vmatprep.mubr.bf16.mxu0 0
        %2712 = vmatmul.mubr.bf16.gmra.mrb[0].mxu0 %v2668
        %v2713 = vpop.f32.mrb[0].mxu0
        %v2714 = vadd.f32 0.0, %v2713
        %v2715 = vpop.f32.mrb[0].mxu0
        %v2716 = vpop.f32.mrb[0].mxu0
        %v2717 = vadd.f32 0.0, %v2716
        %v2718 = vpop.f32.mrb[0].mxu0
        %2719 = vmatprep.mubr.bf16.mxu0 0
        %2720 = vmatmul.mubr.bf16.gmra.mrb[0].mxu0 %v2671
        %v2721 = vpop.f32.mrb[0].mxu0
        %v2722 = vadd.f32 0.0, %v2721
        %v2723 = vpop.f32.mrb[0].mxu0
        %v2724 = vpop.f32.mrb[0].mxu0
        %v2725 = vadd.f32 0.0, %v2724
        %v2726 = vpop.f32.mrb[0].mxu0
        %2727 = vmatprep.mubr.bf16.mxu0 0
        %2728 = vmatmul.mubr.bf16.gmra.mrb[0].mxu0 %v2674
        %v2729 = vpop.f32.mrb[0].mxu0
        %v2730 = vadd.f32 0.0, %v2729
        %v2731 = vpop.f32.mrb[0].mxu0
        %v2732 = vpop.f32.mrb[0].mxu0
        %v2733 = vadd.f32 0.0, %v2732
        %v2734 = vpop.f32.mrb[0].mxu0
        %2735 = vmatprep.mubr.bf16.mxu0 0
        %2736 = vmatmul.mubr.bf16.gmra.mrb[0].mxu0 %v2677
        %v2737 = vpop.f32.mrb[0].mxu0
        %v2738 = vadd.f32 0.0, %v2737
        %v2739 = vpop.f32.mrb[0].mxu0
        %v2740 = vpop.f32.mrb[0].mxu0
        %v2741 = vadd.f32 0.0, %v2740
        %v2742 = vpop.f32.mrb[0].mxu0
        %2743 = vdwg.mxu0
        %v2744 = vadd.f32 %v2502, %v2714
        %v2745 = vadd.f32 %v2503, %v2717
        %v2746 = vadd.f32 %v2504, %v2722
        %v2747 = vadd.f32 %v2505, %v2725
        %v2748 = vadd.f32 %v2506, %v2730
        %v2749 = vadd.f32 %v2507, %v2733
        %v2750 = vadd.f32 %v2508, %v2738
        %v2751 = vadd.f32 %v2509, %v2741
        %v2752 = vld [vmem:[%s2379] sm:$0xe]
        %v2753 = vld [vmem:[%s2379 + $0x8] sm:$0xe]
        %v2754 = vld [vmem:[%s2379 + $0x10] sm:$0xe]
        %v2755 = vld [vmem:[%s2379 + $0x18] sm:$0xe]
        %v2756 = vld [vmem:[%s2379 + $0x20] sm:$0xe]
        %v2757 = vld [vmem:[%s2379 + $0x28] sm:$0xe]
        %v2758 = vld [vmem:[%s2379 + $0x30] sm:$0xe]
        %v2759 = vld [vmem:[%s2379 + $0x38] sm:$0xe]
        %v2776 = vrot.slane %v2752, 5
        %v2777 = vrot.slane %v2776, 4
        %v2778 = vrot.slane %v2511, 5
        %v2779 = vsel %vm1690, %v2777, %v2778
        %v2780 = vrot.slane %v2753, 5
        %v2781 = vrot.slane %v2780, 4
        %v2782 = vrot.slane %v2513, 5
        %v2783 = vsel %vm1690, %v2781, %v2782
        %v2784 = vrot.slane %v2754, 5
        %v2785 = vrot.slane %v2784, 4
        %v2786 = vrot.slane %v2515, 5
        %v2787 = vsel %vm1690, %v2785, %v2786
        %v2788 = vrot.slane %v2755, 5
        %v2789 = vrot.slane %v2788, 4
        %v2790 = vrot.slane %v2517, 5
        %v2791 = vsel %vm1690, %v2789, %v2790
        %v2792 = vrot.slane %v2756, 5
        %v2793 = vrot.slane %v2792, 4
        %v2794 = vrot.slane %v2519, 5
        %v2795 = vsel %vm1690, %v2793, %v2794
        %v2796 = vrot.slane %v2757, 5
        %v2797 = vrot.slane %v2796, 4
        %v2798 = vrot.slane %v2521, 5
        %v2799 = vsel %vm1690, %v2797, %v2798
        %v2800 = vrot.slane %v2758, 5
        %v2801 = vrot.slane %v2800, 4
        %v2802 = vrot.slane %v2523, 5
        %v2803 = vsel %vm1690, %v2801, %v2802
        %v2804 = vrot.slane %v2759, 5
        %v2805 = vrot.slane %v2804, 4
        %v2806 = vrot.slane %v2525, 5
        %v2807 = vsel %vm1690, %v2805, %v2806
        %s2808 = scalar_lea.vmem %s4, 128
        %v2809 = vld [vmem:[%s2808] sm:$0xf]
        %v2810 = vld [vmem:[%s2808 + $0x4] sm:$0xf]
        %v2811 = vld [vmem:[%s2808 + $0x8] sm:$0xf]
        %v2812 = vld [vmem:[%s2808 + $0xc] sm:$0xf]
        %v2813 = vunpack.c.l.b16 %v2779
        %v2814 = vunpack.c.l.b16 %v2783
        %v2815 = vunpack.c.l.b16 %v2787
        %v2816 = vunpack.c.l.b16 %v2791
        %v2817 = vunpack.c.l.b16 %v2795
        %v2818 = vunpack.c.l.b16 %v2799
        %v2819 = vunpack.c.l.b16 %v2803
        %v2820 = vunpack.c.l.b16 %v2807
        %v2821 = vpack.c.b16 %v2814, %v2813
        %v2822 = vpack.c.b16 %v2816, %v2815
        %v2823 = vpack.c.b16 %v2818, %v2817
        %v2824 = vpack.c.b16 %v2820, %v2819
        %v2829 = vunpack.c.l.b16 %v2809
        %v2830 = vunpack.c.l.b16 %v2810
        %v2831 = vunpack.c.l.b16 %v2811
        %v2832 = vunpack.c.l.b16 %v2812
        %v2833 = vpack.c.b16 %v2830, %v2829
        %v2834 = vpack.c.b16 %v2832, %v2831
        %v2838 = vsel %vm974, %v2821, 0
        %v2841 = vsel %vm974, %v2822, 0
        %v2844 = vsel %vm974, %v2823, 0
        %v2847 = vsel %vm974, %v2824, 0
        %2849 = vmatprep.subr.bf16.mxu0 0
        %2850 = vmatpush1.bf16.msra.mxu0 %v2833
        %2851 = vmatprep.subr.bf16.mxu0 0
        %2852 = vmatpush1.bf16.msra.mxu0 %v2834
        %2853 = vmatprep.subr.bf16.mxu0 0
        %2854 = vmatpush1.bf16.msra.mxu0 0
        %2855 = vmatprep.subr.bf16.mxu0 0
        %2856 = vmatpush1.bf16.msra.mxu0 0
        %2857 = vmatprep.subr.bf16.mxu0 0
        %2858 = vmatpush1.bf16.msra.mxu0 0
        %2859 = vmatprep.subr.bf16.mxu0 0
        %2860 = vmatpush1.bf16.msra.mxu0 0
        %2861 = vmatprep.subr.bf16.mxu0 0
        %2862 = vmatpush1.bf16.msra.mxu0 0
        %2863 = vmatprep.subr.bf16.mxu0 0
        %2864 = vmatpush1.bf16.msra.mxu0 0
        %2865 = vmatprep.subr.bf16.mxu0 0
        %2866 = vmatpush1.bf16.msra.mxu0 0
        %2867 = vmatprep.subr.bf16.mxu0 0
        %2868 = vmatpush1.bf16.msra.mxu0 0
        %2869 = vmatprep.subr.bf16.mxu0 0
        %2870 = vmatpush1.bf16.msra.mxu0 0
        %2871 = vmatprep.subr.bf16.mxu0 0
        %2872 = vmatpush1.bf16.msra.mxu0 0
        %2873 = vmatprep.subr.bf16.mxu0 0
        %2874 = vmatpush1.bf16.msra.mxu0 0
        %2875 = vmatprep.subr.bf16.mxu0 0
        %2876 = vmatpush1.bf16.msra.mxu0 0
        %2877 = vmatprep.subr.bf16.mxu0 0
        %2878 = vmatpush1.bf16.msra.mxu0 0
        %2879 = vmatprep.subr.bf16.mxu0 0
        %2880 = vmatpush1.bf16.msra.mxu0 0
        %2881 = vmatprep.mubr.bf16.mxu0 0
        %2882 = vmatmul.mubr.bf16.gmra.mrb[0].mxu0 %v2838
        %v2883 = vpop.f32.mrb[0].mxu0
        %v2884 = vadd.f32 0.0, %v2883
        %v2885 = vpop.f32.mrb[0].mxu0
        %v2886 = vpop.f32.mrb[0].mxu0
        %v2887 = vadd.f32 0.0, %v2886
        %v2888 = vpop.f32.mrb[0].mxu0
        %2889 = vmatprep.mubr.bf16.mxu0 0
        %2890 = vmatmul.mubr.bf16.gmra.mrb[0].mxu0 %v2841
        %v2891 = vpop.f32.mrb[0].mxu0
        %v2892 = vadd.f32 0.0, %v2891
        %v2893 = vpop.f32.mrb[0].mxu0
        %v2894 = vpop.f32.mrb[0].mxu0
        %v2895 = vadd.f32 0.0, %v2894
        %v2896 = vpop.f32.mrb[0].mxu0
        %2897 = vmatprep.mubr.bf16.mxu0 0
        %2898 = vmatmul.mubr.bf16.gmra.mrb[0].mxu0 %v2844
        %v2899 = vpop.f32.mrb[0].mxu0
        %v2900 = vadd.f32 0.0, %v2899
        %v2901 = vpop.f32.mrb[0].mxu0
        %v2902 = vpop.f32.mrb[0].mxu0
        %v2903 = vadd.f32 0.0, %v2902
        %v2904 = vpop.f32.mrb[0].mxu0
        %2905 = vmatprep.mubr.bf16.mxu0 0
        %2906 = vmatmul.mubr.bf16.gmra.mrb[0].mxu0 %v2847
        %v2907 = vpop.f32.mrb[0].mxu0
        %v2908 = vadd.f32 0.0, %v2907
        %v2909 = vpop.f32.mrb[0].mxu0
        %v2910 = vpop.f32.mrb[0].mxu0
        %v2911 = vadd.f32 0.0, %v2910
        %v2912 = vpop.f32.mrb[0].mxu0
        %2913 = vdwg.mxu0
        %v2914 = vadd.f32 %v2744, %v2884
        %v2915 = vadd.f32 %v2745, %v2887
        %v2916 = vadd.f32 %v2746, %v2892
        %v2917 = vadd.f32 %v2747, %v2895
        %v2918 = vadd.f32 %v2748, %v2900
        %v2919 = vadd.f32 %v2749, %v2903
        %v2920 = vadd.f32 %v2750, %v2908
        %v2921 = vadd.f32 %v2751, %v2911
        %vm2922 = vcmask 64512
        %v2923 = vsel %vm2922, %v2914, 0.0
        %2924 = vadd.xlane.f32.xlu0 %v2923
        %v2925 = vpop.xlane.xlu0 %2924
        %v2926 = vsel %vm2922, %v2915, 0.0
        %2927 = vadd.xlane.f32.xlu0 %v2926
        %v2928 = vpop.xlane.xlu0 %2927
        %v2929 = vsel %vm2922, %v2916, 0.0
        %2930 = vadd.xlane.f32.xlu0 %v2929
        %v2931 = vpop.xlane.xlu0 %2930
        %v2932 = vsel %vm2922, %v2917, 0.0
        %2933 = vadd.xlane.f32.xlu0 %v2932
        %v2934 = vpop.xlane.xlu0 %2933
        %v2935 = vsel %vm2922, %v2918, 0.0
        %2936 = vadd.xlane.f32.xlu0 %v2935
        %v2937 = vpop.xlane.xlu0 %2936
        %v2938 = vsel %vm2922, %v2919, 0.0
        %2939 = vadd.xlane.f32.xlu0 %v2938
        %v2940 = vpop.xlane.xlu0 %2939
        %v2941 = vsel %vm2922, %v2920, 0.0
        %2942 = vadd.xlane.f32.xlu0 %v2941
        %v2943 = vpop.xlane.xlu0 %2942
        %v2944 = vsel %vm2922, %v2921, 0.0
        %2945 = vadd.xlane.f32.xlu0 %v2944
        %v2946 = vpop.xlane.xlu0 %2945
        %v2947 = vrcp.pop 8.0
        %v2948 = vmul.f32 %v2925, %v2947
        %v2949 = vmul.f32 %v2928, %v2947
        %v2950 = vmul.f32 %v2931, %v2947
        %v2951 = vmul.f32 %v2934, %v2947
        %v2952 = vmul.f32 %v2937, %v2947
        %v2953 = vmul.f32 %v2940, %v2947
        %v2954 = vmul.f32 %v2943, %v2947
        %v2955 = vmul.f32 %v2946, %v2947
        %v2956 = vadd.f32 %v2948, %v2949
        %v2957 = vadd.f32 %v2956, %v2950
        %v2958 = vadd.f32 %v2957, %v2951
        %v2959 = vadd.f32 %v2958, %v2952
        %v2960 = vadd.f32 %v2959, %v2953
        %v2961 = vadd.f32 %v2960, %v2954
        %v2962 = vadd.f32 %v2961, %v2955
        %v2963 = vrot.slane %v2962, 4
        %v2964 = vadd.f32 %v2962, %v2963
        %v2965 = vrot.slane %v2964, 2
        %v2966 = vadd.f32 %v2964, %v2965
        %v2967 = vrot.slane %v2966, 1
        %v2968 = vadd.f32 %v2966, %v2967
        %v2969 = vmul.f32 %v2968, %v996
        %v2970 = vsub.f32 %v2914, %v2969
        %v2971 = vsub.f32 %v2915, %v2969
        %v2972 = vsub.f32 %v2916, %v2969
        %v2973 = vsub.f32 %v2917, %v2969
        %v2974 = vsub.f32 %v2918, %v2969
        %v2975 = vsub.f32 %v2919, %v2969
        %v2976 = vsub.f32 %v2920, %v2969
        %v2977 = vsub.f32 %v2921, %v2969
        %v2978 = vmul.f32 %v2970, %v2970
        %v2979 = vmul.f32 %v2971, %v2971
        %v2980 = vmul.f32 %v2972, %v2972
        %v2981 = vmul.f32 %v2973, %v2973
        %v2982 = vmul.f32 %v2974, %v2974
        %v2983 = vmul.f32 %v2975, %v2975
        %v2984 = vmul.f32 %v2976, %v2976
        %v2985 = vmul.f32 %v2977, %v2977
        %v2986 = vsel %vm2922, %v2978, 0.0
        %2987 = vadd.xlane.f32.xlu0 %v2986
        %v2988 = vpop.xlane.xlu0 %2987
        %v2989 = vsel %vm2922, %v2979, 0.0
        %2990 = vadd.xlane.f32.xlu0 %v2989
        %v2991 = vpop.xlane.xlu0 %2990
        %v2992 = vsel %vm2922, %v2980, 0.0
        %2993 = vadd.xlane.f32.xlu0 %v2992
        %v2994 = vpop.xlane.xlu0 %2993
        %v2995 = vsel %vm2922, %v2981, 0.0
        %2996 = vadd.xlane.f32.xlu0 %v2995
        %v2997 = vpop.xlane.xlu0 %2996
        %v2998 = vsel %vm2922, %v2982, 0.0
        %2999 = vadd.xlane.f32.xlu0 %v2998
        %v3000 = vpop.xlane.xlu0 %2999
        %v3001 = vsel %vm2922, %v2983, 0.0
        %3002 = vadd.xlane.f32.xlu0 %v3001
        %v3003 = vpop.xlane.xlu0 %3002
        %v3004 = vsel %vm2922, %v2984, 0.0
        %3005 = vadd.xlane.f32.xlu0 %v3004
        %v3006 = vpop.xlane.xlu0 %3005
        %v3007 = vsel %vm2922, %v2985, 0.0
        %3008 = vadd.xlane.f32.xlu0 %v3007
        %v3009 = vpop.xlane.xlu0 %3008
        %v3010 = vmul.f32 %v2988, %v2947
        %v3011 = vmul.f32 %v2991, %v2947
        %v3012 = vmul.f32 %v2994, %v2947
        %v3013 = vmul.f32 %v2997, %v2947
        %v3014 = vmul.f32 %v3000, %v2947
        %v3015 = vmul.f32 %v3003, %v2947
        %v3016 = vmul.f32 %v3006, %v2947
        %v3017 = vmul.f32 %v3009, %v2947
        %v3018 = vadd.f32 %v3010, %v3011
        %v3019 = vadd.f32 %v3018, %v3012
        %v3020 = vadd.f32 %v3019, %v3013
        %v3021 = vadd.f32 %v3020, %v3014
        %v3022 = vadd.f32 %v3021, %v3015
        %v3023 = vadd.f32 %v3022, %v3016
        %v3024 = vadd.f32 %v3023, %v3017
        %v3025 = vrot.slane %v3024, 4
        %v3026 = vadd.f32 %v3024, %v3025
        %v3027 = vrot.slane %v3026, 2
        %v3028 = vadd.f32 %v3026, %v3027
        %v3029 = vrot.slane %v3028, 1
        %v3030 = vadd.f32 %v3028, %v3029
        %v3031 = vmul.f32 %v3030, %v996
        %v3032 = vadd.f32 %v3031, 1e-05
        %v3033 = vrsqrt.pop %v3032
        %v3034 = vmul.f32 %v2970, %v3033
        %v3035 = vmul.f32 %v2971, %v3033
        %v3036 = vmul.f32 %v2972, %v3033
        %v3037 = vmul.f32 %v2973, %v3033
        %v3038 = vmul.f32 %v2974, %v3033
        %v3039 = vmul.f32 %v2975, %v3033
        %v3040 = vmul.f32 %v2976, %v3033
        %v3041 = vmul.f32 %v2977, %v3033
        %v3043 = vlaneseq
        %v3044 = vshrl.u32 %v3043, 7
        %v3045 = vsub.s32 0, %v3044
        %v3046 = vrot.slane %v280, %v3045
        %v3048 = vmul.f32 %v3034, %v3046
        %v3049 = vmul.f32 %v3035, %v3046
        %v3050 = vmul.f32 %v3036, %v3046
        %v3051 = vmul.f32 %v3037, %v3046
        %v3052 = vmul.f32 %v3038, %v3046
        %v3053 = vmul.f32 %v3039, %v3046
        %v3054 = vmul.f32 %v3040, %v3046
        %v3055 = vmul.f32 %v3041, %v3046
        %v3057 = vlaneseq
        %v3058 = vshrl.u32 %v3057, 7
        %v3059 = vsub.s32 0, %v3058
        %v3060 = vrot.slane %v281, %v3059
        %v3062 = vadd.f32 %v3048, %v3060
        %v3063 = vadd.f32 %v3049, %v3060
        %v3064 = vadd.f32 %v3050, %v3060
        %v3065 = vadd.f32 %v3051, %v3060
        %v3066 = vadd.f32 %v3052, %v3060
        %v3067 = vadd.f32 %v3053, %v3060
        %v3068 = vadd.f32 %v3054, %v3060
        %v3069 = vadd.f32 %v3055, %v3060
        %v3070 = vmax.f32 %v3062, 0.0
        %v3071 = vmax.f32 %v3063, 0.0
        %v3072 = vmax.f32 %v3064, 0.0
        %v3073 = vmax.f32 %v3065, 0.0
        %v3074 = vmax.f32 %v3066, 0.0
        %v3075 = vmax.f32 %v3067, 0.0
        %v3076 = vmax.f32 %v3068, 0.0
        %v3077 = vmax.f32 %v3069, 0.0
        %3078 = vxpose.xlu0.b32.start [1/16] %v3070, 128
        %3079 = vxpose.xlu0.b32.cont [2/16] %v3071, 128
        %3080 = vxpose.xlu0.b32.cont [3/16] %v3072, 128
        %3081 = vxpose.xlu0.b32.cont [4/16] %v3073, 128
        %3082 = vxpose.xlu0.b32.cont [5/16] %v3074, 128
        %3083 = vxpose.xlu0.b32.cont [6/16] %v3075, 128
        %3084 = vxpose.xlu0.b32.cont [7/16] %v3076, 128
        %3085 = vxpose.xlu0.b32.cont [8/16] %v3077, 128
        %3086 = vxpose.xlu0.b32.cont [9/16] 0.0, 128
        %3087 = vxpose.xlu0.b32.cont [10/16] 0.0, 128
        %3088 = vxpose.xlu0.b32.cont [11/16] 0.0, 128
        %3089 = vxpose.xlu0.b32.cont [12/16] 0.0, 128
        %3090 = vxpose.xlu0.b32.cont [13/16] 0.0, 128
        %3091 = vxpose.xlu0.b32.cont [14/16] 0.0, 128
        %3092 = vxpose.xlu0.b32.cont [15/16] 0.0, 128
        %3093 = vxpose.xlu0.b32.end [16/16] 0.0, 128
        %v3094 = vpop.trf.xlu0
        %v3095 = vpop.trf.xlu0
        %v3096 = vpop.trf.xlu0
        %v3097 = vpop.trf.xlu0
        %v3098 = vpop.trf.xlu0
        %v3099 = vpop.trf.xlu0
        %v3100 = vpop.trf.xlu0
        %v3101 = vpop.trf.xlu0
        %v3102 = vpop.trf.xlu0
        %v3103 = vpop.trf.xlu0
        %v3104 = vpop.trf.xlu0
        %v3105 = vpop.trf.xlu0
        %v3106 = vpop.trf.xlu0
        %v3107 = vpop.trf.xlu0
        %v3108 = vpop.trf.xlu0
        %v3109 = vpop.trf.xlu0
        %vm3110 = vcmask 523264
        %3111 = vst.msk [vmem:[%s271] sm:$0xff] %vm3110, %v3094
        %s3112 = sand.u32 %s181, 1
        %s3113 = scalar_lea.sflag [#allocation4], %s3112
        %s3114 = sand.u32 %s181, 1
        %s3115 = smul.addr %s3114, 8
        %s3116 = scalar_lea.vmem [#allocation3], %s3115
        // Predicated region
        $region49: #{tpu_custom_call.1} parent=47 // pred_check
          %p3117 = pneg %p191
        $region50: #{tpu_custom_call.1} parent=47 // pred_check_branch
          %3119 = sbr.rel (%p3117) target = $region52
        $region51: #{tpu_custom_call.1} parent=47 // pred_region
          %s3121 = ssub.s32 128, 128
          %3122 = vsyncadd %s3113, %s3121
          %s3123 = smul.addr %s21, 128
          %s3124 = scalar_lea.hbm %s7, %s3123
          %s3126 = sshll.u32 %s3116, 4
          %s3127 = int_to_ptr.vmem [resolvable:$true] %s3126
          %3129 = dma.vmem_to_hbm [thread:$0]  %s3127, 128, %s3124, %s3113
        $region52: #{tpu_custom_call.1} parent=47 // pred_fallthru
          _
      $region48: #{tpu_custom_call.1} parent=5 // pred_fallthru
        _
      %p3130 = scmp.le.s32.totalorder 2, %s16
      // Predicated region
      $region53: #{tpu_custom_call.1} parent=5 // pred_check
        %p3131 = pneg %p3130
      $region54: #{tpu_custom_call.1} parent=5 // pred_check_branch
        %3133 = sbr.rel (%p3131) target = $region56
      $region55: #{tpu_custom_call.1} parent=5 // pred_region
        %s3134 = ssub.s32 %s16, 2
        // Predicated region
        $region57: #{tpu_custom_call.1} parent=55 // pred_check
          %p3135 = pneg %p197
        $region58: #{tpu_custom_call.1} parent=55 // pred_check_branch
          %3137 = sbr.rel (%p3135) target = $region60
        $region59: #{tpu_custom_call.1} parent=55 // pred_region
          %s3138 = sand.u32 %s182, 1
          %s3139 = scalar_lea.sflag [#allocation4], %s3138
          %s3140 = sand.u32 %s182, 1
          %s3141 = smul.addr %s3140, 8
          %s3142 = scalar_lea.vmem [#allocation3], %s3141
          %3143 = dma.done %s3139, 128
        $region60: #{tpu_custom_call.1} parent=55 // pred_fallthru
          _
      $region56: #{tpu_custom_call.1} parent=5 // pred_fallthru
        _
    $region6: #{tpu_custom_call.1} parent=1 // loop_footer
      %s20 = sadd.s32 1, %s16
    $region7: #{tpu_custom_call.1} parent=1 // loop_footer_branch
      %15 = sbr.rel target = $region3
    $region8: #{tpu_custom_call.1} parent=1 // loop_exit
      _
    %3144 = vsyncpa [#allocation4], 1
    %s3145 = scalar_lea.sflag [#allocation4], 1
    %3146 = vsyncpa %s3145, 1

</llo_original>
